<compile_context>
chip_gen: v7x
topology: tpu7x:2x2x1
jax: 0.10.0
libtpu: 0.0.40
codegen_flags: <defaults>
</compile_context>

<pallas_src>
import math

import jax
import jax.numpy as jnp
from jax.experimental import pallas as pl
from jax.experimental.pallas import tpu as pltpu

# ---------------- config (small, consistent with the module) ----------------
D_MODEL = 32
N_HEADS = 4
HEAD_DIM = D_MODEL // N_HEADS
D_FF = 4 * D_MODEL
VOCAB_SIZE = 50
MAX_POS = 16
N_LAYERS = 2
EMB_EPS = 1e-12   # config.transformer_params['embedding']['epsilon']
LN_EPS = 1e-5     # torch nn.LayerNorm default


# ---------------- shared math helpers (used inside kernel and reference) ----------------
def _layer_norm(x, gamma, beta, eps):
    mu = jnp.mean(x, axis=-1, keepdims=True)
    var = jnp.mean((x - mu) ** 2, axis=-1, keepdims=True)
    return (x - mu) * jax.lax.rsqrt(var + eps) * gamma + beta


def _gelu(x):
    # TODO(synk): FeedForward activation not given in source; using tanh-approx GELU.
    c = math.sqrt(2.0 / math.pi)
    return 0.5 * x * (1.0 + jnp.tanh(c * (x + 0.044715 * x * x * x)))


# ---------------- fused Pallas kernel ----------------
def encoder_fused_kernel(ids_ref,                               # SMEM (B, S) int32 (scalar prefetch)
                         tok_emb_ref, pos_ref, eg_ref, eb_ref,  # embedding params (full VMEM blocks)
                         g1_ref, b1_ref,
                         wq_ref, bq_ref, wk_ref, bk_ref, wv_ref, bv_ref,
                         wo_ref, bo_ref,
                         g2_ref, b2_ref,
                         w1_ref, bw1_ref, w2_ref, bw2_ref,      # stacked per-layer params
                         o_ref):                                # (1, S, D) output block
    b = pl.program_id(0)
    S, D = pos_ref.shape
    V = tok_emb_ref.shape[0]
    L = wq_ref.shape[0]
    hd = D // N_HEADS
    scale = 1.0 / math.sqrt(hd)

    # ---- in-kernel token-embedding gather: build one-hot from SMEM ids, then MXU matmul ----
    row_iota = jax.lax.broadcasted_iota(jnp.int32, (S, V), 0)
    col_iota = jax.lax.broadcasted_iota(jnp.int32, (S, V), 1)
    onehot = jnp.zeros((S, V), jnp.float32)
    for s in range(S):  # S=8, unrolled; pure VPU compare/select on one vreg
        onehot = onehot + jnp.where(
            jnp.logical_and(row_iota == s, col_iota == ids_ref[b, s]), 1.0, 0.0)
    x = jnp.dot(onehot, tok_emb_ref[...], preferred_element_type=jnp.float32)   # (S, D)
    x = x + pos_ref[...]
    x = _layer_norm(x, eg_ref[...], eb_ref[...], EMB_EPS)

    # ---- unrolled layer loop (L = N_LAYERS), weights resident in VMEM ----
    for l in range(L):
        # pre-LN self-attention + residual
        h = _layer_norm(x, g1_ref[l], b1_ref[l], LN_EPS)
        q = jnp.dot(h, wq_ref[l], preferred_element_type=jnp.float32) + bq_ref[l]
        k = jnp.dot(h, wk_ref[l], preferred_element_type=jnp.float32) + bk_ref[l]
        v = jnp.dot(h, wv_ref[l], preferred_element_type=jnp.float32) + bv_ref[l]

        # per-head scores stacked along sublanes -> one batched softmax pass
        s_all = jnp.concatenate(
            [jax.lax.dot_general(q[:, i * hd:(i + 1) * hd], k[:, i * hd:(i + 1) * hd],
                                 (((1,), (1,)), ((), ())),
                                 preferred_element_type=jnp.float32)
             for i in range(N_HEADS)], axis=0) * scale                      # (H*S, S)
        s_all = s_all - jnp.max(s_all, axis=-1, keepdims=True)
        p_all = jnp.exp(s_all)
        p_all = p_all * pl.reciprocal(jnp.sum(p_all, axis=-1, keepdims=True),
                                      approx=True)

        # per-head context re-packed along lanes -> single full-width Wo matmul
        ctx = jnp.concatenate(
            [jnp.dot(p_all[i * S:(i + 1) * S], v[:, i * hd:(i + 1) * hd],
                     preferred_element_type=jnp.float32)
             for i in range(N_HEADS)], axis=-1)                             # (S, D)
        x = x + jnp.dot(ctx, wo_ref[l], preferred_element_type=jnp.float32) + bo_ref[l]

        # pre-LN feed-forward + residual
        h2 = _layer_norm(x, g2_ref[l], b2_ref[l], LN_EPS)
        f = jnp.dot(h2, w1_ref[l], preferred_element_type=jnp.float32) + bw1_ref[l]
        f = _gelu(f)
        x = x + jnp.dot(f, w2_ref[l], preferred_element_type=jnp.float32) + bw2_ref[l]

    o_ref[0] = x


# ---------------- wrapper ----------------
_LAYER_KEYS = ("g1", "b1", "wq", "bq", "wk", "bk", "wv", "bv",
               "wo", "bo", "g2", "b2", "w1", "bw1", "w2", "bw2")


def _full_spec(arr):
    # full-array VMEM block, constant across the grid (weights stay resident)
    n = arr.ndim
    return pl.BlockSpec(arr.shape, lambda b, ids, _n=n: (0,) * _n)


def encoder_forward(token_ids, params):
    B, S = token_ids.shape
    pos = params["pos_emb"][:S]                       # (S, D) static slice (pos_ids = arange(S))
    tensors = [params["tok_emb"], pos, params["emb_g"], params["emb_b"]] + \
              [params[k] for k in _LAYER_KEYS]

    grid_spec = pltpu.PrefetchScalarGridSpec(
        num_scalar_prefetch=1,                        # token_ids -> SMEM, gathered in-kernel
        grid=(B,),
        in_specs=[_full_spec(t) for t in tensors],
        out_specs=pl.BlockSpec((1, S, D_MODEL), lambda b, ids: (b, 0, 0)),
    )
    return pl.pallas_call(
        encoder_fused_kernel,
        out_shape=jax.ShapeDtypeStruct((B, S, D_MODEL), jnp.float32),
        grid_spec=grid_spec,
        compiler_params=pltpu.CompilerParams(
            dimension_semantics=("parallel",)),       # one batch element per TC on v7x
    )(token_ids, *tensors)


# ---------------- pure-JAX reference (same math) ----------------
def reference_forward(token_ids, params):
    B, S = token_ids.shape
    tok = params["tok_emb"][token_ids]
    pos = params["pos_emb"][:S][None]
    x = _layer_norm(tok + pos, params["emb_g"], params["emb_b"], EMB_EPS)
    for l in range(N_LAYERS):
        h = _layer_norm(x, params["g1"][l], params["b1"][l], LN_EPS)
        q = h @ params["wq"][l] + params["bq"][l]
        k = h @ params["wk"][l] + params["bk"][l]
        v = h @ params["wv"][l] + params["bv"][l]
        q = q.reshape(B, S, N_HEADS, HEAD_DIM)
        k = k.reshape(B, S, N_HEADS, HEAD_DIM)
        v = v.reshape(B, S, N_HEADS, HEAD_DIM)
        s = jnp.einsum("bqhd,bkhd->bhqk", q, k) / math.sqrt(HEAD_DIM)
        p = jax.nn.softmax(s, axis=-1)
        o = jnp.einsum("bhqk,bkhd->bqhd", p, v).reshape(B, S, D_MODEL)
        x = x + (o @ params["wo"][l] + params["bo"][l])
        h2 = _layer_norm(x, params["g2"][l], params["b2"][l], LN_EPS)
        f = _gelu(h2 @ params["w1"][l] + params["bw1"][l]) @ params["w2"][l] + params["bw2"][l]
        x = x + f
    return x


# ---------------- deterministic parameter init (stacked per-layer weights) ----------------
def init_params(key):
    ks = iter(jax.random.split(key, 32))

    def nrm(shape, scale=0.02):
        return (scale * jax.random.normal(next(ks), shape)).astype(jnp.float32)

    L = N_LAYERS
    return {
        "tok_emb": nrm((VOCAB_SIZE, D_MODEL), 1.0),
        "pos_emb": nrm((MAX_POS, D_MODEL), 1.0),
        "emb_g": jnp.ones((1, D_MODEL), jnp.float32) + nrm((1, D_MODEL), 0.01),
        "emb_b": nrm((1, D_MODEL), 0.01),
        "g1": jnp.ones((L, 1, D_MODEL), jnp.float32) + nrm((L, 1, D_MODEL), 0.01),
        "b1": nrm((L, 1, D_MODEL), 0.01),
        "wq": nrm((L, D_MODEL, D_MODEL)), "bq": nrm((L, 1, D_MODEL), 0.01),
        "wk": nrm((L, D_MODEL, D_MODEL)), "bk": nrm((L, 1, D_MODEL), 0.01),
        "wv": nrm((L, D_MODEL, D_MODEL)), "bv": nrm((L, 1, D_MODEL), 0.01),
        "wo": nrm((L, D_MODEL, D_MODEL)), "bo": nrm((L, 1, D_MODEL), 0.01),
        "g2": jnp.ones((L, 1, D_MODEL), jnp.float32) + nrm((L, 1, D_MODEL), 0.01),
        "b2": nrm((L, 1, D_MODEL), 0.01),
        "w1": nrm((L, D_MODEL, D_FF)), "bw1": nrm((L, 1, D_FF), 0.01),
        "w2": nrm((L, D_FF, D_MODEL)), "bw2": nrm((L, 1, D_MODEL), 0.01),
    }


if __name__ == "__main__":
    key = jax.random.PRNGKey(0)
    k_ids, k_params = jax.random.split(key)

    B, S = 2, 8
    token_ids = jax.random.randint(k_ids, (B, S), 0, VOCAB_SIZE, dtype=jnp.int32)
    params = init_params(k_params)

    out = jax.block_until_ready(encoder_forward(token_ids, params))
    ref = jax.block_until_ready(reference_forward(token_ids, params))

    assert out.shape == (B, S, D_MODEL)
    assert jnp.allclose(out, ref, atol=2e-2, rtol=2e-2), "Pallas output mismatch vs reference"

    print("KERNEL_OK")
</pallas_src>

<mosaic_0001>
module attributes {stable_mosaic.version = 11 : i64} {
  func.func @encoder_fused_kernel(%arg0: i32, %arg1: memref<2x8xi32, #tpu.memory_space<smem>>, %arg2: memref<50x32xf32, #tpu.memory_space<vmem>>, %arg3: memref<8x32xf32, #tpu.memory_space<vmem>>, %arg4: memref<1x32xf32, #tpu.memory_space<vmem>>, %arg5: memref<1x32xf32, #tpu.memory_space<vmem>>, %arg6: memref<2x1x32xf32, #tpu.memory_space<vmem>>, %arg7: memref<2x1x32xf32, #tpu.memory_space<vmem>>, %arg8: memref<2x32x32xf32, #tpu.memory_space<vmem>>, %arg9: memref<2x1x32xf32, #tpu.memory_space<vmem>>, %arg10: memref<2x32x32xf32, #tpu.memory_space<vmem>>, %arg11: memref<2x1x32xf32, #tpu.memory_space<vmem>>, %arg12: memref<2x32x32xf32, #tpu.memory_space<vmem>>, %arg13: memref<2x1x32xf32, #tpu.memory_space<vmem>>, %arg14: memref<2x32x32xf32, #tpu.memory_space<vmem>>, %arg15: memref<2x1x32xf32, #tpu.memory_space<vmem>>, %arg16: memref<2x1x32xf32, #tpu.memory_space<vmem>>, %arg17: memref<2x1x32xf32, #tpu.memory_space<vmem>>, %arg18: memref<2x32x128xf32, #tpu.memory_space<vmem>>, %arg19: memref<2x1x128xf32, #tpu.memory_space<vmem>>, %arg20: memref<2x128x32xf32, #tpu.memory_space<vmem>>, %arg21: memref<2x1x32xf32, #tpu.memory_space<vmem>>, %arg22: memref<1x8x32xf32, #tpu.memory_space<vmem>>) attributes {dimension_semantics = [#tpu.dimension_semantics<parallel>], iteration_bounds = array<i64: 2>, scalar_prefetch = 1 : i64, scratch_operands = 0 : i64, tpu.core_type = #tpu.core_type<tc>, window_params = [{pipeline_mode = #tpu.pipeline_mode<synchronous>, transform_indices = @transform_0, window_bounds = array<i64: 50, 32>}, {pipeline_mode = #tpu.pipeline_mode<synchronous>, transform_indices = @transform_1, window_bounds = array<i64: 8, 32>}, {pipeline_mode = #tpu.pipeline_mode<synchronous>, transform_indices = @transform_2, window_bounds = array<i64: 1, 32>}, {pipeline_mode = #tpu.pipeline_mode<synchronous>, transform_indices = @transform_3, window_bounds = array<i64: 1, 32>}, {pipeline_mode = #tpu.pipeline_mode<synchronous>, transform_indices = @transform_4, window_bounds = array<i64: 2, 1, 32>}, {pipeline_mode = #tpu.pipeline_mode<synchronous>, transform_indices = @transform_5, window_bounds = array<i64: 2, 1, 32>}, {pipeline_mode = #tpu.pipeline_mode<synchronous>, transform_indices = @transform_6, window_bounds = array<i64: 2, 32, 32>}, {pipeline_mode = #tpu.pipeline_mode<synchronous>, transform_indices = @transform_7, window_bounds = array<i64: 2, 1, 32>}, {pipeline_mode = #tpu.pipeline_mode<synchronous>, transform_indices = @transform_8, window_bounds = array<i64: 2, 32, 32>}, {pipeline_mode = #tpu.pipeline_mode<synchronous>, transform_indices = @transform_9, window_bounds = array<i64: 2, 1, 32>}, {pipeline_mode = #tpu.pipeline_mode<synchronous>, transform_indices = @transform_10, window_bounds = array<i64: 2, 32, 32>}, {pipeline_mode = #tpu.pipeline_mode<synchronous>, transform_indices = @transform_11, window_bounds = array<i64: 2, 1, 32>}, {pipeline_mode = #tpu.pipeline_mode<synchronous>, transform_indices = @transform_12, window_bounds = array<i64: 2, 32, 32>}, {pipeline_mode = #tpu.pipeline_mode<synchronous>, transform_indices = @transform_13, window_bounds = array<i64: 2, 1, 32>}, {pipeline_mode = #tpu.pipeline_mode<synchronous>, transform_indices = @transform_14, window_bounds = array<i64: 2, 1, 32>}, {pipeline_mode = #tpu.pipeline_mode<synchronous>, transform_indices = @transform_15, window_bounds = array<i64: 2, 1, 32>}, {pipeline_mode = #tpu.pipeline_mode<synchronous>, transform_indices = @transform_16, window_bounds = array<i64: 2, 32, 128>}, {pipeline_mode = #tpu.pipeline_mode<synchronous>, transform_indices = @transform_17, window_bounds = array<i64: 2, 1, 128>}, {pipeline_mode = #tpu.pipeline_mode<synchronous>, transform_indices = @transform_18, window_bounds = array<i64: 2, 128, 32>}, {pipeline_mode = #tpu.pipeline_mode<synchronous>, transform_indices = @transform_19, window_bounds = array<i64: 2, 1, 32>}, {transform_indices = @transform_20, window_bounds = array<i64: 1, 8, 32>}]} {
    %0 = tpu.iota {dimensions = array<i32: 0>} : vector<8x50xi32>
    %1 = tpu.iota {dimensions = array<i32: 1>} : vector<8x50xi32>
    %cst = arith.constant 0.000000e+00 : f32
    %2 = vector.broadcast %cst : f32 to vector<8x50xf32>
    %c0_i32 = arith.constant 0 : i32
    %3 = vector.broadcast %c0_i32 : i32 to vector<8x50xi32>
    %4 = arith.cmpi eq, %0, %3 : vector<8x50xi32>
    %5 = arith.index_cast %arg0 : i32 to index
    %c0 = arith.constant 0 : index
    %6 = memref.load %arg1[%5, %c0] : memref<2x8xi32, #tpu.memory_space<smem>>
    %7 = vector.broadcast %6 : i32 to vector<8x50xi32>
    %8 = arith.cmpi eq, %1, %7 : vector<8x50xi32>
    %9 = arith.andi %4, %8 : vector<8x50xi1>
    %cst_0 = arith.constant 1.000000e+00 : f32
    %cst_1 = arith.constant 0.000000e+00 : f32
    %10 = vector.broadcast %cst_0 : f32 to vector<8x50xf32>
    %11 = vector.broadcast %cst_1 : f32 to vector<8x50xf32>
    %12 = arith.select %9, %10, %11 : vector<8x50xi1>, vector<8x50xf32>
    %13 = arith.addf %2, %12 : vector<8x50xf32>
    %c1_i32 = arith.constant 1 : i32
    %14 = vector.broadcast %c1_i32 : i32 to vector<8x50xi32>
    %15 = arith.cmpi eq, %0, %14 : vector<8x50xi32>
    %16 = arith.index_cast %arg0 : i32 to index
    %c1 = arith.constant 1 : index
    %17 = memref.load %arg1[%16, %c1] : memref<2x8xi32, #tpu.memory_space<smem>>
    %18 = vector.broadcast %17 : i32 to vector<8x50xi32>
    %19 = arith.cmpi eq, %1, %18 : vector<8x50xi32>
    %20 = arith.andi %15, %19 : vector<8x50xi1>
    %cst_2 = arith.constant 1.000000e+00 : f32
    %cst_3 = arith.constant 0.000000e+00 : f32
    %21 = vector.broadcast %cst_2 : f32 to vector<8x50xf32>
    %22 = vector.broadcast %cst_3 : f32 to vector<8x50xf32>
    %23 = arith.select %20, %21, %22 : vector<8x50xi1>, vector<8x50xf32>
    %24 = arith.addf %13, %23 : vector<8x50xf32>
    %c2_i32 = arith.constant 2 : i32
    %25 = vector.broadcast %c2_i32 : i32 to vector<8x50xi32>
    %26 = arith.cmpi eq, %0, %25 : vector<8x50xi32>
    %27 = arith.index_cast %arg0 : i32 to index
    %c2 = arith.constant 2 : index
    %28 = memref.load %arg1[%27, %c2] : memref<2x8xi32, #tpu.memory_space<smem>>
    %29 = vector.broadcast %28 : i32 to vector<8x50xi32>
    %30 = arith.cmpi eq, %1, %29 : vector<8x50xi32>
    %31 = arith.andi %26, %30 : vector<8x50xi1>
    %cst_4 = arith.constant 1.000000e+00 : f32
    %cst_5 = arith.constant 0.000000e+00 : f32
    %32 = vector.broadcast %cst_4 : f32 to vector<8x50xf32>
    %33 = vector.broadcast %cst_5 : f32 to vector<8x50xf32>
    %34 = arith.select %31, %32, %33 : vector<8x50xi1>, vector<8x50xf32>
    %35 = arith.addf %24, %34 : vector<8x50xf32>
    %c3_i32 = arith.constant 3 : i32
    %36 = vector.broadcast %c3_i32 : i32 to vector<8x50xi32>
    %37 = arith.cmpi eq, %0, %36 : vector<8x50xi32>
    %38 = arith.index_cast %arg0 : i32 to index
    %c3 = arith.constant 3 : index
    %39 = memref.load %arg1[%38, %c3] : memref<2x8xi32, #tpu.memory_space<smem>>
    %40 = vector.broadcast %39 : i32 to vector<8x50xi32>
    %41 = arith.cmpi eq, %1, %40 : vector<8x50xi32>
    %42 = arith.andi %37, %41 : vector<8x50xi1>
    %cst_6 = arith.constant 1.000000e+00 : f32
    %cst_7 = arith.constant 0.000000e+00 : f32
    %43 = vector.broadcast %cst_6 : f32 to vector<8x50xf32>
    %44 = vector.broadcast %cst_7 : f32 to vector<8x50xf32>
    %45 = arith.select %42, %43, %44 : vector<8x50xi1>, vector<8x50xf32>
    %46 = arith.addf %35, %45 : vector<8x50xf32>
    %c4_i32 = arith.constant 4 : i32
    %47 = vector.broadcast %c4_i32 : i32 to vector<8x50xi32>
    %48 = arith.cmpi eq, %0, %47 : vector<8x50xi32>
    %49 = arith.index_cast %arg0 : i32 to index
    %c4 = arith.constant 4 : index
    %50 = memref.load %arg1[%49, %c4] : memref<2x8xi32, #tpu.memory_space<smem>>
    %51 = vector.broadcast %50 : i32 to vector<8x50xi32>
    %52 = arith.cmpi eq, %1, %51 : vector<8x50xi32>
    %53 = arith.andi %48, %52 : vector<8x50xi1>
    %cst_8 = arith.constant 1.000000e+00 : f32
    %cst_9 = arith.constant 0.000000e+00 : f32
    %54 = vector.broadcast %cst_8 : f32 to vector<8x50xf32>
    %55 = vector.broadcast %cst_9 : f32 to vector<8x50xf32>
    %56 = arith.select %53, %54, %55 : vector<8x50xi1>, vector<8x50xf32>
    %57 = arith.addf %46, %56 : vector<8x50xf32>
    %c5_i32 = arith.constant 5 : i32
    %58 = vector.broadcast %c5_i32 : i32 to vector<8x50xi32>
    %59 = arith.cmpi eq, %0, %58 : vector<8x50xi32>
    %60 = arith.index_cast %arg0 : i32 to index
    %c5 = arith.constant 5 : index
    %61 = memref.load %arg1[%60, %c5] : memref<2x8xi32, #tpu.memory_space<smem>>
    %62 = vector.broadcast %61 : i32 to vector<8x50xi32>
    %63 = arith.cmpi eq, %1, %62 : vector<8x50xi32>
    %64 = arith.andi %59, %63 : vector<8x50xi1>
    %cst_10 = arith.constant 1.000000e+00 : f32
    %cst_11 = arith.constant 0.000000e+00 : f32
    %65 = vector.broadcast %cst_10 : f32 to vector<8x50xf32>
    %66 = vector.broadcast %cst_11 : f32 to vector<8x50xf32>
    %67 = arith.select %64, %65, %66 : vector<8x50xi1>, vector<8x50xf32>
    %68 = arith.addf %57, %67 : vector<8x50xf32>
    %c6_i32 = arith.constant 6 : i32
    %69 = vector.broadcast %c6_i32 : i32 to vector<8x50xi32>
    %70 = arith.cmpi eq, %0, %69 : vector<8x50xi32>
    %71 = arith.index_cast %arg0 : i32 to index
    %c6 = arith.constant 6 : index
    %72 = memref.load %arg1[%71, %c6] : memref<2x8xi32, #tpu.memory_space<smem>>
    %73 = vector.broadcast %72 : i32 to vector<8x50xi32>
    %74 = arith.cmpi eq, %1, %73 : vector<8x50xi32>
    %75 = arith.andi %70, %74 : vector<8x50xi1>
    %cst_12 = arith.constant 1.000000e+00 : f32
    %cst_13 = arith.constant 0.000000e+00 : f32
    %76 = vector.broadcast %cst_12 : f32 to vector<8x50xf32>
    %77 = vector.broadcast %cst_13 : f32 to vector<8x50xf32>
    %78 = arith.select %75, %76, %77 : vector<8x50xi1>, vector<8x50xf32>
    %79 = arith.addf %68, %78 : vector<8x50xf32>
    %c7_i32 = arith.constant 7 : i32
    %80 = vector.broadcast %c7_i32 : i32 to vector<8x50xi32>
    %81 = arith.cmpi eq, %0, %80 : vector<8x50xi32>
    %82 = arith.index_cast %arg0 : i32 to index
    %c7 = arith.constant 7 : index
    %83 = memref.load %arg1[%82, %c7] : memref<2x8xi32, #tpu.memory_space<smem>>
    %84 = vector.broadcast %83 : i32 to vector<8x50xi32>
    %85 = arith.cmpi eq, %1, %84 : vector<8x50xi32>
    %86 = arith.andi %81, %85 : vector<8x50xi1>
    %cst_14 = arith.constant 1.000000e+00 : f32
    %cst_15 = arith.constant 0.000000e+00 : f32
    %87 = vector.broadcast %cst_14 : f32 to vector<8x50xf32>
    %88 = vector.broadcast %cst_15 : f32 to vector<8x50xf32>
    %89 = arith.select %86, %87, %88 : vector<8x50xi1>, vector<8x50xf32>
    %90 = arith.addf %79, %89 : vector<8x50xf32>
    %c0_16 = arith.constant 0 : index
    %c0_17 = arith.constant 0 : index
    %91 = vector.load %arg2[%c0_16, %c0_17] : memref<50x32xf32, #tpu.memory_space<vmem>>, vector<50x32xf32>
    %cst_18 = arith.constant dense<0.000000e+00> : vector<8x32xf32>
    %92 = tpu.matmul %90, %91, %cst_18 {dimension_numbers = #tpu.dot_dimension_numbers<[1], [0], [0], [1], [0, 0, 1, 1], [], []>} : vector<8x50xf32>, vector<50x32xf32>, vector<8x32xf32> -> vector<8x32xf32>
    %c0_19 = arith.constant 0 : index
    %c0_20 = arith.constant 0 : index
    %93 = vector.load %arg3[%c0_19, %c0_20] : memref<8x32xf32, #tpu.memory_space<vmem>>, vector<8x32xf32>
    %94 = arith.addf %92, %93 : vector<8x32xf32>
    %c0_21 = arith.constant 0 : index
    %c0_22 = arith.constant 0 : index
    %95 = vector.load %arg4[%c0_21, %c0_22] : memref<1x32xf32, #tpu.memory_space<vmem>>, vector<1x32xf32>
    %c0_23 = arith.constant 0 : index
    %c0_24 = arith.constant 0 : index
    %96 = vector.load %arg5[%c0_23, %c0_24] : memref<1x32xf32, #tpu.memory_space<vmem>>, vector<1x32xf32>
    %cst_25 = arith.constant dense<0.000000e+00> : vector<8xf32>
    %97 = vector.multi_reduction <add>, %94, %cst_25 [1] : vector<8x32xf32> to vector<8xf32>
    %98 = vector.shape_cast %97 : vector<8xf32> to vector<8x1xf32>
    %cst_26 = arith.constant 3.200000e+01 : f32
    %99 = vector.broadcast %cst_26 : f32 to vector<8x1xf32>
    %100 = arith.divf %98, %99 : vector<8x1xf32>
    %101 = vector.broadcast %100 : vector<8x1xf32> to vector<8x32xf32>
    %102 = arith.subf %94, %101 : vector<8x32xf32>
    %103 = arith.mulf %102, %102 : vector<8x32xf32>
    %cst_27 = arith.constant dense<0.000000e+00> : vector<8xf32>
    %104 = vector.multi_reduction <add>, %103, %cst_27 [1] : vector<8x32xf32> to vector<8xf32>
    %105 = vector.shape_cast %104 : vector<8xf32> to vector<8x1xf32>
    %cst_28 = arith.constant 3.200000e+01 : f32
    %106 = vector.broadcast %cst_28 : f32 to vector<8x1xf32>
    %107 = arith.divf %105, %106 : vector<8x1xf32>
    %108 = vector.broadcast %100 : vector<8x1xf32> to vector<8x32xf32>
    %109 = arith.subf %94, %108 : vector<8x32xf32>
    %cst_29 = arith.constant 9.99999996E-13 : f32
    %110 = vector.broadcast %cst_29 : f32 to vector<8x1xf32>
    %111 = arith.addf %107, %110 : vector<8x1xf32>
    %112 = math.rsqrt %111 : vector<8x1xf32>
    %113 = vector.broadcast %112 : vector<8x1xf32> to vector<8x32xf32>
    %114 = arith.mulf %109, %113 : vector<8x32xf32>
    %115 = vector.broadcast %95 : vector<1x32xf32> to vector<8x32xf32>
    %116 = arith.mulf %114, %115 : vector<8x32xf32>
    %117 = vector.broadcast %96 : vector<1x32xf32> to vector<8x32xf32>
    %118 = arith.addf %116, %117 : vector<8x32xf32>
    %c0_30 = arith.constant 0 : index
    %c0_31 = arith.constant 0 : index
    %c0_32 = arith.constant 0 : index
    %119 = vector.load %arg6[%c0_30, %c0_31, %c0_32] : memref<2x1x32xf32, #tpu.memory_space<vmem>>, vector<1x1x32xf32>
    %120 = vector.shape_cast %119 : vector<1x1x32xf32> to vector<1x32xf32>
    %c0_33 = arith.constant 0 : index
    %c0_34 = arith.constant 0 : index
    %c0_35 = arith.constant 0 : index
    %121 = vector.load %arg7[%c0_33, %c0_34, %c0_35] : memref<2x1x32xf32, #tpu.memory_space<vmem>>, vector<1x1x32xf32>
    %122 = vector.shape_cast %121 : vector<1x1x32xf32> to vector<1x32xf32>
    %cst_36 = arith.constant dense<0.000000e+00> : vector<8xf32>
    %123 = vector.multi_reduction <add>, %118, %cst_36 [1] : vector<8x32xf32> to vector<8xf32>
    %124 = vector.shape_cast %123 : vector<8xf32> to vector<8x1xf32>
    %cst_37 = arith.constant 3.200000e+01 : f32
    %125 = vector.broadcast %cst_37 : f32 to vector<8x1xf32>
    %126 = arith.divf %124, %125 : vector<8x1xf32>
    %127 = vector.broadcast %126 : vector<8x1xf32> to vector<8x32xf32>
    %128 = arith.subf %118, %127 : vector<8x32xf32>
    %129 = arith.mulf %128, %128 : vector<8x32xf32>
    %cst_38 = arith.constant dense<0.000000e+00> : vector<8xf32>
    %130 = vector.multi_reduction <add>, %129, %cst_38 [1] : vector<8x32xf32> to vector<8xf32>
    %131 = vector.shape_cast %130 : vector<8xf32> to vector<8x1xf32>
    %cst_39 = arith.constant 3.200000e+01 : f32
    %132 = vector.broadcast %cst_39 : f32 to vector<8x1xf32>
    %133 = arith.divf %131, %132 : vector<8x1xf32>
    %134 = vector.broadcast %126 : vector<8x1xf32> to vector<8x32xf32>
    %135 = arith.subf %118, %134 : vector<8x32xf32>
    %cst_40 = arith.constant 9.99999974E-6 : f32
    %136 = vector.broadcast %cst_40 : f32 to vector<8x1xf32>
    %137 = arith.addf %133, %136 : vector<8x1xf32>
    %138 = math.rsqrt %137 : vector<8x1xf32>
    %139 = vector.broadcast %138 : vector<8x1xf32> to vector<8x32xf32>
    %140 = arith.mulf %135, %139 : vector<8x32xf32>
    %141 = vector.broadcast %120 : vector<1x32xf32> to vector<8x32xf32>
    %142 = arith.mulf %140, %141 : vector<8x32xf32>
    %143 = vector.broadcast %122 : vector<1x32xf32> to vector<8x32xf32>
    %144 = arith.addf %142, %143 : vector<8x32xf32>
    %c0_41 = arith.constant 0 : index
    %c0_42 = arith.constant 0 : index
    %c0_43 = arith.constant 0 : index
    %145 = vector.load %arg8[%c0_41, %c0_42, %c0_43] : memref<2x32x32xf32, #tpu.memory_space<vmem>>, vector<1x32x32xf32>
    %146 = vector.shape_cast %145 : vector<1x32x32xf32> to vector<32x32xf32>
    %cst_44 = arith.constant dense<0.000000e+00> : vector<8x32xf32>
    %147 = tpu.matmul %144, %146, %cst_44 {dimension_numbers = #tpu.dot_dimension_numbers<[1], [0], [0], [1], [0, 0, 1, 1], [], []>} : vector<8x32xf32>, vector<32x32xf32>, vector<8x32xf32> -> vector<8x32xf32>
    %c0_45 = arith.constant 0 : index
    %c0_46 = arith.constant 0 : index
    %c0_47 = arith.constant 0 : index
    %148 = vector.load %arg9[%c0_45, %c0_46, %c0_47] : memref<2x1x32xf32, #tpu.memory_space<vmem>>, vector<1x1x32xf32>
    %149 = vector.shape_cast %148 : vector<1x1x32xf32> to vector<1x32xf32>
    %150 = vector.broadcast %149 : vector<1x32xf32> to vector<8x32xf32>
    %151 = arith.addf %147, %150 : vector<8x32xf32>
    %c0_48 = arith.constant 0 : index
    %c0_49 = arith.constant 0 : index
    %c0_50 = arith.constant 0 : index
    %152 = vector.load %arg10[%c0_48, %c0_49, %c0_50] : memref<2x32x32xf32, #tpu.memory_space<vmem>>, vector<1x32x32xf32>
    %153 = vector.shape_cast %152 : vector<1x32x32xf32> to vector<32x32xf32>
    %cst_51 = arith.constant dense<0.000000e+00> : vector<8x32xf32>
    %154 = tpu.matmul %144, %153, %cst_51 {dimension_numbers = #tpu.dot_dimension_numbers<[1], [0], [0], [1], [0, 0, 1, 1], [], []>} : vector<8x32xf32>, vector<32x32xf32>, vector<8x32xf32> -> vector<8x32xf32>
    %c0_52 = arith.constant 0 : index
    %c0_53 = arith.constant 0 : index
    %c0_54 = arith.constant 0 : index
    %155 = vector.load %arg11[%c0_52, %c0_53, %c0_54] : memref<2x1x32xf32, #tpu.memory_space<vmem>>, vector<1x1x32xf32>
    %156 = vector.shape_cast %155 : vector<1x1x32xf32> to vector<1x32xf32>
    %157 = vector.broadcast %156 : vector<1x32xf32> to vector<8x32xf32>
    %158 = arith.addf %154, %157 : vector<8x32xf32>
    %c0_55 = arith.constant 0 : index
    %c0_56 = arith.constant 0 : index
    %c0_57 = arith.constant 0 : index
    %159 = vector.load %arg12[%c0_55, %c0_56, %c0_57] : memref<2x32x32xf32, #tpu.memory_space<vmem>>, vector<1x32x32xf32>
    %160 = vector.shape_cast %159 : vector<1x32x32xf32> to vector<32x32xf32>
    %cst_58 = arith.constant dense<0.000000e+00> : vector<8x32xf32>
    %161 = tpu.matmul %144, %160, %cst_58 {dimension_numbers = #tpu.dot_dimension_numbers<[1], [0], [0], [1], [0, 0, 1, 1], [], []>} : vector<8x32xf32>, vector<32x32xf32>, vector<8x32xf32> -> vector<8x32xf32>
    %c0_59 = arith.constant 0 : index
    %c0_60 = arith.constant 0 : index
    %c0_61 = arith.constant 0 : index
    %162 = vector.load %arg13[%c0_59, %c0_60, %c0_61] : memref<2x1x32xf32, #tpu.memory_space<vmem>>, vector<1x1x32xf32>
    %163 = vector.shape_cast %162 : vector<1x1x32xf32> to vector<1x32xf32>
    %164 = vector.broadcast %163 : vector<1x32xf32> to vector<8x32xf32>
    %165 = arith.addf %161, %164 : vector<8x32xf32>
    %166 = vector.extract_strided_slice %151 {offsets = [0, 0], sizes = [8, 8], strides = [1, 1]} : vector<8x32xf32> to vector<8x8xf32>
    %167 = vector.extract_strided_slice %158 {offsets = [0, 0], sizes = [8, 8], strides = [1, 1]} : vector<8x32xf32> to vector<8x8xf32>
    %cst_62 = arith.constant dense<0.000000e+00> : vector<8x8xf32>
    %168 = tpu.matmul %166, %167, %cst_62 {dimension_numbers = #tpu.dot_dimension_numbers<[1], [1], [0], [0], [0, 0, 1, 0], [], []>} : vector<8x8xf32>, vector<8x8xf32>, vector<8x8xf32> -> vector<8x8xf32>
    %169 = vector.extract_strided_slice %151 {offsets = [0, 8], sizes = [8, 8], strides = [1, 1]} : vector<8x32xf32> to vector<8x8xf32>
    %170 = vector.extract_strided_slice %158 {offsets = [0, 8], sizes = [8, 8], strides = [1, 1]} : vector<8x32xf32> to vector<8x8xf32>
    %cst_63 = arith.constant dense<0.000000e+00> : vector<8x8xf32>
    %171 = tpu.matmul %169, %170, %cst_63 {dimension_numbers = #tpu.dot_dimension_numbers<[1], [1], [0], [0], [0, 0, 1, 0], [], []>} : vector<8x8xf32>, vector<8x8xf32>, vector<8x8xf32> -> vector<8x8xf32>
    %172 = vector.extract_strided_slice %151 {offsets = [0, 16], sizes = [8, 8], strides = [1, 1]} : vector<8x32xf32> to vector<8x8xf32>
    %173 = vector.extract_strided_slice %158 {offsets = [0, 16], sizes = [8, 8], strides = [1, 1]} : vector<8x32xf32> to vector<8x8xf32>
    %cst_64 = arith.constant dense<0.000000e+00> : vector<8x8xf32>
    %174 = tpu.matmul %172, %173, %cst_64 {dimension_numbers = #tpu.dot_dimension_numbers<[1], [1], [0], [0], [0, 0, 1, 0], [], []>} : vector<8x8xf32>, vector<8x8xf32>, vector<8x8xf32> -> vector<8x8xf32>
    %175 = vector.extract_strided_slice %151 {offsets = [0, 24], sizes = [8, 8], strides = [1, 1]} : vector<8x32xf32> to vector<8x8xf32>
    %176 = vector.extract_strided_slice %158 {offsets = [0, 24], sizes = [8, 8], strides = [1, 1]} : vector<8x32xf32> to vector<8x8xf32>
    %cst_65 = arith.constant dense<0.000000e+00> : vector<8x8xf32>
    %177 = tpu.matmul %175, %176, %cst_65 {dimension_numbers = #tpu.dot_dimension_numbers<[1], [1], [0], [0], [0, 0, 1, 0], [], []>} : vector<8x8xf32>, vector<8x8xf32>, vector<8x8xf32> -> vector<8x8xf32>
    %178 = tpu.concatenate %168, %171, %174, %177 in 0 : vector<8x8xf32>, vector<8x8xf32>, vector<8x8xf32>, vector<8x8xf32> -> vector<32x8xf32>
    %cst_66 = arith.constant 0.353553385 : f32
    %179 = vector.broadcast %cst_66 : f32 to vector<32x8xf32>
    %180 = arith.mulf %178, %179 : vector<32x8xf32>
    %cst_67 = arith.constant dense<0xFF800000> : vector<32xf32>
    %181 = vector.multi_reduction <maximumf>, %180, %cst_67 [1] : vector<32x8xf32> to vector<32xf32>
    %182 = vector.shape_cast %181 : vector<32xf32> to vector<32x1xf32>
    %183 = vector.broadcast %182 : vector<32x1xf32> to vector<32x8xf32>
    %184 = arith.subf %180, %183 : vector<32x8xf32>
    %185 = math.exp %184 : vector<32x8xf32>
    %cst_68 = arith.constant dense<0.000000e+00> : vector<32xf32>
    %186 = vector.multi_reduction <add>, %185, %cst_68 [1] : vector<32x8xf32> to vector<32xf32>
    %187 = vector.shape_cast %186 : vector<32xf32> to vector<32x1xf32>
    %188 = tpu.reciprocal %187 {approx = true} : vector<32x1xf32> -> vector<32x1xf32>
    %189 = vector.broadcast %188 : vector<32x1xf32> to vector<32x8xf32>
    %190 = arith.mulf %185, %189 : vector<32x8xf32>
    %191 = vector.extract_strided_slice %190 {offsets = [0, 0], sizes = [8, 8], strides = [1, 1]} : vector<32x8xf32> to vector<8x8xf32>
    %192 = vector.extract_strided_slice %165 {offsets = [0, 0], sizes = [8, 8], strides = [1, 1]} : vector<8x32xf32> to vector<8x8xf32>
    %cst_69 = arith.constant dense<0.000000e+00> : vector<8x8xf32>
    %193 = tpu.matmul %191, %192, %cst_69 {dimension_numbers = #tpu.dot_dimension_numbers<[1], [0], [0], [1], [0, 0, 1, 1], [], []>} : vector<8x8xf32>, vector<8x8xf32>, vector<8x8xf32> -> vector<8x8xf32>
    %194 = vector.extract_strided_slice %190 {offsets = [8, 0], sizes = [8, 8], strides = [1, 1]} : vector<32x8xf32> to vector<8x8xf32>
    %195 = vector.extract_strided_slice %165 {offsets = [0, 8], sizes = [8, 8], strides = [1, 1]} : vector<8x32xf32> to vector<8x8xf32>
    %cst_70 = arith.constant dense<0.000000e+00> : vector<8x8xf32>
    %196 = tpu.matmul %194, %195, %cst_70 {dimension_numbers = #tpu.dot_dimension_numbers<[1], [0], [0], [1], [0, 0, 1, 1], [], []>} : vector<8x8xf32>, vector<8x8xf32>, vector<8x8xf32> -> vector<8x8xf32>
    %197 = vector.extract_strided_slice %190 {offsets = [16, 0], sizes = [8, 8], strides = [1, 1]} : vector<32x8xf32> to vector<8x8xf32>
    %198 = vector.extract_strided_slice %165 {offsets = [0, 16], sizes = [8, 8], strides = [1, 1]} : vector<8x32xf32> to vector<8x8xf32>
    %cst_71 = arith.constant dense<0.000000e+00> : vector<8x8xf32>
    %199 = tpu.matmul %197, %198, %cst_71 {dimension_numbers = #tpu.dot_dimension_numbers<[1], [0], [0], [1], [0, 0, 1, 1], [], []>} : vector<8x8xf32>, vector<8x8xf32>, vector<8x8xf32> -> vector<8x8xf32>
    %200 = vector.extract_strided_slice %190 {offsets = [24, 0], sizes = [8, 8], strides = [1, 1]} : vector<32x8xf32> to vector<8x8xf32>
    %201 = vector.extract_strided_slice %165 {offsets = [0, 24], sizes = [8, 8], strides = [1, 1]} : vector<8x32xf32> to vector<8x8xf32>
    %cst_72 = arith.constant dense<0.000000e+00> : vector<8x8xf32>
    %202 = tpu.matmul %200, %201, %cst_72 {dimension_numbers = #tpu.dot_dimension_numbers<[1], [0], [0], [1], [0, 0, 1, 1], [], []>} : vector<8x8xf32>, vector<8x8xf32>, vector<8x8xf32> -> vector<8x8xf32>
    %203 = tpu.concatenate %193, %196, %199, %202 in 1 : vector<8x8xf32>, vector<8x8xf32>, vector<8x8xf32>, vector<8x8xf32> -> vector<8x32xf32>
    %c0_73 = arith.constant 0 : index
    %c0_74 = arith.constant 0 : index
    %c0_75 = arith.constant 0 : index
    %204 = vector.load %arg14[%c0_73, %c0_74, %c0_75] : memref<2x32x32xf32, #tpu.memory_space<vmem>>, vector<1x32x32xf32>
    %205 = vector.shape_cast %204 : vector<1x32x32xf32> to vector<32x32xf32>
    %cst_76 = arith.constant dense<0.000000e+00> : vector<8x32xf32>
    %206 = tpu.matmul %203, %205, %cst_76 {dimension_numbers = #tpu.dot_dimension_numbers<[1], [0], [0], [1], [0, 0, 1, 1], [], []>} : vector<8x32xf32>, vector<32x32xf32>, vector<8x32xf32> -> vector<8x32xf32>
    %207 = arith.addf %118, %206 : vector<8x32xf32>
    %c0_77 = arith.constant 0 : index
    %c0_78 = arith.constant 0 : index
    %c0_79 = arith.constant 0 : index
    %208 = vector.load %arg15[%c0_77, %c0_78, %c0_79] : memref<2x1x32xf32, #tpu.memory_space<vmem>>, vector<1x1x32xf32>
    %209 = vector.shape_cast %208 : vector<1x1x32xf32> to vector<1x32xf32>
    %210 = vector.broadcast %209 : vector<1x32xf32> to vector<8x32xf32>
    %211 = arith.addf %207, %210 : vector<8x32xf32>
    %c0_80 = arith.constant 0 : index
    %c0_81 = arith.constant 0 : index
    %c0_82 = arith.constant 0 : index
    %212 = vector.load %arg16[%c0_80, %c0_81, %c0_82] : memref<2x1x32xf32, #tpu.memory_space<vmem>>, vector<1x1x32xf32>
    %213 = vector.shape_cast %212 : vector<1x1x32xf32> to vector<1x32xf32>
    %c0_83 = arith.constant 0 : index
    %c0_84 = arith.constant 0 : index
    %c0_85 = arith.constant 0 : index
    %214 = vector.load %arg17[%c0_83, %c0_84, %c0_85] : memref<2x1x32xf32, #tpu.memory_space<vmem>>, vector<1x1x32xf32>
    %215 = vector.shape_cast %214 : vector<1x1x32xf32> to vector<1x32xf32>
    %cst_86 = arith.constant dense<0.000000e+00> : vector<8xf32>
    %216 = vector.multi_reduction <add>, %211, %cst_86 [1] : vector<8x32xf32> to vector<8xf32>
    %217 = vector.shape_cast %216 : vector<8xf32> to vector<8x1xf32>
    %cst_87 = arith.constant 3.200000e+01 : f32
    %218 = vector.broadcast %cst_87 : f32 to vector<8x1xf32>
    %219 = arith.divf %217, %218 : vector<8x1xf32>
    %220 = vector.broadcast %219 : vector<8x1xf32> to vector<8x32xf32>
    %221 = arith.subf %211, %220 : vector<8x32xf32>
    %222 = arith.mulf %221, %221 : vector<8x32xf32>
    %cst_88 = arith.constant dense<0.000000e+00> : vector<8xf32>
    %223 = vector.multi_reduction <add>, %222, %cst_88 [1] : vector<8x32xf32> to vector<8xf32>
    %224 = vector.shape_cast %223 : vector<8xf32> to vector<8x1xf32>
    %cst_89 = arith.constant 3.200000e+01 : f32
    %225 = vector.broadcast %cst_89 : f32 to vector<8x1xf32>
    %226 = arith.divf %224, %225 : vector<8x1xf32>
    %227 = vector.broadcast %219 : vector<8x1xf32> to vector<8x32xf32>
    %228 = arith.subf %211, %227 : vector<8x32xf32>
    %cst_90 = arith.constant 9.99999974E-6 : f32
    %229 = vector.broadcast %cst_90 : f32 to vector<8x1xf32>
    %230 = arith.addf %226, %229 : vector<8x1xf32>
    %231 = math.rsqrt %230 : vector<8x1xf32>
    %232 = vector.broadcast %231 : vector<8x1xf32> to vector<8x32xf32>
    %233 = arith.mulf %228, %232 : vector<8x32xf32>
    %234 = vector.broadcast %213 : vector<1x32xf32> to vector<8x32xf32>
    %235 = arith.mulf %233, %234 : vector<8x32xf32>
    %236 = vector.broadcast %215 : vector<1x32xf32> to vector<8x32xf32>
    %237 = arith.addf %235, %236 : vector<8x32xf32>
    %c0_91 = arith.constant 0 : index
    %c0_92 = arith.constant 0 : index
    %c0_93 = arith.constant 0 : index
    %238 = vector.load %arg18[%c0_91, %c0_92, %c0_93] : memref<2x32x128xf32, #tpu.memory_space<vmem>>, vector<1x32x128xf32>
    %239 = vector.shape_cast %238 : vector<1x32x128xf32> to vector<32x128xf32>
    %cst_94 = arith.constant dense<0.000000e+00> : vector<8x128xf32>
    %240 = tpu.matmul %237, %239, %cst_94 {dimension_numbers = #tpu.dot_dimension_numbers<[1], [0], [0], [1], [0, 0, 1, 1], [], []>} : vector<8x32xf32>, vector<32x128xf32>, vector<8x128xf32> -> vector<8x128xf32>
    %c0_95 = arith.constant 0 : index
    %c0_96 = arith.constant 0 : index
    %c0_97 = arith.constant 0 : index
    %241 = vector.load %arg19[%c0_95, %c0_96, %c0_97] : memref<2x1x128xf32, #tpu.memory_space<vmem>>, vector<1x1x128xf32>
    %242 = vector.shape_cast %241 : vector<1x1x128xf32> to vector<1x128xf32>
    %243 = vector.broadcast %242 : vector<1x128xf32> to vector<8x128xf32>
    %244 = arith.addf %240, %243 : vector<8x128xf32>
    %cst_98 = arith.constant 5.000000e-01 : f32
    %245 = vector.broadcast %cst_98 : f32 to vector<8x128xf32>
    %246 = arith.mulf %245, %244 : vector<8x128xf32>
    %cst_99 = arith.constant 4.471500e-02 : f32
    %247 = vector.broadcast %cst_99 : f32 to vector<8x128xf32>
    %248 = arith.mulf %247, %244 : vector<8x128xf32>
    %249 = arith.mulf %248, %244 : vector<8x128xf32>
    %250 = arith.mulf %249, %244 : vector<8x128xf32>
    %251 = arith.addf %244, %250 : vector<8x128xf32>
    %cst_100 = arith.constant 0.797884583 : f32
    %252 = vector.broadcast %cst_100 : f32 to vector<8x128xf32>
    %253 = arith.mulf %252, %251 : vector<8x128xf32>
    %254 = math.tanh %253 : vector<8x128xf32>
    %cst_101 = arith.constant 1.000000e+00 : f32
    %255 = vector.broadcast %cst_101 : f32 to vector<8x128xf32>
    %256 = arith.addf %255, %254 : vector<8x128xf32>
    %257 = arith.mulf %246, %256 : vector<8x128xf32>
    %c0_102 = arith.constant 0 : index
    %c0_103 = arith.constant 0 : index
    %c0_104 = arith.constant 0 : index
    %258 = vector.load %arg20[%c0_102, %c0_103, %c0_104] : memref<2x128x32xf32, #tpu.memory_space<vmem>>, vector<1x128x32xf32>
    %259 = vector.shape_cast %258 : vector<1x128x32xf32> to vector<128x32xf32>
    %cst_105 = arith.constant dense<0.000000e+00> : vector<8x32xf32>
    %260 = tpu.matmul %257, %259, %cst_105 {dimension_numbers = #tpu.dot_dimension_numbers<[1], [0], [0], [1], [0, 0, 1, 1], [], []>} : vector<8x128xf32>, vector<128x32xf32>, vector<8x32xf32> -> vector<8x32xf32>
    %261 = arith.addf %211, %260 : vector<8x32xf32>
    %c0_106 = arith.constant 0 : index
    %c0_107 = arith.constant 0 : index
    %c0_108 = arith.constant 0 : index
    %262 = vector.load %arg21[%c0_106, %c0_107, %c0_108] : memref<2x1x32xf32, #tpu.memory_space<vmem>>, vector<1x1x32xf32>
    %263 = vector.shape_cast %262 : vector<1x1x32xf32> to vector<1x32xf32>
    %264 = vector.broadcast %263 : vector<1x32xf32> to vector<8x32xf32>
    %265 = arith.addf %261, %264 : vector<8x32xf32>
    %c1_109 = arith.constant 1 : index
    %c0_110 = arith.constant 0 : index
    %c0_111 = arith.constant 0 : index
    %266 = vector.load %arg6[%c1_109, %c0_110, %c0_111] : memref<2x1x32xf32, #tpu.memory_space<vmem>>, vector<1x1x32xf32>
    %267 = vector.shape_cast %266 : vector<1x1x32xf32> to vector<1x32xf32>
    %c1_112 = arith.constant 1 : index
    %c0_113 = arith.constant 0 : index
    %c0_114 = arith.constant 0 : index
    %268 = vector.load %arg7[%c1_112, %c0_113, %c0_114] : memref<2x1x32xf32, #tpu.memory_space<vmem>>, vector<1x1x32xf32>
    %269 = vector.shape_cast %268 : vector<1x1x32xf32> to vector<1x32xf32>
    %cst_115 = arith.constant dense<0.000000e+00> : vector<8xf32>
    %270 = vector.multi_reduction <add>, %265, %cst_115 [1] : vector<8x32xf32> to vector<8xf32>
    %271 = vector.shape_cast %270 : vector<8xf32> to vector<8x1xf32>
    %cst_116 = arith.constant 3.200000e+01 : f32
    %272 = vector.broadcast %cst_116 : f32 to vector<8x1xf32>
    %273 = arith.divf %271, %272 : vector<8x1xf32>
    %274 = vector.broadcast %273 : vector<8x1xf32> to vector<8x32xf32>
    %275 = arith.subf %265, %274 : vector<8x32xf32>
    %276 = arith.mulf %275, %275 : vector<8x32xf32>
    %cst_117 = arith.constant dense<0.000000e+00> : vector<8xf32>
    %277 = vector.multi_reduction <add>, %276, %cst_117 [1] : vector<8x32xf32> to vector<8xf32>
    %278 = vector.shape_cast %277 : vector<8xf32> to vector<8x1xf32>
    %cst_118 = arith.constant 3.200000e+01 : f32
    %279 = vector.broadcast %cst_118 : f32 to vector<8x1xf32>
    %280 = arith.divf %278, %279 : vector<8x1xf32>
    %281 = vector.broadcast %273 : vector<8x1xf32> to vector<8x32xf32>
    %282 = arith.subf %265, %281 : vector<8x32xf32>
    %cst_119 = arith.constant 9.99999974E-6 : f32
    %283 = vector.broadcast %cst_119 : f32 to vector<8x1xf32>
    %284 = arith.addf %280, %283 : vector<8x1xf32>
    %285 = math.rsqrt %284 : vector<8x1xf32>
    %286 = vector.broadcast %285 : vector<8x1xf32> to vector<8x32xf32>
    %287 = arith.mulf %282, %286 : vector<8x32xf32>
    %288 = vector.broadcast %267 : vector<1x32xf32> to vector<8x32xf32>
    %289 = arith.mulf %287, %288 : vector<8x32xf32>
    %290 = vector.broadcast %269 : vector<1x32xf32> to vector<8x32xf32>
    %291 = arith.addf %289, %290 : vector<8x32xf32>
    %c1_120 = arith.constant 1 : index
    %c0_121 = arith.constant 0 : index
    %c0_122 = arith.constant 0 : index
    %292 = vector.load %arg8[%c1_120, %c0_121, %c0_122] : memref<2x32x32xf32, #tpu.memory_space<vmem>>, vector<1x32x32xf32>
    %293 = vector.shape_cast %292 : vector<1x32x32xf32> to vector<32x32xf32>
    %cst_123 = arith.constant dense<0.000000e+00> : vector<8x32xf32>
    %294 = tpu.matmul %291, %293, %cst_123 {dimension_numbers = #tpu.dot_dimension_numbers<[1], [0], [0], [1], [0, 0, 1, 1], [], []>} : vector<8x32xf32>, vector<32x32xf32>, vector<8x32xf32> -> vector<8x32xf32>
    %c1_124 = arith.constant 1 : index
    %c0_125 = arith.constant 0 : index
    %c0_126 = arith.constant 0 : index
    %295 = vector.load %arg9[%c1_124, %c0_125, %c0_126] : memref<2x1x32xf32, #tpu.memory_space<vmem>>, vector<1x1x32xf32>
    %296 = vector.shape_cast %295 : vector<1x1x32xf32> to vector<1x32xf32>
    %297 = vector.broadcast %296 : vector<1x32xf32> to vector<8x32xf32>
    %298 = arith.addf %294, %297 : vector<8x32xf32>
    %c1_127 = arith.constant 1 : index
    %c0_128 = arith.constant 0 : index
    %c0_129 = arith.constant 0 : index
    %299 = vector.load %arg10[%c1_127, %c0_128, %c0_129] : memref<2x32x32xf32, #tpu.memory_space<vmem>>, vector<1x32x32xf32>
    %300 = vector.shape_cast %299 : vector<1x32x32xf32> to vector<32x32xf32>
    %cst_130 = arith.constant dense<0.000000e+00> : vector<8x32xf32>
    %301 = tpu.matmul %291, %300, %cst_130 {dimension_numbers = #tpu.dot_dimension_numbers<[1], [0], [0], [1], [0, 0, 1, 1], [], []>} : vector<8x32xf32>, vector<32x32xf32>, vector<8x32xf32> -> vector<8x32xf32>
    %c1_131 = arith.constant 1 : index
    %c0_132 = arith.constant 0 : index
    %c0_133 = arith.constant 0 : index
    %302 = vector.load %arg11[%c1_131, %c0_132, %c0_133] : memref<2x1x32xf32, #tpu.memory_space<vmem>>, vector<1x1x32xf32>
    %303 = vector.shape_cast %302 : vector<1x1x32xf32> to vector<1x32xf32>
    %304 = vector.broadcast %303 : vector<1x32xf32> to vector<8x32xf32>
    %305 = arith.addf %301, %304 : vector<8x32xf32>
    %c1_134 = arith.constant 1 : index
    %c0_135 = arith.constant 0 : index
    %c0_136 = arith.constant 0 : index
    %306 = vector.load %arg12[%c1_134, %c0_135, %c0_136] : memref<2x32x32xf32, #tpu.memory_space<vmem>>, vector<1x32x32xf32>
    %307 = vector.shape_cast %306 : vector<1x32x32xf32> to vector<32x32xf32>
    %cst_137 = arith.constant dense<0.000000e+00> : vector<8x32xf32>
    %308 = tpu.matmul %291, %307, %cst_137 {dimension_numbers = #tpu.dot_dimension_numbers<[1], [0], [0], [1], [0, 0, 1, 1], [], []>} : vector<8x32xf32>, vector<32x32xf32>, vector<8x32xf32> -> vector<8x32xf32>
    %c1_138 = arith.constant 1 : index
    %c0_139 = arith.constant 0 : index
    %c0_140 = arith.constant 0 : index
    %309 = vector.load %arg13[%c1_138, %c0_139, %c0_140] : memref<2x1x32xf32, #tpu.memory_space<vmem>>, vector<1x1x32xf32>
    %310 = vector.shape_cast %309 : vector<1x1x32xf32> to vector<1x32xf32>
    %311 = vector.broadcast %310 : vector<1x32xf32> to vector<8x32xf32>
    %312 = arith.addf %308, %311 : vector<8x32xf32>
    %313 = vector.extract_strided_slice %298 {offsets = [0, 0], sizes = [8, 8], strides = [1, 1]} : vector<8x32xf32> to vector<8x8xf32>
    %314 = vector.extract_strided_slice %305 {offsets = [0, 0], sizes = [8, 8], strides = [1, 1]} : vector<8x32xf32> to vector<8x8xf32>
    %cst_141 = arith.constant dense<0.000000e+00> : vector<8x8xf32>
    %315 = tpu.matmul %313, %314, %cst_141 {dimension_numbers = #tpu.dot_dimension_numbers<[1], [1], [0], [0], [0, 0, 1, 0], [], []>} : vector<8x8xf32>, vector<8x8xf32>, vector<8x8xf32> -> vector<8x8xf32>
    %316 = vector.extract_strided_slice %298 {offsets = [0, 8], sizes = [8, 8], strides = [1, 1]} : vector<8x32xf32> to vector<8x8xf32>
    %317 = vector.extract_strided_slice %305 {offsets = [0, 8], sizes = [8, 8], strides = [1, 1]} : vector<8x32xf32> to vector<8x8xf32>
    %cst_142 = arith.constant dense<0.000000e+00> : vector<8x8xf32>
    %318 = tpu.matmul %316, %317, %cst_142 {dimension_numbers = #tpu.dot_dimension_numbers<[1], [1], [0], [0], [0, 0, 1, 0], [], []>} : vector<8x8xf32>, vector<8x8xf32>, vector<8x8xf32> -> vector<8x8xf32>
    %319 = vector.extract_strided_slice %298 {offsets = [0, 16], sizes = [8, 8], strides = [1, 1]} : vector<8x32xf32> to vector<8x8xf32>
    %320 = vector.extract_strided_slice %305 {offsets = [0, 16], sizes = [8, 8], strides = [1, 1]} : vector<8x32xf32> to vector<8x8xf32>
    %cst_143 = arith.constant dense<0.000000e+00> : vector<8x8xf32>
    %321 = tpu.matmul %319, %320, %cst_143 {dimension_numbers = #tpu.dot_dimension_numbers<[1], [1], [0], [0], [0, 0, 1, 0], [], []>} : vector<8x8xf32>, vector<8x8xf32>, vector<8x8xf32> -> vector<8x8xf32>
    %322 = vector.extract_strided_slice %298 {offsets = [0, 24], sizes = [8, 8], strides = [1, 1]} : vector<8x32xf32> to vector<8x8xf32>
    %323 = vector.extract_strided_slice %305 {offsets = [0, 24], sizes = [8, 8], strides = [1, 1]} : vector<8x32xf32> to vector<8x8xf32>
    %cst_144 = arith.constant dense<0.000000e+00> : vector<8x8xf32>
    %324 = tpu.matmul %322, %323, %cst_144 {dimension_numbers = #tpu.dot_dimension_numbers<[1], [1], [0], [0], [0, 0, 1, 0], [], []>} : vector<8x8xf32>, vector<8x8xf32>, vector<8x8xf32> -> vector<8x8xf32>
    %325 = tpu.concatenate %315, %318, %321, %324 in 0 : vector<8x8xf32>, vector<8x8xf32>, vector<8x8xf32>, vector<8x8xf32> -> vector<32x8xf32>
    %cst_145 = arith.constant 0.353553385 : f32
    %326 = vector.broadcast %cst_145 : f32 to vector<32x8xf32>
    %327 = arith.mulf %325, %326 : vector<32x8xf32>
    %cst_146 = arith.constant dense<0xFF800000> : vector<32xf32>
    %328 = vector.multi_reduction <maximumf>, %327, %cst_146 [1] : vector<32x8xf32> to vector<32xf32>
    %329 = vector.shape_cast %328 : vector<32xf32> to vector<32x1xf32>
    %330 = vector.broadcast %329 : vector<32x1xf32> to vector<32x8xf32>
    %331 = arith.subf %327, %330 : vector<32x8xf32>
    %332 = math.exp %331 : vector<32x8xf32>
    %cst_147 = arith.constant dense<0.000000e+00> : vector<32xf32>
    %333 = vector.multi_reduction <add>, %332, %cst_147 [1] : vector<32x8xf32> to vector<32xf32>
    %334 = vector.shape_cast %333 : vector<32xf32> to vector<32x1xf32>
    %335 = tpu.reciprocal %334 {approx = true} : vector<32x1xf32> -> vector<32x1xf32>
    %336 = vector.broadcast %335 : vector<32x1xf32> to vector<32x8xf32>
    %337 = arith.mulf %332, %336 : vector<32x8xf32>
    %338 = vector.extract_strided_slice %337 {offsets = [0, 0], sizes = [8, 8], strides = [1, 1]} : vector<32x8xf32> to vector<8x8xf32>
    %339 = vector.extract_strided_slice %312 {offsets = [0, 0], sizes = [8, 8], strides = [1, 1]} : vector<8x32xf32> to vector<8x8xf32>
    %cst_148 = arith.constant dense<0.000000e+00> : vector<8x8xf32>
    %340 = tpu.matmul %338, %339, %cst_148 {dimension_numbers = #tpu.dot_dimension_numbers<[1], [0], [0], [1], [0, 0, 1, 1], [], []>} : vector<8x8xf32>, vector<8x8xf32>, vector<8x8xf32> -> vector<8x8xf32>
    %341 = vector.extract_strided_slice %337 {offsets = [8, 0], sizes = [8, 8], strides = [1, 1]} : vector<32x8xf32> to vector<8x8xf32>
    %342 = vector.extract_strided_slice %312 {offsets = [0, 8], sizes = [8, 8], strides = [1, 1]} : vector<8x32xf32> to vector<8x8xf32>
    %cst_149 = arith.constant dense<0.000000e+00> : vector<8x8xf32>
    %343 = tpu.matmul %341, %342, %cst_149 {dimension_numbers = #tpu.dot_dimension_numbers<[1], [0], [0], [1], [0, 0, 1, 1], [], []>} : vector<8x8xf32>, vector<8x8xf32>, vector<8x8xf32> -> vector<8x8xf32>
    %344 = vector.extract_strided_slice %337 {offsets = [16, 0], sizes = [8, 8], strides = [1, 1]} : vector<32x8xf32> to vector<8x8xf32>
    %345 = vector.extract_strided_slice %312 {offsets = [0, 16], sizes = [8, 8], strides = [1, 1]} : vector<8x32xf32> to vector<8x8xf32>
    %cst_150 = arith.constant dense<0.000000e+00> : vector<8x8xf32>
    %346 = tpu.matmul %344, %345, %cst_150 {dimension_numbers = #tpu.dot_dimension_numbers<[1], [0], [0], [1], [0, 0, 1, 1], [], []>} : vector<8x8xf32>, vector<8x8xf32>, vector<8x8xf32> -> vector<8x8xf32>
    %347 = vector.extract_strided_slice %337 {offsets = [24, 0], sizes = [8, 8], strides = [1, 1]} : vector<32x8xf32> to vector<8x8xf32>
    %348 = vector.extract_strided_slice %312 {offsets = [0, 24], sizes = [8, 8], strides = [1, 1]} : vector<8x32xf32> to vector<8x8xf32>
    %cst_151 = arith.constant dense<0.000000e+00> : vector<8x8xf32>
    %349 = tpu.matmul %347, %348, %cst_151 {dimension_numbers = #tpu.dot_dimension_numbers<[1], [0], [0], [1], [0, 0, 1, 1], [], []>} : vector<8x8xf32>, vector<8x8xf32>, vector<8x8xf32> -> vector<8x8xf32>
    %350 = tpu.concatenate %340, %343, %346, %349 in 1 : vector<8x8xf32>, vector<8x8xf32>, vector<8x8xf32>, vector<8x8xf32> -> vector<8x32xf32>
    %c1_152 = arith.constant 1 : index
    %c0_153 = arith.constant 0 : index
    %c0_154 = arith.constant 0 : index
    %351 = vector.load %arg14[%c1_152, %c0_153, %c0_154] : memref<2x32x32xf32, #tpu.memory_space<vmem>>, vector<1x32x32xf32>
    %352 = vector.shape_cast %351 : vector<1x32x32xf32> to vector<32x32xf32>
    %cst_155 = arith.constant dense<0.000000e+00> : vector<8x32xf32>
    %353 = tpu.matmul %350, %352, %cst_155 {dimension_numbers = #tpu.dot_dimension_numbers<[1], [0], [0], [1], [0, 0, 1, 1], [], []>} : vector<8x32xf32>, vector<32x32xf32>, vector<8x32xf32> -> vector<8x32xf32>
    %354 = arith.addf %265, %353 : vector<8x32xf32>
    %c1_156 = arith.constant 1 : index
    %c0_157 = arith.constant 0 : index
    %c0_158 = arith.constant 0 : index
    %355 = vector.load %arg15[%c1_156, %c0_157, %c0_158] : memref<2x1x32xf32, #tpu.memory_space<vmem>>, vector<1x1x32xf32>
    %356 = vector.shape_cast %355 : vector<1x1x32xf32> to vector<1x32xf32>
    %357 = vector.broadcast %356 : vector<1x32xf32> to vector<8x32xf32>
    %358 = arith.addf %354, %357 : vector<8x32xf32>
    %c1_159 = arith.constant 1 : index
    %c0_160 = arith.constant 0 : index
    %c0_161 = arith.constant 0 : index
    %359 = vector.load %arg16[%c1_159, %c0_160, %c0_161] : memref<2x1x32xf32, #tpu.memory_space<vmem>>, vector<1x1x32xf32>
    %360 = vector.shape_cast %359 : vector<1x1x32xf32> to vector<1x32xf32>
    %c1_162 = arith.constant 1 : index
    %c0_163 = arith.constant 0 : index
    %c0_164 = arith.constant 0 : index
    %361 = vector.load %arg17[%c1_162, %c0_163, %c0_164] : memref<2x1x32xf32, #tpu.memory_space<vmem>>, vector<1x1x32xf32>
    %362 = vector.shape_cast %361 : vector<1x1x32xf32> to vector<1x32xf32>
    %cst_165 = arith.constant dense<0.000000e+00> : vector<8xf32>
    %363 = vector.multi_reduction <add>, %358, %cst_165 [1] : vector<8x32xf32> to vector<8xf32>
    %364 = vector.shape_cast %363 : vector<8xf32> to vector<8x1xf32>
    %cst_166 = arith.constant 3.200000e+01 : f32
    %365 = vector.broadcast %cst_166 : f32 to vector<8x1xf32>
    %366 = arith.divf %364, %365 : vector<8x1xf32>
    %367 = vector.broadcast %366 : vector<8x1xf32> to vector<8x32xf32>
    %368 = arith.subf %358, %367 : vector<8x32xf32>
    %369 = arith.mulf %368, %368 : vector<8x32xf32>
    %cst_167 = arith.constant dense<0.000000e+00> : vector<8xf32>
    %370 = vector.multi_reduction <add>, %369, %cst_167 [1] : vector<8x32xf32> to vector<8xf32>
    %371 = vector.shape_cast %370 : vector<8xf32> to vector<8x1xf32>
    %cst_168 = arith.constant 3.200000e+01 : f32
    %372 = vector.broadcast %cst_168 : f32 to vector<8x1xf32>
    %373 = arith.divf %371, %372 : vector<8x1xf32>
    %374 = vector.broadcast %366 : vector<8x1xf32> to vector<8x32xf32>
    %375 = arith.subf %358, %374 : vector<8x32xf32>
    %cst_169 = arith.constant 9.99999974E-6 : f32
    %376 = vector.broadcast %cst_169 : f32 to vector<8x1xf32>
    %377 = arith.addf %373, %376 : vector<8x1xf32>
    %378 = math.rsqrt %377 : vector<8x1xf32>
    %379 = vector.broadcast %378 : vector<8x1xf32> to vector<8x32xf32>
    %380 = arith.mulf %375, %379 : vector<8x32xf32>
    %381 = vector.broadcast %360 : vector<1x32xf32> to vector<8x32xf32>
    %382 = arith.mulf %380, %381 : vector<8x32xf32>
    %383 = vector.broadcast %362 : vector<1x32xf32> to vector<8x32xf32>
    %384 = arith.addf %382, %383 : vector<8x32xf32>
    %c1_170 = arith.constant 1 : index
    %c0_171 = arith.constant 0 : index
    %c0_172 = arith.constant 0 : index
    %385 = vector.load %arg18[%c1_170, %c0_171, %c0_172] : memref<2x32x128xf32, #tpu.memory_space<vmem>>, vector<1x32x128xf32>
    %386 = vector.shape_cast %385 : vector<1x32x128xf32> to vector<32x128xf32>
    %cst_173 = arith.constant dense<0.000000e+00> : vector<8x128xf32>
    %387 = tpu.matmul %384, %386, %cst_173 {dimension_numbers = #tpu.dot_dimension_numbers<[1], [0], [0], [1], [0, 0, 1, 1], [], []>} : vector<8x32xf32>, vector<32x128xf32>, vector<8x128xf32> -> vector<8x128xf32>
    %c1_174 = arith.constant 1 : index
    %c0_175 = arith.constant 0 : index
    %c0_176 = arith.constant 0 : index
    %388 = vector.load %arg19[%c1_174, %c0_175, %c0_176] : memref<2x1x128xf32, #tpu.memory_space<vmem>>, vector<1x1x128xf32>
    %389 = vector.shape_cast %388 : vector<1x1x128xf32> to vector<1x128xf32>
    %390 = vector.broadcast %389 : vector<1x128xf32> to vector<8x128xf32>
    %391 = arith.addf %387, %390 : vector<8x128xf32>
    %cst_177 = arith.constant 5.000000e-01 : f32
    %392 = vector.broadcast %cst_177 : f32 to vector<8x128xf32>
    %393 = arith.mulf %392, %391 : vector<8x128xf32>
    %cst_178 = arith.constant 4.471500e-02 : f32
    %394 = vector.broadcast %cst_178 : f32 to vector<8x128xf32>
    %395 = arith.mulf %394, %391 : vector<8x128xf32>
    %396 = arith.mulf %395, %391 : vector<8x128xf32>
    %397 = arith.mulf %396, %391 : vector<8x128xf32>
    %398 = arith.addf %391, %397 : vector<8x128xf32>
    %cst_179 = arith.constant 0.797884583 : f32
    %399 = vector.broadcast %cst_179 : f32 to vector<8x128xf32>
    %400 = arith.mulf %399, %398 : vector<8x128xf32>
    %401 = math.tanh %400 : vector<8x128xf32>
    %cst_180 = arith.constant 1.000000e+00 : f32
    %402 = vector.broadcast %cst_180 : f32 to vector<8x128xf32>
    %403 = arith.addf %402, %401 : vector<8x128xf32>
    %404 = arith.mulf %393, %403 : vector<8x128xf32>
    %c1_181 = arith.constant 1 : index
    %c0_182 = arith.constant 0 : index
    %c0_183 = arith.constant 0 : index
    %405 = vector.load %arg20[%c1_181, %c0_182, %c0_183] : memref<2x128x32xf32, #tpu.memory_space<vmem>>, vector<1x128x32xf32>
    %406 = vector.shape_cast %405 : vector<1x128x32xf32> to vector<128x32xf32>
    %cst_184 = arith.constant dense<0.000000e+00> : vector<8x32xf32>
    %407 = tpu.matmul %404, %406, %cst_184 {dimension_numbers = #tpu.dot_dimension_numbers<[1], [0], [0], [1], [0, 0, 1, 1], [], []>} : vector<8x128xf32>, vector<128x32xf32>, vector<8x32xf32> -> vector<8x32xf32>
    %408 = arith.addf %358, %407 : vector<8x32xf32>
    %c1_185 = arith.constant 1 : index
    %c0_186 = arith.constant 0 : index
    %c0_187 = arith.constant 0 : index
    %409 = vector.load %arg21[%c1_185, %c0_186, %c0_187] : memref<2x1x32xf32, #tpu.memory_space<vmem>>, vector<1x1x32xf32>
    %410 = vector.shape_cast %409 : vector<1x1x32xf32> to vector<1x32xf32>
    %411 = vector.broadcast %410 : vector<1x32xf32> to vector<8x32xf32>
    %412 = arith.addf %408, %411 : vector<8x32xf32>
    %c0_188 = arith.constant 0 : index
    %c0_189 = arith.constant 0 : index
    %c0_190 = arith.constant 0 : index
    %413 = vector.load %arg22[%c0_188, %c0_189, %c0_190] : memref<1x8x32xf32, #tpu.memory_space<vmem>>, vector<1x8x32xf32>
    %414 = vector.shape_cast %413 : vector<1x8x32xf32> to vector<8x32xf32>
    %415 = vector.shape_cast %412 : vector<8x32xf32> to vector<1x8x32xf32>
    tpu.vector_store %arg22[%c0_188, %c0_189, %c0_190], %415 {strides = array<i32>} : memref<1x8x32xf32, #tpu.memory_space<vmem>>, vector<1x8x32xf32>,
    return
  }
  func.func @transform_0(%arg0: i32, %arg1: memref<2x8xi32, #tpu.memory_space<smem>>) -> (i32, i32) {
    %c0_i32 = arith.constant 0 : i32
    %c0_i32_0 = arith.constant 0 : i32
    %c0_i32_1 = arith.constant 0 : i32
    return %c0_i32, %c0_i32_0 : i32, i32
  }
  func.func @transform_1(%arg0: i32, %arg1: memref<2x8xi32, #tpu.memory_space<smem>>) -> (i32, i32) {
    %c0_i32 = arith.constant 0 : i32
    %c0_i32_0 = arith.constant 0 : i32
    %c0_i32_1 = arith.constant 0 : i32
    return %c0_i32, %c0_i32_0 : i32, i32
  }
  func.func @transform_2(%arg0: i32, %arg1: memref<2x8xi32, #tpu.memory_space<smem>>) -> (i32, i32) {
    %c0_i32 = arith.constant 0 : i32
    %c0_i32_0 = arith.constant 0 : i32
    %c0_i32_1 = arith.constant 0 : i32
    return %c0_i32, %c0_i32_0 : i32, i32
  }
  func.func @transform_3(%arg0: i32, %arg1: memref<2x8xi32, #tpu.memory_space<smem>>) -> (i32, i32) {
    %c0_i32 = arith.constant 0 : i32
    %c0_i32_0 = arith.constant 0 : i32
    %c0_i32_1 = arith.constant 0 : i32
    return %c0_i32, %c0_i32_0 : i32, i32
  }
  func.func @transform_4(%arg0: i32, %arg1: memref<2x8xi32, #tpu.memory_space<smem>>) -> (i32, i32, i32) {
    %c0_i32 = arith.constant 0 : i32
    %c0_i32_0 = arith.constant 0 : i32
    %c0_i32_1 = arith.constant 0 : i32
    %c0_i32_2 = arith.constant 0 : i32
    return %c0_i32, %c0_i32_0, %c0_i32_1 : i32, i32, i32
  }
  func.func @transform_5(%arg0: i32, %arg1: memref<2x8xi32, #tpu.memory_space<smem>>) -> (i32, i32, i32) {
    %c0_i32 = arith.constant 0 : i32
    %c0_i32_0 = arith.constant 0 : i32
    %c0_i32_1 = arith.constant 0 : i32
    %c0_i32_2 = arith.constant 0 : i32
    return %c0_i32, %c0_i32_0, %c0_i32_1 : i32, i32, i32
  }
  func.func @transform_6(%arg0: i32, %arg1: memref<2x8xi32, #tpu.memory_space<smem>>) -> (i32, i32, i32) {
    %c0_i32 = arith.constant 0 : i32
    %c0_i32_0 = arith.constant 0 : i32
    %c0_i32_1 = arith.constant 0 : i32
    %c0_i32_2 = arith.constant 0 : i32
    return %c0_i32, %c0_i32_0, %c0_i32_1 : i32, i32, i32
  }
  func.func @transform_7(%arg0: i32, %arg1: memref<2x8xi32, #tpu.memory_space<smem>>) -> (i32, i32, i32) {
    %c0_i32 = arith.constant 0 : i32
    %c0_i32_0 = arith.constant 0 : i32
    %c0_i32_1 = arith.constant 0 : i32
    %c0_i32_2 = arith.constant 0 : i32
    return %c0_i32, %c0_i32_0, %c0_i32_1 : i32, i32, i32
  }
  func.func @transform_8(%arg0: i32, %arg1: memref<2x8xi32, #tpu.memory_space<smem>>) -> (i32, i32, i32) {
    %c0_i32 = arith.constant 0 : i32
    %c0_i32_0 = arith.constant 0 : i32
    %c0_i32_1 = arith.constant 0 : i32
    %c0_i32_2 = arith.constant 0 : i32
    return %c0_i32, %c0_i32_0, %c0_i32_1 : i32, i32, i32
  }
  func.func @transform_9(%arg0: i32, %arg1: memref<2x8xi32, #tpu.memory_space<smem>>) -> (i32, i32, i32) {
    %c0_i32 = arith.constant 0 : i32
    %c0_i32_0 = arith.constant 0 : i32
    %c0_i32_1 = arith.constant 0 : i32
    %c0_i32_2 = arith.constant 0 : i32
    return %c0_i32, %c0_i32_0, %c0_i32_1 : i32, i32, i32
  }
  func.func @transform_10(%arg0: i32, %arg1: memref<2x8xi32, #tpu.memory_space<smem>>) -> (i32, i32, i32) {
    %c0_i32 = arith.constant 0 : i32
    %c0_i32_0 = arith.constant 0 : i32
    %c0_i32_1 = arith.constant 0 : i32
    %c0_i32_2 = arith.constant 0 : i32
    return %c0_i32, %c0_i32_0, %c0_i32_1 : i32, i32, i32
  }
  func.func @transform_11(%arg0: i32, %arg1: memref<2x8xi32, #tpu.memory_space<smem>>) -> (i32, i32, i32) {
    %c0_i32 = arith.constant 0 : i32
    %c0_i32_0 = arith.constant 0 : i32
    %c0_i32_1 = arith.constant 0 : i32
    %c0_i32_2 = arith.constant 0 : i32
    return %c0_i32, %c0_i32_0, %c0_i32_1 : i32, i32, i32
  }
  func.func @transform_12(%arg0: i32, %arg1: memref<2x8xi32, #tpu.memory_space<smem>>) -> (i32, i32, i32) {
    %c0_i32 = arith.constant 0 : i32
    %c0_i32_0 = arith.constant 0 : i32
    %c0_i32_1 = arith.constant 0 : i32
    %c0_i32_2 = arith.constant 0 : i32
    return %c0_i32, %c0_i32_0, %c0_i32_1 : i32, i32, i32
  }
  func.func @transform_13(%arg0: i32, %arg1: memref<2x8xi32, #tpu.memory_space<smem>>) -> (i32, i32, i32) {
    %c0_i32 = arith.constant 0 : i32
    %c0_i32_0 = arith.constant 0 : i32
    %c0_i32_1 = arith.constant 0 : i32
    %c0_i32_2 = arith.constant 0 : i32
    return %c0_i32, %c0_i32_0, %c0_i32_1 : i32, i32, i32
  }
  func.func @transform_14(%arg0: i32, %arg1: memref<2x8xi32, #tpu.memory_space<smem>>) -> (i32, i32, i32) {
    %c0_i32 = arith.constant 0 : i32
    %c0_i32_0 = arith.constant 0 : i32
    %c0_i32_1 = arith.constant 0 : i32
    %c0_i32_2 = arith.constant 0 : i32
    return %c0_i32, %c0_i32_0, %c0_i32_1 : i32, i32, i32
  }
  func.func @transform_15(%arg0: i32, %arg1: memref<2x8xi32, #tpu.memory_space<smem>>) -> (i32, i32, i32) {
    %c0_i32 = arith.constant 0 : i32
    %c0_i32_0 = arith.constant 0 : i32
    %c0_i32_1 = arith.constant 0 : i32
    %c0_i32_2 = arith.constant 0 : i32
    return %c0_i32, %c0_i32_0, %c0_i32_1 : i32, i32, i32
  }
  func.func @transform_16(%arg0: i32, %arg1: memref<2x8xi32, #tpu.memory_space<smem>>) -> (i32, i32, i32) {
    %c0_i32 = arith.constant 0 : i32
    %c0_i32_0 = arith.constant 0 : i32
    %c0_i32_1 = arith.constant 0 : i32
    %c0_i32_2 = arith.constant 0 : i32
    return %c0_i32, %c0_i32_0, %c0_i32_1 : i32, i32, i32
  }
  func.func @transform_17(%arg0: i32, %arg1: memref<2x8xi32, #tpu.memory_space<smem>>) -> (i32, i32, i32) {
    %c0_i32 = arith.constant 0 : i32
    %c0_i32_0 = arith.constant 0 : i32
    %c0_i32_1 = arith.constant 0 : i32
    %c0_i32_2 = arith.constant 0 : i32
    return %c0_i32, %c0_i32_0, %c0_i32_1 : i32, i32, i32
  }
  func.func @transform_18(%arg0: i32, %arg1: memref<2x8xi32, #tpu.memory_space<smem>>) -> (i32, i32, i32) {
    %c0_i32 = arith.constant 0 : i32
    %c0_i32_0 = arith.constant 0 : i32
    %c0_i32_1 = arith.constant 0 : i32
    %c0_i32_2 = arith.constant 0 : i32
    return %c0_i32, %c0_i32_0, %c0_i32_1 : i32, i32, i32
  }
  func.func @transform_19(%arg0: i32, %arg1: memref<2x8xi32, #tpu.memory_space<smem>>) -> (i32, i32, i32) {
    %c0_i32 = arith.constant 0 : i32
    %c0_i32_0 = arith.constant 0 : i32
    %c0_i32_1 = arith.constant 0 : i32
    %c0_i32_2 = arith.constant 0 : i32
    return %c0_i32, %c0_i32_0, %c0_i32_1 : i32, i32, i32
  }
  func.func @transform_20(%arg0: i32, %arg1: memref<2x8xi32, #tpu.memory_space<smem>>) -> (i32, i32, i32) {
    %c0_i32 = arith.constant 0 : i32
    %c0_i32_0 = arith.constant 0 : i32
    %c0_i32_1 = arith.constant 0 : i32
    return %arg0, %c0_i32, %c0_i32_0 : i32, i32, i32
  }
}

</mosaic_0001>

<llo_original>
// kernel: tpu_custom_call.1
$region0: #{tpu_custom_call.1}
  #allocation0 [shape = 'u32[]', space=smem, size = 0x4, offset = 0x4, fixed_abs, tag = 'smem constant byte address 0x4 - core index']
  #allocation1 [shape = 'u32[144,128]{1,0:T(1,128)}', space=vmem, size = 0x12000, scoped, tag = 'internal scratch']
  #allocation2 [shape = 's32[1]{0}', space=sflag, size = 0x4, scoped, tag = 'scoped memory for tpu_custom_call.1']
  #allocation3 [shape = 'u8[1024]{0}', space=smem, size = 0x400, scoped, tag = 'prefetched SMEM operand 0']
  %s0 = inlined_call_operand.vmem [shape: s32[2,8], index: 0, kind: input, shape index: {}]
  %s1 = inlined_call_operand.vmem [shape: f32[50,32], index: 1, kind: input, shape index: {}]
  %s2 = inlined_call_operand.vmem [shape: f32[8,32], index: 2, kind: input, shape index: {}]
  %s3 = inlined_call_operand.vmem [shape: f32[1,32], index: 3, kind: input, shape index: {}]
  %s4 = inlined_call_operand.vmem [shape: f32[1,32], index: 4, kind: input, shape index: {}]
  %s5 = inlined_call_operand.vmem [shape: f32[2,1,32], index: 5, kind: input, shape index: {}]
  %s6 = inlined_call_operand.vmem [shape: f32[2,1,32], index: 6, kind: input, shape index: {}]
  %s7 = inlined_call_operand.vmem [shape: f32[2,32,32], index: 7, kind: input, shape index: {}]
  %s8 = inlined_call_operand.vmem [shape: f32[2,1,32], index: 8, kind: input, shape index: {}]
  %s9 = inlined_call_operand.vmem [shape: f32[2,32,32], index: 9, kind: input, shape index: {}]
  %s10 = inlined_call_operand.vmem [shape: f32[2,1,32], index: 10, kind: input, shape index: {}]
  %s11 = inlined_call_operand.vmem [shape: f32[2,32,32], index: 11, kind: input, shape index: {}]
  %s12 = inlined_call_operand.vmem [shape: f32[2,1,32], index: 12, kind: input, shape index: {}]
  %s13 = inlined_call_operand.vmem [shape: f32[2,32,32], index: 13, kind: input, shape index: {}]
  %s14 = inlined_call_operand.vmem [shape: f32[2,1,32], index: 14, kind: input, shape index: {}]
  %s15 = inlined_call_operand.vmem [shape: f32[2,1,32], index: 15, kind: input, shape index: {}]
  %s16 = inlined_call_operand.vmem [shape: f32[2,1,32], index: 16, kind: input, shape index: {}]
  %s17 = inlined_call_operand.vmem [shape: f32[2,32,128], index: 17, kind: input, shape index: {}]
  %s18 = inlined_call_operand.vmem [shape: f32[2,1,128], index: 18, kind: input, shape index: {}]
  %s19 = inlined_call_operand.vmem [shape: f32[2,128,32], index: 19, kind: input, shape index: {}]
  %s20 = inlined_call_operand.vmem [shape: f32[2,1,32], index: 20, kind: input, shape index: {}]
  %s21 = inlined_call_operand.hbm [shape: f32[2,8,32], index: 21, kind: output, shape index: {}]
  %s22 = sld [smem:[#allocation0]]
  $region113: #{tpu_custom_call.1} parent=0
    _
  %s24 = ssub.s32 1, %s22
  %s25 = scalar_select 0, %s24, %s22
  %s26 = sshll.u32 %s0, 4
  %s27 = int_to_ptr.vmem [resolvable:$true] %s26
  %29 = dma.vmem_to_smem %s27, 32, [#allocation3], [#allocation2]
  %30 = dma.done [#allocation2], 32
  %31 = sfence
  $region1: #{tpu_custom_call.1} parent=0
    #allocation4 [shape = 'u8[8192]{0}', space=vmem, size = 0x2000, scoped, tag = 'output window, operand 0']
    #allocation5 [shape = 's32[2]{0}', space=sflag, size = 0x8, scoped, tag = 'scoped memory for tpu_custom_call.1']
    %32 = vsyncpa [#allocation5], 0
    %s33 = scalar_lea.sflag [#allocation5], 1
    %34 = vsyncpa %s33, 0
    loop: start=0, step=1, limit=4
    $region2: #{tpu_custom_call.1} parent=1 // loop_pre_header
      _
    $region3: #{tpu_custom_call.1} parent=1 // loop_header
      %s36 = sphi 0, %s40
      %p37 = scmp.ge.s32.totalorder %s36, 4
      %s44 = sphi 0, %s44
      %s46 = sphi 0, %s44
      %s47 = sphi 0, %s46
      %s61 = sphi 0, %s47
      %s65 = sphi 0, %s65
      %s67 = sphi 0, %s65
      %s68 = sphi 0, %s67
      %s82 = sphi 0, %s68
      %s86 = sphi 0, %s86
      %s88 = sphi 0, %s86
      %s89 = sphi 0, %s88
      %s103 = sphi 0, %s89
      %s107 = sphi 0, %s107
      %s109 = sphi 0, %s107
      %s110 = sphi 0, %s109
      %s124 = sphi 0, %s110
      %s128 = sphi 0, %s128
      %s130 = sphi 0, %s128
      %s131 = sphi 0, %s130
      %s145 = sphi 0, %s131
      %s149 = sphi 0, %s149
      %s151 = sphi 0, %s149
      %s152 = sphi 0, %s151
      %s166 = sphi 0, %s152
      %s170 = sphi 0, %s170
      %s172 = sphi 0, %s170
      %s173 = sphi 0, %s172
      %s187 = sphi 0, %s173
      %s191 = sphi 0, %s191
      %s193 = sphi 0, %s191
      %s194 = sphi 0, %s193
      %s208 = sphi 0, %s194
      %s212 = sphi 0, %s212
      %s214 = sphi 0, %s212
      %s215 = sphi 0, %s214
      %s229 = sphi 0, %s215
      %s233 = sphi 0, %s233
      %s235 = sphi 0, %s233
      %s236 = sphi 0, %s235
      %s250 = sphi 0, %s236
      %s254 = sphi 0, %s254
      %s256 = sphi 0, %s254
      %s257 = sphi 0, %s256
      %s271 = sphi 0, %s257
      %s275 = sphi 0, %s275
      %s277 = sphi 0, %s275
      %s278 = sphi 0, %s277
      %s292 = sphi 0, %s278
      %s296 = sphi 0, %s296
      %s298 = sphi 0, %s296
      %s299 = sphi 0, %s298
      %s313 = sphi 0, %s299
      %s317 = sphi 0, %s317
      %s319 = sphi 0, %s317
      %s320 = sphi 0, %s319
      %s334 = sphi 0, %s320
      %s338 = sphi 0, %s338
      %s340 = sphi 0, %s338
      %s341 = sphi 0, %s340
      %s355 = sphi 0, %s341
      %s359 = sphi 0, %s359
      %s361 = sphi 0, %s359
      %s362 = sphi 0, %s361
      %s376 = sphi 0, %s362
      %s380 = sphi 0, %s380
      %s382 = sphi 0, %s380
      %s383 = sphi 0, %s382
      %s397 = sphi 0, %s383
      %s401 = sphi 0, %s401
      %s403 = sphi 0, %s401
      %s404 = sphi 0, %s403
      %s418 = sphi 0, %s404
      %s422 = sphi 0, %s422
      %s424 = sphi 0, %s422
      %s425 = sphi 0, %s424
      %s439 = sphi 0, %s425
      %s443 = sphi 0, %s443
      %s445 = sphi 0, %s443
      %s446 = sphi 0, %s445
      %s460 = sphi 0, %s446
      %s466 = sphi 0, %s468
      %s469 = sphi 0, %s466
      %s470 = sphi 0, %s469
      %s486 = sphi 0, %s470
    $region4: #{tpu_custom_call.1} parent=1 // loop_header_branch
      %39 = sbr.rel (%p37) target = $region8
    $region5: #{tpu_custom_call.1} parent=1 // loop_body
      %s41 = ssub.s32 %s36, 1
      %s42 = ssub.s32 %s36, 2
      %s43 = sadd.s32 %s36, 1
      %s45 = sadd.s32 %s44, 1
      %p48 = scmp.eq.s32.totalorder %s36, 1
      %p49 = scmp.ne.s32.totalorder %s44, %s46
      %p50 = scmp.eq.s32.totalorder %s36, 0
      %p51 = por %p49, %p50
      %p52 = scmp.ne.s32.totalorder %s44, %s46
      %p53 = scmp.eq.s32.totalorder %s41, 1
      %p54 = por %p52, %p53
      %p55 = scmp.ne.s32.totalorder %s46, %s47
      %p56 = scmp.eq.s32.totalorder %s41, 0
      %p57 = por %p55, %p56
      %p58 = scmp.ne.s32.totalorder %s46, %s47
      %p59 = scmp.eq.s32.totalorder %s42, 1
      %p60 = por %p58, %p59
      %p62 = scmp.ne.s32.totalorder %s47, %s61
      %p63 = scmp.eq.s32.totalorder %s42, 0
      %p64 = por %p62, %p63
      %s66 = sadd.s32 %s65, 1
      %p69 = scmp.eq.s32.totalorder %s36, 1
      %p70 = scmp.ne.s32.totalorder %s65, %s67
      %p71 = scmp.eq.s32.totalorder %s36, 0
      %p72 = por %p70, %p71
      %p73 = scmp.ne.s32.totalorder %s65, %s67
      %p74 = scmp.eq.s32.totalorder %s41, 1
      %p75 = por %p73, %p74
      %p76 = scmp.ne.s32.totalorder %s67, %s68
      %p77 = scmp.eq.s32.totalorder %s41, 0
      %p78 = por %p76, %p77
      %p79 = scmp.ne.s32.totalorder %s67, %s68
      %p80 = scmp.eq.s32.totalorder %s42, 1
      %p81 = por %p79, %p80
      %p83 = scmp.ne.s32.totalorder %s68, %s82
      %p84 = scmp.eq.s32.totalorder %s42, 0
      %p85 = por %p83, %p84
      %s87 = sadd.s32 %s86, 1
      %p90 = scmp.eq.s32.totalorder %s36, 1
      %p91 = scmp.ne.s32.totalorder %s86, %s88
      %p92 = scmp.eq.s32.totalorder %s36, 0
      %p93 = por %p91, %p92
      %p94 = scmp.ne.s32.totalorder %s86, %s88
      %p95 = scmp.eq.s32.totalorder %s41, 1
      %p96 = por %p94, %p95
      %p97 = scmp.ne.s32.totalorder %s88, %s89
      %p98 = scmp.eq.s32.totalorder %s41, 0
      %p99 = por %p97, %p98
      %p100 = scmp.ne.s32.totalorder %s88, %s89
      %p101 = scmp.eq.s32.totalorder %s42, 1
      %p102 = por %p100, %p101
      %p104 = scmp.ne.s32.totalorder %s89, %s103
      %p105 = scmp.eq.s32.totalorder %s42, 0
      %p106 = por %p104, %p105
      %s108 = sadd.s32 %s107, 1
      %p111 = scmp.eq.s32.totalorder %s36, 1
      %p112 = scmp.ne.s32.totalorder %s107, %s109
      %p113 = scmp.eq.s32.totalorder %s36, 0
      %p114 = por %p112, %p113
      %p115 = scmp.ne.s32.totalorder %s107, %s109
      %p116 = scmp.eq.s32.totalorder %s41, 1
      %p117 = por %p115, %p116
      %p118 = scmp.ne.s32.totalorder %s109, %s110
      %p119 = scmp.eq.s32.totalorder %s41, 0
      %p120 = por %p118, %p119
      %p121 = scmp.ne.s32.totalorder %s109, %s110
      %p122 = scmp.eq.s32.totalorder %s42, 1
      %p123 = por %p121, %p122
      %p125 = scmp.ne.s32.totalorder %s110, %s124
      %p126 = scmp.eq.s32.totalorder %s42, 0
      %p127 = por %p125, %p126
      %s129 = sadd.s32 %s128, 1
      %p132 = scmp.eq.s32.totalorder %s36, 1
      %p133 = scmp.ne.s32.totalorder %s128, %s130
      %p134 = scmp.eq.s32.totalorder %s36, 0
      %p135 = por %p133, %p134
      %p136 = scmp.ne.s32.totalorder %s128, %s130
      %p137 = scmp.eq.s32.totalorder %s41, 1
      %p138 = por %p136, %p137
      %p139 = scmp.ne.s32.totalorder %s130, %s131
      %p140 = scmp.eq.s32.totalorder %s41, 0
      %p141 = por %p139, %p140
      %p142 = scmp.ne.s32.totalorder %s130, %s131
      %p143 = scmp.eq.s32.totalorder %s42, 1
      %p144 = por %p142, %p143
      %p146 = scmp.ne.s32.totalorder %s131, %s145
      %p147 = scmp.eq.s32.totalorder %s42, 0
      %p148 = por %p146, %p147
      %s150 = sadd.s32 %s149, 1
      %p153 = scmp.eq.s32.totalorder %s36, 1
      %p154 = scmp.ne.s32.totalorder %s149, %s151
      %p155 = scmp.eq.s32.totalorder %s36, 0
      %p156 = por %p154, %p155
      %p157 = scmp.ne.s32.totalorder %s149, %s151
      %p158 = scmp.eq.s32.totalorder %s41, 1
      %p159 = por %p157, %p158
      %p160 = scmp.ne.s32.totalorder %s151, %s152
      %p161 = scmp.eq.s32.totalorder %s41, 0
      %p162 = por %p160, %p161
      %p163 = scmp.ne.s32.totalorder %s151, %s152
      %p164 = scmp.eq.s32.totalorder %s42, 1
      %p165 = por %p163, %p164
      %p167 = scmp.ne.s32.totalorder %s152, %s166
      %p168 = scmp.eq.s32.totalorder %s42, 0
      %p169 = por %p167, %p168
      %s171 = sadd.s32 %s170, 1
      %p174 = scmp.eq.s32.totalorder %s36, 1
      %p175 = scmp.ne.s32.totalorder %s170, %s172
      %p176 = scmp.eq.s32.totalorder %s36, 0
      %p177 = por %p175, %p176
      %p178 = scmp.ne.s32.totalorder %s170, %s172
      %p179 = scmp.eq.s32.totalorder %s41, 1
      %p180 = por %p178, %p179
      %p181 = scmp.ne.s32.totalorder %s172, %s173
      %p182 = scmp.eq.s32.totalorder %s41, 0
      %p183 = por %p181, %p182
      %p184 = scmp.ne.s32.totalorder %s172, %s173
      %p185 = scmp.eq.s32.totalorder %s42, 1
      %p186 = por %p184, %p185
      %p188 = scmp.ne.s32.totalorder %s173, %s187
      %p189 = scmp.eq.s32.totalorder %s42, 0
      %p190 = por %p188, %p189
      %s192 = sadd.s32 %s191, 1
      %p195 = scmp.eq.s32.totalorder %s36, 1
      %p196 = scmp.ne.s32.totalorder %s191, %s193
      %p197 = scmp.eq.s32.totalorder %s36, 0
      %p198 = por %p196, %p197
      %p199 = scmp.ne.s32.totalorder %s191, %s193
      %p200 = scmp.eq.s32.totalorder %s41, 1
      %p201 = por %p199, %p200
      %p202 = scmp.ne.s32.totalorder %s193, %s194
      %p203 = scmp.eq.s32.totalorder %s41, 0
      %p204 = por %p202, %p203
      %p205 = scmp.ne.s32.totalorder %s193, %s194
      %p206 = scmp.eq.s32.totalorder %s42, 1
      %p207 = por %p205, %p206
      %p209 = scmp.ne.s32.totalorder %s194, %s208
      %p210 = scmp.eq.s32.totalorder %s42, 0
      %p211 = por %p209, %p210
      %s213 = sadd.s32 %s212, 1
      %p216 = scmp.eq.s32.totalorder %s36, 1
      %p217 = scmp.ne.s32.totalorder %s212, %s214
      %p218 = scmp.eq.s32.totalorder %s36, 0
      %p219 = por %p217, %p218
      %p220 = scmp.ne.s32.totalorder %s212, %s214
      %p221 = scmp.eq.s32.totalorder %s41, 1
      %p222 = por %p220, %p221
      %p223 = scmp.ne.s32.totalorder %s214, %s215
      %p224 = scmp.eq.s32.totalorder %s41, 0
      %p225 = por %p223, %p224
      %p226 = scmp.ne.s32.totalorder %s214, %s215
      %p227 = scmp.eq.s32.totalorder %s42, 1
      %p228 = por %p226, %p227
      %p230 = scmp.ne.s32.totalorder %s215, %s229
      %p231 = scmp.eq.s32.totalorder %s42, 0
      %p232 = por %p230, %p231
      %s234 = sadd.s32 %s233, 1
      %p237 = scmp.eq.s32.totalorder %s36, 1
      %p238 = scmp.ne.s32.totalorder %s233, %s235
      %p239 = scmp.eq.s32.totalorder %s36, 0
      %p240 = por %p238, %p239
      %p241 = scmp.ne.s32.totalorder %s233, %s235
      %p242 = scmp.eq.s32.totalorder %s41, 1
      %p243 = por %p241, %p242
      %p244 = scmp.ne.s32.totalorder %s235, %s236
      %p245 = scmp.eq.s32.totalorder %s41, 0
      %p246 = por %p244, %p245
      %p247 = scmp.ne.s32.totalorder %s235, %s236
      %p248 = scmp.eq.s32.totalorder %s42, 1
      %p249 = por %p247, %p248
      %p251 = scmp.ne.s32.totalorder %s236, %s250
      %p252 = scmp.eq.s32.totalorder %s42, 0
      %p253 = por %p251, %p252
      %s255 = sadd.s32 %s254, 1
      %p258 = scmp.eq.s32.totalorder %s36, 1
      %p259 = scmp.ne.s32.totalorder %s254, %s256
      %p260 = scmp.eq.s32.totalorder %s36, 0
      %p261 = por %p259, %p260
      %p262 = scmp.ne.s32.totalorder %s254, %s256
      %p263 = scmp.eq.s32.totalorder %s41, 1
      %p264 = por %p262, %p263
      %p265 = scmp.ne.s32.totalorder %s256, %s257
      %p266 = scmp.eq.s32.totalorder %s41, 0
      %p267 = por %p265, %p266
      %p268 = scmp.ne.s32.totalorder %s256, %s257
      %p269 = scmp.eq.s32.totalorder %s42, 1
      %p270 = por %p268, %p269
      %p272 = scmp.ne.s32.totalorder %s257, %s271
      %p273 = scmp.eq.s32.totalorder %s42, 0
      %p274 = por %p272, %p273
      %s276 = sadd.s32 %s275, 1
      %p279 = scmp.eq.s32.totalorder %s36, 1
      %p280 = scmp.ne.s32.totalorder %s275, %s277
      %p281 = scmp.eq.s32.totalorder %s36, 0
      %p282 = por %p280, %p281
      %p283 = scmp.ne.s32.totalorder %s275, %s277
      %p284 = scmp.eq.s32.totalorder %s41, 1
      %p285 = por %p283, %p284
      %p286 = scmp.ne.s32.totalorder %s277, %s278
      %p287 = scmp.eq.s32.totalorder %s41, 0
      %p288 = por %p286, %p287
      %p289 = scmp.ne.s32.totalorder %s277, %s278
      %p290 = scmp.eq.s32.totalorder %s42, 1
      %p291 = por %p289, %p290
      %p293 = scmp.ne.s32.totalorder %s278, %s292
      %p294 = scmp.eq.s32.totalorder %s42, 0
      %p295 = por %p293, %p294
      %s297 = sadd.s32 %s296, 1
      %p300 = scmp.eq.s32.totalorder %s36, 1
      %p301 = scmp.ne.s32.totalorder %s296, %s298
      %p302 = scmp.eq.s32.totalorder %s36, 0
      %p303 = por %p301, %p302
      %p304 = scmp.ne.s32.totalorder %s296, %s298
      %p305 = scmp.eq.s32.totalorder %s41, 1
      %p306 = por %p304, %p305
      %p307 = scmp.ne.s32.totalorder %s298, %s299
      %p308 = scmp.eq.s32.totalorder %s41, 0
      %p309 = por %p307, %p308
      %p310 = scmp.ne.s32.totalorder %s298, %s299
      %p311 = scmp.eq.s32.totalorder %s42, 1
      %p312 = por %p310, %p311
      %p314 = scmp.ne.s32.totalorder %s299, %s313
      %p315 = scmp.eq.s32.totalorder %s42, 0
      %p316 = por %p314, %p315
      %s318 = sadd.s32 %s317, 1
      %p321 = scmp.eq.s32.totalorder %s36, 1
      %p322 = scmp.ne.s32.totalorder %s317, %s319
      %p323 = scmp.eq.s32.totalorder %s36, 0
      %p324 = por %p322, %p323
      %p325 = scmp.ne.s32.totalorder %s317, %s319
      %p326 = scmp.eq.s32.totalorder %s41, 1
      %p327 = por %p325, %p326
      %p328 = scmp.ne.s32.totalorder %s319, %s320
      %p329 = scmp.eq.s32.totalorder %s41, 0
      %p330 = por %p328, %p329
      %p331 = scmp.ne.s32.totalorder %s319, %s320
      %p332 = scmp.eq.s32.totalorder %s42, 1
      %p333 = por %p331, %p332
      %p335 = scmp.ne.s32.totalorder %s320, %s334
      %p336 = scmp.eq.s32.totalorder %s42, 0
      %p337 = por %p335, %p336
      %s339 = sadd.s32 %s338, 1
      %p342 = scmp.eq.s32.totalorder %s36, 1
      %p343 = scmp.ne.s32.totalorder %s338, %s340
      %p344 = scmp.eq.s32.totalorder %s36, 0
      %p345 = por %p343, %p344
      %p346 = scmp.ne.s32.totalorder %s338, %s340
      %p347 = scmp.eq.s32.totalorder %s41, 1
      %p348 = por %p346, %p347
      %p349 = scmp.ne.s32.totalorder %s340, %s341
      %p350 = scmp.eq.s32.totalorder %s41, 0
      %p351 = por %p349, %p350
      %p352 = scmp.ne.s32.totalorder %s340, %s341
      %p353 = scmp.eq.s32.totalorder %s42, 1
      %p354 = por %p352, %p353
      %p356 = scmp.ne.s32.totalorder %s341, %s355
      %p357 = scmp.eq.s32.totalorder %s42, 0
      %p358 = por %p356, %p357
      %s360 = sadd.s32 %s359, 1
      %p363 = scmp.eq.s32.totalorder %s36, 1
      %p364 = scmp.ne.s32.totalorder %s359, %s361
      %p365 = scmp.eq.s32.totalorder %s36, 0
      %p366 = por %p364, %p365
      %p367 = scmp.ne.s32.totalorder %s359, %s361
      %p368 = scmp.eq.s32.totalorder %s41, 1
      %p369 = por %p367, %p368
      %p370 = scmp.ne.s32.totalorder %s361, %s362
      %p371 = scmp.eq.s32.totalorder %s41, 0
      %p372 = por %p370, %p371
      %p373 = scmp.ne.s32.totalorder %s361, %s362
      %p374 = scmp.eq.s32.totalorder %s42, 1
      %p375 = por %p373, %p374
      %p377 = scmp.ne.s32.totalorder %s362, %s376
      %p378 = scmp.eq.s32.totalorder %s42, 0
      %p379 = por %p377, %p378
      %s381 = sadd.s32 %s380, 1
      %p384 = scmp.eq.s32.totalorder %s36, 1
      %p385 = scmp.ne.s32.totalorder %s380, %s382
      %p386 = scmp.eq.s32.totalorder %s36, 0
      %p387 = por %p385, %p386
      %p388 = scmp.ne.s32.totalorder %s380, %s382
      %p389 = scmp.eq.s32.totalorder %s41, 1
      %p390 = por %p388, %p389
      %p391 = scmp.ne.s32.totalorder %s382, %s383
      %p392 = scmp.eq.s32.totalorder %s41, 0
      %p393 = por %p391, %p392
      %p394 = scmp.ne.s32.totalorder %s382, %s383
      %p395 = scmp.eq.s32.totalorder %s42, 1
      %p396 = por %p394, %p395
      %p398 = scmp.ne.s32.totalorder %s383, %s397
      %p399 = scmp.eq.s32.totalorder %s42, 0
      %p400 = por %p398, %p399
      %s402 = sadd.s32 %s401, 1
      %p405 = scmp.eq.s32.totalorder %s36, 1
      %p406 = scmp.ne.s32.totalorder %s401, %s403
      %p407 = scmp.eq.s32.totalorder %s36, 0
      %p408 = por %p406, %p407
      %p409 = scmp.ne.s32.totalorder %s401, %s403
      %p410 = scmp.eq.s32.totalorder %s41, 1
      %p411 = por %p409, %p410
      %p412 = scmp.ne.s32.totalorder %s403, %s404
      %p413 = scmp.eq.s32.totalorder %s41, 0
      %p414 = por %p412, %p413
      %p415 = scmp.ne.s32.totalorder %s403, %s404
      %p416 = scmp.eq.s32.totalorder %s42, 1
      %p417 = por %p415, %p416
      %p419 = scmp.ne.s32.totalorder %s404, %s418
      %p420 = scmp.eq.s32.totalorder %s42, 0
      %p421 = por %p419, %p420
      %s423 = sadd.s32 %s422, 1
      %p426 = scmp.eq.s32.totalorder %s36, 1
      %p427 = scmp.ne.s32.totalorder %s422, %s424
      %p428 = scmp.eq.s32.totalorder %s36, 0
      %p429 = por %p427, %p428
      %p430 = scmp.ne.s32.totalorder %s422, %s424
      %p431 = scmp.eq.s32.totalorder %s41, 1
      %p432 = por %p430, %p431
      %p433 = scmp.ne.s32.totalorder %s424, %s425
      %p434 = scmp.eq.s32.totalorder %s41, 0
      %p435 = por %p433, %p434
      %p436 = scmp.ne.s32.totalorder %s424, %s425
      %p437 = scmp.eq.s32.totalorder %s42, 1
      %p438 = por %p436, %p437
      %p440 = scmp.ne.s32.totalorder %s425, %s439
      %p441 = scmp.eq.s32.totalorder %s42, 0
      %p442 = por %p440, %p441
      %s444 = sadd.s32 %s443, 1
      %p447 = scmp.eq.s32.totalorder %s36, 1
      %p448 = scmp.ne.s32.totalorder %s443, %s445
      %p449 = scmp.eq.s32.totalorder %s36, 0
      %p450 = por %p448, %p449
      %p451 = scmp.ne.s32.totalorder %s443, %s445
      %p452 = scmp.eq.s32.totalorder %s41, 1
      %p453 = por %p451, %p452
      %p454 = scmp.ne.s32.totalorder %s445, %s446
      %p455 = scmp.eq.s32.totalorder %s41, 0
      %p456 = por %p454, %p455
      %p457 = scmp.ne.s32.totalorder %s445, %s446
      %p458 = scmp.eq.s32.totalorder %s42, 1
      %p459 = por %p457, %p458
      %p461 = scmp.ne.s32.totalorder %s446, %s460
      %p462 = scmp.eq.s32.totalorder %s42, 0
      %p463 = por %p461, %p462
      %s464 = ssub.s32 %s36, %s43
      %p465 = scmp.eq.s32.totalorder %s464, 0
      %s467 = sadd.s32 %s466, 1
      %s468 = scalar_select %p465, %s466, %s467
      %p471 = pneg %p465
      %p472 = scmp.eq.s32.totalorder %s36, 1
      %p473 = por %p471, %p472
      %p474 = scmp.ne.s32.totalorder %s466, %s469
      %p475 = scmp.eq.s32.totalorder %s36, 0
      %p476 = por %p474, %p475
      %p477 = scmp.ne.s32.totalorder %s466, %s469
      %p478 = scmp.eq.s32.totalorder %s41, 1
      %p479 = por %p477, %p478
      %p480 = scmp.ne.s32.totalorder %s469, %s470
      %p481 = scmp.eq.s32.totalorder %s41, 0
      %p482 = por %p480, %p481
      %p483 = scmp.ne.s32.totalorder %s469, %s470
      %p484 = scmp.eq.s32.totalorder %s42, 1
      %p485 = por %p483, %p484
      %p487 = scmp.ne.s32.totalorder %s470, %s486
      %p488 = scmp.eq.s32.totalorder %s42, 0
      %p489 = por %p487, %p488
      %p490 = scmp.le.s32.totalorder 1, %s36
      %p491 = scmp.lt.s32.totalorder %s36, 3
      %p492 = pnand %p490, %p491
      %p493 = pneg %p492
      // Predicated region
      $region9: #{tpu_custom_call.1} parent=5 // pred_check
        _
      $region10: #{tpu_custom_call.1} parent=5 // pred_check_branch
        %495 = sbr.rel (%p492) target = $region12
      $region11: #{tpu_custom_call.1} parent=5 // pred_region
        %s496 = ssub.s32 %s36, 1
        // Predicated region
        $region13: #{tpu_custom_call.1} parent=11 // pred_check
          %p497 = pneg %p57
        $region14: #{tpu_custom_call.1} parent=11 // pred_check_branch
          %499 = sbr.rel (%p497) target = $region16
        $region15: #{tpu_custom_call.1} parent=11 // pred_region
          _
        $region16: #{tpu_custom_call.1} parent=11 // pred_fallthru
          _
        // Predicated region
        $region17: #{tpu_custom_call.1} parent=11 // pred_check
          %p500 = pneg %p78
        $region18: #{tpu_custom_call.1} parent=11 // pred_check_branch
          %502 = sbr.rel (%p500) target = $region20
        $region19: #{tpu_custom_call.1} parent=11 // pred_region
          _
        $region20: #{tpu_custom_call.1} parent=11 // pred_fallthru
          _
        // Predicated region
        $region21: #{tpu_custom_call.1} parent=11 // pred_check
          %p503 = pneg %p99
        $region22: #{tpu_custom_call.1} parent=11 // pred_check_branch
          %505 = sbr.rel (%p503) target = $region24
        $region23: #{tpu_custom_call.1} parent=11 // pred_region
          _
        $region24: #{tpu_custom_call.1} parent=11 // pred_fallthru
          _
        // Predicated region
        $region25: #{tpu_custom_call.1} parent=11 // pred_check
          %p506 = pneg %p120
        $region26: #{tpu_custom_call.1} parent=11 // pred_check_branch
          %508 = sbr.rel (%p506) target = $region28
        $region27: #{tpu_custom_call.1} parent=11 // pred_region
          _
        $region28: #{tpu_custom_call.1} parent=11 // pred_fallthru
          _
        // Predicated region
        $region29: #{tpu_custom_call.1} parent=11 // pred_check
          %p509 = pneg %p141
        $region30: #{tpu_custom_call.1} parent=11 // pred_check_branch
          %511 = sbr.rel (%p509) target = $region32
        $region31: #{tpu_custom_call.1} parent=11 // pred_region
          _
        $region32: #{tpu_custom_call.1} parent=11 // pred_fallthru
          _
        // Predicated region
        $region33: #{tpu_custom_call.1} parent=11 // pred_check
          %p512 = pneg %p162
        $region34: #{tpu_custom_call.1} parent=11 // pred_check_branch
          %514 = sbr.rel (%p512) target = $region36
        $region35: #{tpu_custom_call.1} parent=11 // pred_region
          _
        $region36: #{tpu_custom_call.1} parent=11 // pred_fallthru
          _
        // Predicated region
        $region37: #{tpu_custom_call.1} parent=11 // pred_check
          %p515 = pneg %p183
        $region38: #{tpu_custom_call.1} parent=11 // pred_check_branch
          %517 = sbr.rel (%p515) target = $region40
        $region39: #{tpu_custom_call.1} parent=11 // pred_region
          _
        $region40: #{tpu_custom_call.1} parent=11 // pred_fallthru
          _
        // Predicated region
        $region41: #{tpu_custom_call.1} parent=11 // pred_check
          %p518 = pneg %p204
        $region42: #{tpu_custom_call.1} parent=11 // pred_check_branch
          %520 = sbr.rel (%p518) target = $region44
        $region43: #{tpu_custom_call.1} parent=11 // pred_region
          _
        $region44: #{tpu_custom_call.1} parent=11 // pred_fallthru
          _
        // Predicated region
        $region45: #{tpu_custom_call.1} parent=11 // pred_check
          %p521 = pneg %p225
        $region46: #{tpu_custom_call.1} parent=11 // pred_check_branch
          %523 = sbr.rel (%p521) target = $region48
        $region47: #{tpu_custom_call.1} parent=11 // pred_region
          _
        $region48: #{tpu_custom_call.1} parent=11 // pred_fallthru
          _
        // Predicated region
        $region49: #{tpu_custom_call.1} parent=11 // pred_check
          %p524 = pneg %p246
        $region50: #{tpu_custom_call.1} parent=11 // pred_check_branch
          %526 = sbr.rel (%p524) target = $region52
        $region51: #{tpu_custom_call.1} parent=11 // pred_region
          _
        $region52: #{tpu_custom_call.1} parent=11 // pred_fallthru
          _
        // Predicated region
        $region53: #{tpu_custom_call.1} parent=11 // pred_check
          %p527 = pneg %p267
        $region54: #{tpu_custom_call.1} parent=11 // pred_check_branch
          %529 = sbr.rel (%p527) target = $region56
        $region55: #{tpu_custom_call.1} parent=11 // pred_region
          _
        $region56: #{tpu_custom_call.1} parent=11 // pred_fallthru
          _
        // Predicated region
        $region57: #{tpu_custom_call.1} parent=11 // pred_check
          %p530 = pneg %p288
        $region58: #{tpu_custom_call.1} parent=11 // pred_check_branch
          %532 = sbr.rel (%p530) target = $region60
        $region59: #{tpu_custom_call.1} parent=11 // pred_region
          _
        $region60: #{tpu_custom_call.1} parent=11 // pred_fallthru
          _
        // Predicated region
        $region61: #{tpu_custom_call.1} parent=11 // pred_check
          %p533 = pneg %p309
        $region62: #{tpu_custom_call.1} parent=11 // pred_check_branch
          %535 = sbr.rel (%p533) target = $region64
        $region63: #{tpu_custom_call.1} parent=11 // pred_region
          _
        $region64: #{tpu_custom_call.1} parent=11 // pred_fallthru
          _
        // Predicated region
        $region65: #{tpu_custom_call.1} parent=11 // pred_check
          %p536 = pneg %p330
        $region66: #{tpu_custom_call.1} parent=11 // pred_check_branch
          %538 = sbr.rel (%p536) target = $region68
        $region67: #{tpu_custom_call.1} parent=11 // pred_region
          _
        $region68: #{tpu_custom_call.1} parent=11 // pred_fallthru
          _
        // Predicated region
        $region69: #{tpu_custom_call.1} parent=11 // pred_check
          %p539 = pneg %p351
        $region70: #{tpu_custom_call.1} parent=11 // pred_check_branch
          %541 = sbr.rel (%p539) target = $region72
        $region71: #{tpu_custom_call.1} parent=11 // pred_region
          _
        $region72: #{tpu_custom_call.1} parent=11 // pred_fallthru
          _
        // Predicated region
        $region73: #{tpu_custom_call.1} parent=11 // pred_check
          %p542 = pneg %p372
        $region74: #{tpu_custom_call.1} parent=11 // pred_check_branch
          %544 = sbr.rel (%p542) target = $region76
        $region75: #{tpu_custom_call.1} parent=11 // pred_region
          _
        $region76: #{tpu_custom_call.1} parent=11 // pred_fallthru
          _
        // Predicated region
        $region77: #{tpu_custom_call.1} parent=11 // pred_check
          %p545 = pneg %p393
        $region78: #{tpu_custom_call.1} parent=11 // pred_check_branch
          %547 = sbr.rel (%p545) target = $region80
        $region79: #{tpu_custom_call.1} parent=11 // pred_region
          _
        $region80: #{tpu_custom_call.1} parent=11 // pred_fallthru
          _
        // Predicated region
        $region81: #{tpu_custom_call.1} parent=11 // pred_check
          %p548 = pneg %p414
        $region82: #{tpu_custom_call.1} parent=11 // pred_check_branch
          %550 = sbr.rel (%p548) target = $region84
        $region83: #{tpu_custom_call.1} parent=11 // pred_region
          _
        $region84: #{tpu_custom_call.1} parent=11 // pred_fallthru
          _
        // Predicated region
        $region85: #{tpu_custom_call.1} parent=11 // pred_check
          %p551 = pneg %p435
        $region86: #{tpu_custom_call.1} parent=11 // pred_check_branch
          %553 = sbr.rel (%p551) target = $region88
        $region87: #{tpu_custom_call.1} parent=11 // pred_region
          _
        $region88: #{tpu_custom_call.1} parent=11 // pred_fallthru
          _
        // Predicated region
        $region89: #{tpu_custom_call.1} parent=11 // pred_check
          %p554 = pneg %p456
        $region90: #{tpu_custom_call.1} parent=11 // pred_check_branch
          %556 = sbr.rel (%p554) target = $region92
        $region91: #{tpu_custom_call.1} parent=11 // pred_region
          _
        $region92: #{tpu_custom_call.1} parent=11 // pred_fallthru
          _
      $region12: #{tpu_custom_call.1} parent=5 // pred_fallthru
        _
      %p557 = scmp.lt.s32.totalorder %s36, 2
      // Predicated region
      $region93: #{tpu_custom_call.1} parent=5 // pred_check
        %p558 = pneg %p557
      $region94: #{tpu_custom_call.1} parent=5 // pred_check_branch
        %560 = sbr.rel (%p558) target = $region96
      $region95: #{tpu_custom_call.1} parent=5 // pred_region
        _
      $region96: #{tpu_custom_call.1} parent=5 // pred_fallthru
        _
      %p561 = scmp.le.s32.totalorder 1, %s36
      %p562 = scmp.lt.s32.totalorder %s36, 3
      %p563 = pnand %p561, %p562
      %p564 = pneg %p563
      // Predicated region
      $region97: #{tpu_custom_call.1} parent=5 // pred_check
        _
      $region98: #{tpu_custom_call.1} parent=5 // pred_check_branch
        %566 = sbr.rel (%p563) target = $region100
      $region99: #{tpu_custom_call.1} parent=5 // pred_region
        %s567 = ssub.s32 %s36, 1
        %p568 = pneg %p57
        %p569 = pneg %p54
        %p570 = pneg %p78
        %p571 = pneg %p75
        %p572 = pneg %p99
        %p573 = pneg %p96
        %p574 = pneg %p120
        %p575 = pneg %p117
        %p576 = pneg %p141
        %p577 = pneg %p138
        %p578 = pneg %p162
        %p579 = pneg %p159
        %p580 = pneg %p183
        %p581 = pneg %p180
        %p582 = pneg %p204
        %p583 = pneg %p201
        %p584 = pneg %p225
        %p585 = pneg %p222
        %p586 = pneg %p246
        %p587 = pneg %p243
        %p588 = pneg %p267
        %p589 = pneg %p264
        %p590 = pneg %p288
        %p591 = pneg %p285
        %p592 = pneg %p309
        %p593 = pneg %p306
        %p594 = pneg %p330
        %p595 = pneg %p327
        %p596 = pneg %p351
        %p597 = pneg %p348
        %p598 = pneg %p372
        %p599 = pneg %p369
        %p600 = pneg %p393
        %p601 = pneg %p390
        %p602 = pneg %p414
        %p603 = pneg %p411
        %p604 = pneg %p435
        %p605 = pneg %p432
        %p606 = pneg %p456
        %p607 = pneg %p453
        %p608 = pneg %p482
        %p609 = pneg %p479
        %s610 = sand.u32 %s469, 1
        %s611 = scalar_lea.sflag [#allocation5], %s610
        %s612 = sand.u32 %s469, 1
        %s613 = smul.addr %s612, 8
        %s614 = scalar_lea.vmem [#allocation4], %s613
        %v615 = vlaneseq
        %v616 = vshrl.u32 %v615, 7
        %v617 = vlaneseq
        %v618 = vand.u32 %v617, 127
        %vm619 = vcmp.eq.s32.totalorder %v616, 0
        %s620 = smul.u32 %s41, 128
        %s621 = sld [smem:[#allocation3 + %s620]]
        %v622 = vstv %s621
        %vm623 = vcmp.eq.s32.totalorder %v618, %v622
        %vm624 = vmand %vm619, %vm623
        %v625 = vsel %vm624, 1.0, 0.0
        %v626 = vadd.f32 %v625, 0.0
        %vm627 = vcmp.eq.s32.totalorder %v616, 1
        %s628 = sadd.s32 %s620, 1
        %s629 = sld [smem:[#allocation3 + %s628]]
        %v630 = vstv %s629
        %vm631 = vcmp.eq.s32.totalorder %v618, %v630
        %vm632 = vmand %vm627, %vm631
        %v633 = vsel %vm632, 1.0, 0.0
        %v634 = vadd.f32 %v626, %v633
        %vm635 = vcmp.eq.s32.totalorder %v616, 2
        %s636 = sadd.s32 %s620, 2
        %s637 = sld [smem:[#allocation3 + %s636]]
        %v638 = vstv %s637
        %vm639 = vcmp.eq.s32.totalorder %v618, %v638
        %vm640 = vmand %vm635, %vm639
        %v641 = vsel %vm640, 1.0, 0.0
        %v642 = vadd.f32 %v634, %v641
        %vm643 = vcmp.eq.s32.totalorder %v616, 3
        %s644 = sadd.s32 %s620, 3
        %s645 = sld [smem:[#allocation3 + %s644]]
        %v646 = vstv %s645
        %vm647 = vcmp.eq.s32.totalorder %v618, %v646
        %vm648 = vmand %vm643, %vm647
        %v649 = vsel %vm648, 1.0, 0.0
        %v650 = vadd.f32 %v642, %v649
        %vm651 = vcmp.eq.s32.totalorder %v616, 4
        %s652 = sadd.s32 %s620, 4
        %s653 = sld [smem:[#allocation3 + %s652]]
        %v654 = vstv %s653
        %vm655 = vcmp.eq.s32.totalorder %v618, %v654
        %vm656 = vmand %vm651, %vm655
        %v657 = vsel %vm656, 1.0, 0.0
        %v658 = vadd.f32 %v650, %v657
        %vm659 = vcmp.eq.s32.totalorder %v616, 5
        %s660 = sadd.s32 %s620, 5
        %s661 = sld [smem:[#allocation3 + %s660]]
        %v662 = vstv %s661
        %vm663 = vcmp.eq.s32.totalorder %v618, %v662
        %vm664 = vmand %vm659, %vm663
        %v665 = vsel %vm664, 1.0, 0.0
        %v666 = vadd.f32 %v658, %v665
        %vm667 = vcmp.eq.s32.totalorder %v616, 6
        %s668 = sadd.s32 %s620, 6
        %s669 = sld [smem:[#allocation3 + %s668]]
        %v670 = vstv %s669
        %vm671 = vcmp.eq.s32.totalorder %v618, %v670
        %vm672 = vmand %vm667, %vm671
        %v673 = vsel %vm672, 1.0, 0.0
        %v674 = vadd.f32 %v666, %v673
        %vm675 = vcmp.eq.s32.totalorder %v616, 7
        %s676 = sadd.s32 %s620, 7
        %s677 = sld [smem:[#allocation3 + %s676]]
        %v678 = vstv %s677
        %vm679 = vcmp.eq.s32.totalorder %v618, %v678
        %vm680 = vmand %vm675, %vm679
        %v681 = vsel %vm680, 1.0, 0.0
        %v682 = vadd.f32 %v674, %v681
        %v683 = vld [vmem:[%s1] sm:$0xff]
        %v684 = vld [vmem:[%s1 + $0x8] sm:$0xff]
        %v685 = vld [vmem:[%s1 + $0x10] sm:$0xff]
        %v686 = vld [vmem:[%s1 + $0x18] sm:$0xff]
        %v687 = vld [vmem:[%s1 + $0x20] sm:$0xff]
        %v688 = vld [vmem:[%s1 + $0x28] sm:$0xff]
        %v689 = vld [vmem:[%s1 + $0x30] sm:$0x3]
        %v690 = vld [vmem:[%s2] sm:$0xff]
        %vm691 = vcmask 408576
        %v693 = vsel %vm691, %v682, 0
        %vm695 = vcmask 1041408
        %v697 = vsel %vm695, %v689, 0
        %699 = vmatprep.subr.mxu0 0.0
        %700 = vmatpush1.msra.mxu0 %v683
        %701 = vmatprep.subr.mxu0 0.0
        %702 = vmatpush1.msra.mxu0 %v684
        %703 = vmatprep.subr.mxu0 0.0
        %704 = vmatpush1.msra.mxu0 %v685
        %705 = vmatprep.subr.mxu0 0.0
        %706 = vmatpush1.msra.mxu0 %v686
        %707 = vmatprep.subr.mxu0 0.0
        %708 = vmatpush1.msra.mxu0 %v687
        %709 = vmatprep.subr.mxu0 0.0
        %710 = vmatpush1.msra.mxu0 %v688
        %711 = vmatprep.subr.mxu0 0.0
        %712 = vmatpush1.msra.mxu0 %v697
        %713 = vmatprep.subr.mxu0 0.0
        %714 = vmatpush1.msra.mxu0 0.0
        %715 = vmatprep.subr.mxu0 0.0
        %716 = vmatpush1.msra.mxu0 0.0
        %717 = vmatprep.subr.mxu0 0.0
        %718 = vmatpush1.msra.mxu0 0.0
        %719 = vmatprep.subr.mxu0 0.0
        %720 = vmatpush1.msra.mxu0 0.0
        %721 = vmatprep.subr.mxu0 0.0
        %722 = vmatpush1.msra.mxu0 0.0
        %723 = vmatprep.subr.mxu0 0.0
        %724 = vmatpush1.msra.mxu0 0.0
        %725 = vmatprep.subr.mxu0 0.0
        %726 = vmatpush1.msra.mxu0 0.0
        %727 = vmatprep.subr.mxu0 0.0
        %728 = vmatpush1.msra.mxu0 0.0
        %729 = vmatprep.subr.mxu0 0.0
        %730 = vmatpush1.msra.mxu0 0.0
        %731 = vmatprep.subr.mxu0 0.0
        %732 = vmatpush1.msra.mxu0 0.0
        %733 = vmatprep.subr.mxu0 0.0
        %734 = vmatpush1.msra.mxu0 0.0
        %735 = vmatprep.subr.mxu0 0.0
        %736 = vmatpush1.msra.mxu0 0.0
        %737 = vmatprep.subr.mxu0 0.0
        %738 = vmatpush1.msra.mxu0 0.0
        %739 = vmatprep.subr.mxu0 0.0
        %740 = vmatpush1.msra.mxu0 0.0
        %741 = vmatprep.subr.mxu0 0.0
        %742 = vmatpush1.msra.mxu0 0.0
        %743 = vmatprep.subr.mxu0 0.0
        %744 = vmatpush1.msra.mxu0 0.0
        %745 = vmatprep.subr.mxu0 0.0
        %746 = vmatpush1.msra.mxu0 0.0
        %747 = vmatprep.subr.mxu0 0.0
        %748 = vmatpush1.msra.mxu0 0.0
        %749 = vmatprep.subr.mxu0 0.0
        %750 = vmatpush1.msra.mxu0 0.0
        %751 = vmatprep.subr.mxu0 0.0
        %752 = vmatpush1.msra.mxu0 0.0
        %753 = vmatprep.subr.mxu0 0.0
        %754 = vmatpush1.msra.mxu0 0.0
        %755 = vmatprep.subr.mxu0 0.0
        %756 = vmatpush1.msra.mxu0 0.0
        %757 = vmatprep.subr.mxu0 0.0
        %758 = vmatpush1.msra.mxu0 0.0
        %759 = vmatprep.subr.mxu0 0.0
        %760 = vmatpush1.msra.mxu0 0.0
        %761 = vmatprep.subr.mxu0 0.0
        %762 = vmatpush1.msra.mxu0 0.0
        %763 = vmatprep.mubr.f32.mxu0 0.0
        %764 = vmatmul.mubr.f32.gmra.mrb[0].mxu0 %v693
        %v765 = vpop.f32.mrb[0].mxu0
        %v766 = vadd.f32 %v690, %v765
        %v767 = vpop.f32.mrb[0].mxu0
        %768 = vdwg.mxu0
        %v769 = vld [vmem:[%s3] sm:$0x1]
        %v770 = vld [vmem:[%s4] sm:$0x1]
        %vm771 = vcmask 261120
        %v772 = vsel %vm771, %v766, 0.0
        %773 = vadd.xlane.f32.xlu0 %v772
        %v774 = vpop.xlane.xlu0 %773
        %v775 = vrcp.pop 32.0
        %v776 = vmul.f32 %v774, %v775
        %v777 = vsub.f32 %v766, %v776
        %v778 = vmul.f32 %v777, %v777
        %v779 = vsel %vm771, %v778, 0.0
        %780 = vadd.xlane.f32.xlu0 %v779
        %v781 = vpop.xlane.xlu0 %780
        %v782 = vmul.f32 %v781, %v775
        %v783 = vadd.f32 %v782, 1e-12
        %v784 = vrsqrt.pop %v783
        %v785 = vmul.f32 %v777, %v784
        %v787 = vlaneseq
        %v788 = vshrl.u32 %v787, 7
        %v789 = vsub.s32 0, %v788
        %v790 = vrot.slane %v769, %v789
        %v792 = vmul.f32 %v785, %v790
        %v794 = vlaneseq
        %v795 = vshrl.u32 %v794, 7
        %v796 = vsub.s32 0, %v795
        %v797 = vrot.slane %v770, %v796
        %v799 = vadd.f32 %v792, %v797
        %v800 = vld [vmem:[%s5] sm:$0x1]
        %v801 = vld [vmem:[%s6] sm:$0x1]
        %v802 = vsel %vm771, %v799, 0.0
        %803 = vadd.xlane.f32.xlu0 %v802
        %v804 = vpop.xlane.xlu0 %803
        %v805 = vmul.f32 %v804, %v775
        %v806 = vsub.f32 %v799, %v805
        %v807 = vmul.f32 %v806, %v806
        %v808 = vsel %vm771, %v807, 0.0
        %809 = vadd.xlane.f32.xlu0 %v808
        %v810 = vpop.xlane.xlu0 %809
        %v811 = vmul.f32 %v810, %v775
        %v812 = vadd.f32 %v811, 1e-05
        %v813 = vrsqrt.pop %v812
        %v814 = vmul.f32 %v806, %v813
        %v816 = vlaneseq
        %v817 = vshrl.u32 %v816, 7
        %v818 = vsub.s32 0, %v817
        %v819 = vrot.slane %v800, %v818
        %v821 = vmul.f32 %v814, %v819
        %v823 = vlaneseq
        %v824 = vshrl.u32 %v823, 7
        %v825 = vsub.s32 0, %v824
        %v826 = vrot.slane %v801, %v825
        %v828 = vadd.f32 %v821, %v826
        %v829 = vld [vmem:[%s7] sm:$0xff]
        %v830 = vld [vmem:[%s7 + $0x8] sm:$0xff]
        %v831 = vld [vmem:[%s7 + $0x10] sm:$0xff]
        %v832 = vld [vmem:[%s7 + $0x18] sm:$0xff]
        %v833 = vld [vmem:[%s8] sm:$0x1]
        %v835 = vlaneseq
        %v836 = vshrl.u32 %v835, 7
        %v837 = vsub.s32 0, %v836
        %v838 = vrot.slane %v833, %v837
        %v841 = vsel %vm771, %v828, 0
        %843 = vmatprep.subr.mxu0 0.0
        %844 = vmatpush1.msra.mxu0 %v829
        %845 = vmatprep.subr.mxu0 0.0
        %846 = vmatpush1.msra.mxu0 %v830
        %847 = vmatprep.subr.mxu0 0.0
        %848 = vmatpush1.msra.mxu0 %v831
        %849 = vmatprep.subr.mxu0 0.0
        %850 = vmatpush1.msra.mxu0 %v832
        %851 = vmatprep.subr.mxu0 0.0
        %852 = vmatpush1.msra.mxu0 0.0
        %853 = vmatprep.subr.mxu0 0.0
        %854 = vmatpush1.msra.mxu0 0.0
        %855 = vmatprep.subr.mxu0 0.0
        %856 = vmatpush1.msra.mxu0 0.0
        %857 = vmatprep.subr.mxu0 0.0
        %858 = vmatpush1.msra.mxu0 0.0
        %859 = vmatprep.subr.mxu0 0.0
        %860 = vmatpush1.msra.mxu0 0.0
        %861 = vmatprep.subr.mxu0 0.0
        %862 = vmatpush1.msra.mxu0 0.0
        %863 = vmatprep.subr.mxu0 0.0
        %864 = vmatpush1.msra.mxu0 0.0
        %865 = vmatprep.subr.mxu0 0.0
        %866 = vmatpush1.msra.mxu0 0.0
        %867 = vmatprep.subr.mxu0 0.0
        %868 = vmatpush1.msra.mxu0 0.0
        %869 = vmatprep.subr.mxu0 0.0
        %870 = vmatpush1.msra.mxu0 0.0
        %871 = vmatprep.subr.mxu0 0.0
        %872 = vmatpush1.msra.mxu0 0.0
        %873 = vmatprep.subr.mxu0 0.0
        %874 = vmatpush1.msra.mxu0 0.0
        %875 = vmatprep.subr.mxu0 0.0
        %876 = vmatpush1.msra.mxu0 0.0
        %877 = vmatprep.subr.mxu0 0.0
        %878 = vmatpush1.msra.mxu0 0.0
        %879 = vmatprep.subr.mxu0 0.0
        %880 = vmatpush1.msra.mxu0 0.0
        %881 = vmatprep.subr.mxu0 0.0
        %882 = vmatpush1.msra.mxu0 0.0
        %883 = vmatprep.subr.mxu0 0.0
        %884 = vmatpush1.msra.mxu0 0.0
        %885 = vmatprep.subr.mxu0 0.0
        %886 = vmatpush1.msra.mxu0 0.0
        %887 = vmatprep.subr.mxu0 0.0
        %888 = vmatpush1.msra.mxu0 0.0
        %889 = vmatprep.subr.mxu0 0.0
        %890 = vmatpush1.msra.mxu0 0.0
        %891 = vmatprep.subr.mxu0 0.0
        %892 = vmatpush1.msra.mxu0 0.0
        %893 = vmatprep.subr.mxu0 0.0
        %894 = vmatpush1.msra.mxu0 0.0
        %895 = vmatprep.subr.mxu0 0.0
        %896 = vmatpush1.msra.mxu0 0.0
        %897 = vmatprep.subr.mxu0 0.0
        %898 = vmatpush1.msra.mxu0 0.0
        %899 = vmatprep.subr.mxu0 0.0
        %900 = vmatpush1.msra.mxu0 0.0
        %901 = vmatprep.subr.mxu0 0.0
        %902 = vmatpush1.msra.mxu0 0.0
        %903 = vmatprep.subr.mxu0 0.0
        %904 = vmatpush1.msra.mxu0 0.0
        %905 = vmatprep.subr.mxu0 0.0
        %906 = vmatpush1.msra.mxu0 0.0
        %907 = vmatprep.mubr.f32.mxu0 0.0
        %908 = vmatmul.mubr.f32.gmra.mrb[0].mxu0 %v841
        %v909 = vpop.f32.mrb[0].mxu0
        %v910 = vadd.f32 %v838, %v909
        %v911 = vpop.f32.mrb[0].mxu0
        %912 = vdwg.mxu0
        %v913 = vld [vmem:[%s9] sm:$0xff]
        %v914 = vld [vmem:[%s9 + $0x8] sm:$0xff]
        %v915 = vld [vmem:[%s9 + $0x10] sm:$0xff]
        %v916 = vld [vmem:[%s9 + $0x18] sm:$0xff]
        %v917 = vld [vmem:[%s10] sm:$0x1]
        %v919 = vlaneseq
        %v920 = vshrl.u32 %v919, 7
        %v921 = vsub.s32 0, %v920
        %v922 = vrot.slane %v917, %v921
        %924 = vmatprep.subr.mxu0 0.0
        %925 = vmatpush1.msra.mxu0 %v913
        %926 = vmatprep.subr.mxu0 0.0
        %927 = vmatpush1.msra.mxu0 %v914
        %928 = vmatprep.subr.mxu0 0.0
        %929 = vmatpush1.msra.mxu0 %v915
        %930 = vmatprep.subr.mxu0 0.0
        %931 = vmatpush1.msra.mxu0 %v916
        %932 = vmatprep.subr.mxu0 0.0
        %933 = vmatpush1.msra.mxu0 0.0
        %934 = vmatprep.subr.mxu0 0.0
        %935 = vmatpush1.msra.mxu0 0.0
        %936 = vmatprep.subr.mxu0 0.0
        %937 = vmatpush1.msra.mxu0 0.0
        %938 = vmatprep.subr.mxu0 0.0
        %939 = vmatpush1.msra.mxu0 0.0
        %940 = vmatprep.subr.mxu0 0.0
        %941 = vmatpush1.msra.mxu0 0.0
        %942 = vmatprep.subr.mxu0 0.0
        %943 = vmatpush1.msra.mxu0 0.0
        %944 = vmatprep.subr.mxu0 0.0
        %945 = vmatpush1.msra.mxu0 0.0
        %946 = vmatprep.subr.mxu0 0.0
        %947 = vmatpush1.msra.mxu0 0.0
        %948 = vmatprep.subr.mxu0 0.0
        %949 = vmatpush1.msra.mxu0 0.0
        %950 = vmatprep.subr.mxu0 0.0
        %951 = vmatpush1.msra.mxu0 0.0
        %952 = vmatprep.subr.mxu0 0.0
        %953 = vmatpush1.msra.mxu0 0.0
        %954 = vmatprep.subr.mxu0 0.0
        %955 = vmatpush1.msra.mxu0 0.0
        %956 = vmatprep.subr.mxu0 0.0
        %957 = vmatpush1.msra.mxu0 0.0
        %958 = vmatprep.subr.mxu0 0.0
        %959 = vmatpush1.msra.mxu0 0.0
        %960 = vmatprep.subr.mxu0 0.0
        %961 = vmatpush1.msra.mxu0 0.0
        %962 = vmatprep.subr.mxu0 0.0
        %963 = vmatpush1.msra.mxu0 0.0
        %964 = vmatprep.subr.mxu0 0.0
        %965 = vmatpush1.msra.mxu0 0.0
        %966 = vmatprep.subr.mxu0 0.0
        %967 = vmatpush1.msra.mxu0 0.0
        %968 = vmatprep.subr.mxu0 0.0
        %969 = vmatpush1.msra.mxu0 0.0
        %970 = vmatprep.subr.mxu0 0.0
        %971 = vmatpush1.msra.mxu0 0.0
        %972 = vmatprep.subr.mxu0 0.0
        %973 = vmatpush1.msra.mxu0 0.0
        %974 = vmatprep.subr.mxu0 0.0
        %975 = vmatpush1.msra.mxu0 0.0
        %976 = vmatprep.subr.mxu0 0.0
        %977 = vmatpush1.msra.mxu0 0.0
        %978 = vmatprep.subr.mxu0 0.0
        %979 = vmatpush1.msra.mxu0 0.0
        %980 = vmatprep.subr.mxu0 0.0
        %981 = vmatpush1.msra.mxu0 0.0
        %982 = vmatprep.subr.mxu0 0.0
        %983 = vmatpush1.msra.mxu0 0.0
        %984 = vmatprep.subr.mxu0 0.0
        %985 = vmatpush1.msra.mxu0 0.0
        %986 = vmatprep.subr.mxu0 0.0
        %987 = vmatpush1.msra.mxu0 0.0
        %988 = vmatprep.mubr.f32.mxu0 0.0
        %989 = vmatmul.mubr.f32.gmra.mrb[0].mxu0 %v841
        %v990 = vpop.f32.mrb[0].mxu0
        %v991 = vadd.f32 %v922, %v990
        %v992 = vpop.f32.mrb[0].mxu0
        %993 = vdwg.mxu0
        %v994 = vld [vmem:[%s11] sm:$0xff]
        %v995 = vld [vmem:[%s11 + $0x8] sm:$0xff]
        %v996 = vld [vmem:[%s11 + $0x10] sm:$0xff]
        %v997 = vld [vmem:[%s11 + $0x18] sm:$0xff]
        %v998 = vld [vmem:[%s12] sm:$0x1]
        %v1000 = vlaneseq
        %v1001 = vshrl.u32 %v1000, 7
        %v1002 = vsub.s32 0, %v1001
        %v1003 = vrot.slane %v998, %v1002
        %1005 = vmatprep.subr.mxu0 0.0
        %1006 = vmatpush1.msra.mxu0 %v994
        %1007 = vmatprep.subr.mxu0 0.0
        %1008 = vmatpush1.msra.mxu0 %v995
        %1009 = vmatprep.subr.mxu0 0.0
        %1010 = vmatpush1.msra.mxu0 %v996
        %1011 = vmatprep.subr.mxu0 0.0
        %1012 = vmatpush1.msra.mxu0 %v997
        %1013 = vmatprep.subr.mxu0 0.0
        %1014 = vmatpush1.msra.mxu0 0.0
        %1015 = vmatprep.subr.mxu0 0.0
        %1016 = vmatpush1.msra.mxu0 0.0
        %1017 = vmatprep.subr.mxu0 0.0
        %1018 = vmatpush1.msra.mxu0 0.0
        %1019 = vmatprep.subr.mxu0 0.0
        %1020 = vmatpush1.msra.mxu0 0.0
        %1021 = vmatprep.subr.mxu0 0.0
        %1022 = vmatpush1.msra.mxu0 0.0
        %1023 = vmatprep.subr.mxu0 0.0
        %1024 = vmatpush1.msra.mxu0 0.0
        %1025 = vmatprep.subr.mxu0 0.0
        %1026 = vmatpush1.msra.mxu0 0.0
        %1027 = vmatprep.subr.mxu0 0.0
        %1028 = vmatpush1.msra.mxu0 0.0
        %1029 = vmatprep.subr.mxu0 0.0
        %1030 = vmatpush1.msra.mxu0 0.0
        %1031 = vmatprep.subr.mxu0 0.0
        %1032 = vmatpush1.msra.mxu0 0.0
        %1033 = vmatprep.subr.mxu0 0.0
        %1034 = vmatpush1.msra.mxu0 0.0
        %1035 = vmatprep.subr.mxu0 0.0
        %1036 = vmatpush1.msra.mxu0 0.0
        %1037 = vmatprep.subr.mxu0 0.0
        %1038 = vmatpush1.msra.mxu0 0.0
        %1039 = vmatprep.subr.mxu0 0.0
        %1040 = vmatpush1.msra.mxu0 0.0
        %1041 = vmatprep.subr.mxu0 0.0
        %1042 = vmatpush1.msra.mxu0 0.0
        %1043 = vmatprep.subr.mxu0 0.0
        %1044 = vmatpush1.msra.mxu0 0.0
        %1045 = vmatprep.subr.mxu0 0.0
        %1046 = vmatpush1.msra.mxu0 0.0
        %1047 = vmatprep.subr.mxu0 0.0
        %1048 = vmatpush1.msra.mxu0 0.0
        %1049 = vmatprep.subr.mxu0 0.0
        %1050 = vmatpush1.msra.mxu0 0.0
        %1051 = vmatprep.subr.mxu0 0.0
        %1052 = vmatpush1.msra.mxu0 0.0
        %1053 = vmatprep.subr.mxu0 0.0
        %1054 = vmatpush1.msra.mxu0 0.0
        %1055 = vmatprep.subr.mxu0 0.0
        %1056 = vmatpush1.msra.mxu0 0.0
        %1057 = vmatprep.subr.mxu0 0.0
        %1058 = vmatpush1.msra.mxu0 0.0
        %1059 = vmatprep.subr.mxu0 0.0
        %1060 = vmatpush1.msra.mxu0 0.0
        %1061 = vmatprep.subr.mxu0 0.0
        %1062 = vmatpush1.msra.mxu0 0.0
        %1063 = vmatprep.subr.mxu0 0.0
        %1064 = vmatpush1.msra.mxu0 0.0
        %1065 = vmatprep.subr.mxu0 0.0
        %1066 = vmatpush1.msra.mxu0 0.0
        %1067 = vmatprep.subr.mxu0 0.0
        %1068 = vmatpush1.msra.mxu0 0.0
        %1069 = vmatprep.mubr.f32.mxu0 0.0
        %1070 = vmatmul.mubr.f32.gmra.mrb[0].mxu0 %v841
        %v1071 = vpop.f32.mrb[0].mxu0
        %v1072 = vadd.f32 %v1003, %v1071
        %v1073 = vpop.f32.mrb[0].mxu0
        %1074 = vdwg.mxu0
        %vm1075 = vcmask 64512
        %v1077 = vsel %vm1075, %v910, 0
        %v1080 = vsel %vm1075, %v991, 0
        %1082 = vmatprep.subr.mxu0 0.0
        %1083 = vmatpush1.xpose.msra.mxu0 %v1080
        %1084 = vmatprep.subr.mxu0 0.0
        %1085 = vmatpush1.xpose.msra.mxu0 0.0
        %1086 = vmatprep.subr.mxu0 0.0
        %1087 = vmatpush1.xpose.msra.mxu0 0.0
        %1088 = vmatprep.subr.mxu0 0.0
        %1089 = vmatpush1.xpose.msra.mxu0 0.0
        %1090 = vmatprep.subr.mxu0 0.0
        %1091 = vmatpush1.xpose.msra.mxu0 0.0
        %1092 = vmatprep.subr.mxu0 0.0
        %1093 = vmatpush1.xpose.msra.mxu0 0.0
        %1094 = vmatprep.subr.mxu0 0.0
        %1095 = vmatpush1.xpose.msra.mxu0 0.0
        %1096 = vmatprep.subr.mxu0 0.0
        %1097 = vmatpush1.xpose.msra.mxu0 0.0
        %1098 = vmatprep.subr.mxu0 0.0
        %1099 = vmatpush1.xpose.msra.mxu0 0.0
        %1100 = vmatprep.subr.mxu0 0.0
        %1101 = vmatpush1.xpose.msra.mxu0 0.0
        %1102 = vmatprep.subr.mxu0 0.0
        %1103 = vmatpush1.xpose.msra.mxu0 0.0
        %1104 = vmatprep.subr.mxu0 0.0
        %1105 = vmatpush1.xpose.msra.mxu0 0.0
        %1106 = vmatprep.subr.mxu0 0.0
        %1107 = vmatpush1.xpose.msra.mxu0 0.0
        %1108 = vmatprep.subr.mxu0 0.0
        %1109 = vmatpush1.xpose.msra.mxu0 0.0
        %1110 = vmatprep.subr.mxu0 0.0
        %1111 = vmatpush1.xpose.msra.mxu0 0.0
        %1112 = vmatprep.subr.mxu0 0.0
        %1113 = vmatpush1.xpose.msra.mxu0 0.0
        %1114 = vmatprep.subr.mxu0 0.0
        %1115 = vmatpush1.xpose.msra.mxu0 0.0
        %1116 = vmatprep.subr.mxu0 0.0
        %1117 = vmatpush1.xpose.msra.mxu0 0.0
        %1118 = vmatprep.subr.mxu0 0.0
        %1119 = vmatpush1.xpose.msra.mxu0 0.0
        %1120 = vmatprep.subr.mxu0 0.0
        %1121 = vmatpush1.xpose.msra.mxu0 0.0
        %1122 = vmatprep.subr.mxu0 0.0
        %1123 = vmatpush1.xpose.msra.mxu0 0.0
        %1124 = vmatprep.subr.mxu0 0.0
        %1125 = vmatpush1.xpose.msra.mxu0 0.0
        %1126 = vmatprep.subr.mxu0 0.0
        %1127 = vmatpush1.xpose.msra.mxu0 0.0
        %1128 = vmatprep.subr.mxu0 0.0
        %1129 = vmatpush1.xpose.msra.mxu0 0.0
        %1130 = vmatprep.subr.mxu0 0.0
        %1131 = vmatpush1.xpose.msra.mxu0 0.0
        %1132 = vmatprep.subr.mxu0 0.0
        %1133 = vmatpush1.xpose.msra.mxu0 0.0
        %1134 = vmatprep.subr.mxu0 0.0
        %1135 = vmatpush1.xpose.msra.mxu0 0.0
        %1136 = vmatprep.subr.mxu0 0.0
        %1137 = vmatpush1.xpose.msra.mxu0 0.0
        %1138 = vmatprep.subr.mxu0 0.0
        %1139 = vmatpush1.xpose.msra.mxu0 0.0
        %1140 = vmatprep.subr.mxu0 0.0
        %1141 = vmatpush1.xpose.msra.mxu0 0.0
        %1142 = vmatprep.subr.mxu0 0.0
        %1143 = vmatpush1.xpose.msra.mxu0 0.0
        %1144 = vmatprep.subr.mxu0 0.0
        %1145 = vmatpush1.xpose.msra.mxu0 0.0
        %1146 = vmatprep.mubr.f32.mxu0 0.0
        %1147 = vmatmul.mubr.f32.gmra.mrb[0].mxu0 %v1077
        %v1148 = vpop.f32.mrb[0].mxu0
        %v1149 = vadd.f32 0.0, %v1148
        %v1150 = vpop.f32.mrb[0].mxu0
        %1151 = vdwg.mxu0
        %1152 = vrot.lane.b32.xlu0 %v910, 120
        %v1153 = vpop.permute.xlu0 %1152
        %1154 = vrot.lane.b32.xlu0 %v991, 120
        %v1155 = vpop.permute.xlu0 %1154
        %v1156 = vsel %vm1075, %v1153, 0
        %v1158 = vsel %vm1075, %v1155, 0
        %1160 = vmatprep.subr.mxu0 0.0
        %1161 = vmatpush1.xpose.msra.mxu0 %v1158
        %1162 = vmatprep.subr.mxu0 0.0
        %1163 = vmatpush1.xpose.msra.mxu0 0.0
        %1164 = vmatprep.subr.mxu0 0.0
        %1165 = vmatpush1.xpose.msra.mxu0 0.0
        %1166 = vmatprep.subr.mxu0 0.0
        %1167 = vmatpush1.xpose.msra.mxu0 0.0
        %1168 = vmatprep.subr.mxu0 0.0
        %1169 = vmatpush1.xpose.msra.mxu0 0.0
        %1170 = vmatprep.subr.mxu0 0.0
        %1171 = vmatpush1.xpose.msra.mxu0 0.0
        %1172 = vmatprep.subr.mxu0 0.0
        %1173 = vmatpush1.xpose.msra.mxu0 0.0
        %1174 = vmatprep.subr.mxu0 0.0
        %1175 = vmatpush1.xpose.msra.mxu0 0.0
        %1176 = vmatprep.subr.mxu0 0.0
        %1177 = vmatpush1.xpose.msra.mxu0 0.0
        %1178 = vmatprep.subr.mxu0 0.0
        %1179 = vmatpush1.xpose.msra.mxu0 0.0
        %1180 = vmatprep.subr.mxu0 0.0
        %1181 = vmatpush1.xpose.msra.mxu0 0.0
        %1182 = vmatprep.subr.mxu0 0.0
        %1183 = vmatpush1.xpose.msra.mxu0 0.0
        %1184 = vmatprep.subr.mxu0 0.0
        %1185 = vmatpush1.xpose.msra.mxu0 0.0
        %1186 = vmatprep.subr.mxu0 0.0
        %1187 = vmatpush1.xpose.msra.mxu0 0.0
        %1188 = vmatprep.subr.mxu0 0.0
        %1189 = vmatpush1.xpose.msra.mxu0 0.0
        %1190 = vmatprep.subr.mxu0 0.0
        %1191 = vmatpush1.xpose.msra.mxu0 0.0
        %1192 = vmatprep.subr.mxu0 0.0
        %1193 = vmatpush1.xpose.msra.mxu0 0.0
        %1194 = vmatprep.subr.mxu0 0.0
        %1195 = vmatpush1.xpose.msra.mxu0 0.0
        %1196 = vmatprep.subr.mxu0 0.0
        %1197 = vmatpush1.xpose.msra.mxu0 0.0
        %1198 = vmatprep.subr.mxu0 0.0
        %1199 = vmatpush1.xpose.msra.mxu0 0.0
        %1200 = vmatprep.subr.mxu0 0.0
        %1201 = vmatpush1.xpose.msra.mxu0 0.0
        %1202 = vmatprep.subr.mxu0 0.0
        %1203 = vmatpush1.xpose.msra.mxu0 0.0
        %1204 = vmatprep.subr.mxu0 0.0
        %1205 = vmatpush1.xpose.msra.mxu0 0.0
        %1206 = vmatprep.subr.mxu0 0.0
        %1207 = vmatpush1.xpose.msra.mxu0 0.0
        %1208 = vmatprep.subr.mxu0 0.0
        %1209 = vmatpush1.xpose.msra.mxu0 0.0
        %1210 = vmatprep.subr.mxu0 0.0
        %1211 = vmatpush1.xpose.msra.mxu0 0.0
        %1212 = vmatprep.subr.mxu0 0.0
        %1213 = vmatpush1.xpose.msra.mxu0 0.0
        %1214 = vmatprep.subr.mxu0 0.0
        %1215 = vmatpush1.xpose.msra.mxu0 0.0
        %1216 = vmatprep.subr.mxu0 0.0
        %1217 = vmatpush1.xpose.msra.mxu0 0.0
        %1218 = vmatprep.subr.mxu0 0.0
        %1219 = vmatpush1.xpose.msra.mxu0 0.0
        %1220 = vmatprep.subr.mxu0 0.0
        %1221 = vmatpush1.xpose.msra.mxu0 0.0
        %1222 = vmatprep.subr.mxu0 0.0
        %1223 = vmatpush1.xpose.msra.mxu0 0.0
        %1224 = vmatprep.mubr.f32.mxu0 0.0
        %1225 = vmatmul.mubr.f32.gmra.mrb[0].mxu0 %v1156
        %v1226 = vpop.f32.mrb[0].mxu0
        %v1227 = vadd.f32 0.0, %v1226
        %v1228 = vpop.f32.mrb[0].mxu0
        %1229 = vdwg.mxu0
        %1230 = vrot.lane.b32.xlu0 %v910, 112
        %v1231 = vpop.permute.xlu0 %1230
        %1232 = vrot.lane.b32.xlu0 %v991, 112
        %v1233 = vpop.permute.xlu0 %1232
        %v1234 = vsel %vm1075, %v1231, 0
        %v1236 = vsel %vm1075, %v1233, 0
        %1238 = vmatprep.subr.mxu0 0.0
        %1239 = vmatpush1.xpose.msra.mxu0 %v1236
        %1240 = vmatprep.subr.mxu0 0.0
        %1241 = vmatpush1.xpose.msra.mxu0 0.0
        %1242 = vmatprep.subr.mxu0 0.0
        %1243 = vmatpush1.xpose.msra.mxu0 0.0
        %1244 = vmatprep.subr.mxu0 0.0
        %1245 = vmatpush1.xpose.msra.mxu0 0.0
        %1246 = vmatprep.subr.mxu0 0.0
        %1247 = vmatpush1.xpose.msra.mxu0 0.0
        %1248 = vmatprep.subr.mxu0 0.0
        %1249 = vmatpush1.xpose.msra.mxu0 0.0
        %1250 = vmatprep.subr.mxu0 0.0
        %1251 = vmatpush1.xpose.msra.mxu0 0.0
        %1252 = vmatprep.subr.mxu0 0.0
        %1253 = vmatpush1.xpose.msra.mxu0 0.0
        %1254 = vmatprep.subr.mxu0 0.0
        %1255 = vmatpush1.xpose.msra.mxu0 0.0
        %1256 = vmatprep.subr.mxu0 0.0
        %1257 = vmatpush1.xpose.msra.mxu0 0.0
        %1258 = vmatprep.subr.mxu0 0.0
        %1259 = vmatpush1.xpose.msra.mxu0 0.0
        %1260 = vmatprep.subr.mxu0 0.0
        %1261 = vmatpush1.xpose.msra.mxu0 0.0
        %1262 = vmatprep.subr.mxu0 0.0
        %1263 = vmatpush1.xpose.msra.mxu0 0.0
        %1264 = vmatprep.subr.mxu0 0.0
        %1265 = vmatpush1.xpose.msra.mxu0 0.0
        %1266 = vmatprep.subr.mxu0 0.0
        %1267 = vmatpush1.xpose.msra.mxu0 0.0
        %1268 = vmatprep.subr.mxu0 0.0
        %1269 = vmatpush1.xpose.msra.mxu0 0.0
        %1270 = vmatprep.subr.mxu0 0.0
        %1271 = vmatpush1.xpose.msra.mxu0 0.0
        %1272 = vmatprep.subr.mxu0 0.0
        %1273 = vmatpush1.xpose.msra.mxu0 0.0
        %1274 = vmatprep.subr.mxu0 0.0
        %1275 = vmatpush1.xpose.msra.mxu0 0.0
        %1276 = vmatprep.subr.mxu0 0.0
        %1277 = vmatpush1.xpose.msra.mxu0 0.0
        %1278 = vmatprep.subr.mxu0 0.0
        %1279 = vmatpush1.xpose.msra.mxu0 0.0
        %1280 = vmatprep.subr.mxu0 0.0
        %1281 = vmatpush1.xpose.msra.mxu0 0.0
        %1282 = vmatprep.subr.mxu0 0.0
        %1283 = vmatpush1.xpose.msra.mxu0 0.0
        %1284 = vmatprep.subr.mxu0 0.0
        %1285 = vmatpush1.xpose.msra.mxu0 0.0
        %1286 = vmatprep.subr.mxu0 0.0
        %1287 = vmatpush1.xpose.msra.mxu0 0.0
        %1288 = vmatprep.subr.mxu0 0.0
        %1289 = vmatpush1.xpose.msra.mxu0 0.0
        %1290 = vmatprep.subr.mxu0 0.0
        %1291 = vmatpush1.xpose.msra.mxu0 0.0
        %1292 = vmatprep.subr.mxu0 0.0
        %1293 = vmatpush1.xpose.msra.mxu0 0.0
        %1294 = vmatprep.subr.mxu0 0.0
        %1295 = vmatpush1.xpose.msra.mxu0 0.0
        %1296 = vmatprep.subr.mxu0 0.0
        %1297 = vmatpush1.xpose.msra.mxu0 0.0
        %1298 = vmatprep.subr.mxu0 0.0
        %1299 = vmatpush1.xpose.msra.mxu0 0.0
        %1300 = vmatprep.subr.mxu0 0.0
        %1301 = vmatpush1.xpose.msra.mxu0 0.0
        %1302 = vmatprep.mubr.f32.mxu0 0.0
        %1303 = vmatmul.mubr.f32.gmra.mrb[0].mxu0 %v1234
        %v1304 = vpop.f32.mrb[0].mxu0
        %v1305 = vadd.f32 0.0, %v1304
        %v1306 = vpop.f32.mrb[0].mxu0
        %1307 = vdwg.mxu0
        %1308 = vrot.lane.b32.xlu0 %v910, 104
        %v1309 = vpop.permute.xlu0 %1308
        %1310 = vrot.lane.b32.xlu0 %v991, 104
        %v1311 = vpop.permute.xlu0 %1310
        %v1312 = vsel %vm1075, %v1309, 0
        %v1314 = vsel %vm1075, %v1311, 0
        %1316 = vmatprep.subr.mxu0 0.0
        %1317 = vmatpush1.xpose.msra.mxu0 %v1314
        %1318 = vmatprep.subr.mxu0 0.0
        %1319 = vmatpush1.xpose.msra.mxu0 0.0
        %1320 = vmatprep.subr.mxu0 0.0
        %1321 = vmatpush1.xpose.msra.mxu0 0.0
        %1322 = vmatprep.subr.mxu0 0.0
        %1323 = vmatpush1.xpose.msra.mxu0 0.0
        %1324 = vmatprep.subr.mxu0 0.0
        %1325 = vmatpush1.xpose.msra.mxu0 0.0
        %1326 = vmatprep.subr.mxu0 0.0
        %1327 = vmatpush1.xpose.msra.mxu0 0.0
        %1328 = vmatprep.subr.mxu0 0.0
        %1329 = vmatpush1.xpose.msra.mxu0 0.0
        %1330 = vmatprep.subr.mxu0 0.0
        %1331 = vmatpush1.xpose.msra.mxu0 0.0
        %1332 = vmatprep.subr.mxu0 0.0
        %1333 = vmatpush1.xpose.msra.mxu0 0.0
        %1334 = vmatprep.subr.mxu0 0.0
        %1335 = vmatpush1.xpose.msra.mxu0 0.0
        %1336 = vmatprep.subr.mxu0 0.0
        %1337 = vmatpush1.xpose.msra.mxu0 0.0
        %1338 = vmatprep.subr.mxu0 0.0
        %1339 = vmatpush1.xpose.msra.mxu0 0.0
        %1340 = vmatprep.subr.mxu0 0.0
        %1341 = vmatpush1.xpose.msra.mxu0 0.0
        %1342 = vmatprep.subr.mxu0 0.0
        %1343 = vmatpush1.xpose.msra.mxu0 0.0
        %1344 = vmatprep.subr.mxu0 0.0
        %1345 = vmatpush1.xpose.msra.mxu0 0.0
        %1346 = vmatprep.subr.mxu0 0.0
        %1347 = vmatpush1.xpose.msra.mxu0 0.0
        %1348 = vmatprep.subr.mxu0 0.0
        %1349 = vmatpush1.xpose.msra.mxu0 0.0
        %1350 = vmatprep.subr.mxu0 0.0
        %1351 = vmatpush1.xpose.msra.mxu0 0.0
        %1352 = vmatprep.subr.mxu0 0.0
        %1353 = vmatpush1.xpose.msra.mxu0 0.0
        %1354 = vmatprep.subr.mxu0 0.0
        %1355 = vmatpush1.xpose.msra.mxu0 0.0
        %1356 = vmatprep.subr.mxu0 0.0
        %1357 = vmatpush1.xpose.msra.mxu0 0.0
        %1358 = vmatprep.subr.mxu0 0.0
        %1359 = vmatpush1.xpose.msra.mxu0 0.0
        %1360 = vmatprep.subr.mxu0 0.0
        %1361 = vmatpush1.xpose.msra.mxu0 0.0
        %1362 = vmatprep.subr.mxu0 0.0
        %1363 = vmatpush1.xpose.msra.mxu0 0.0
        %1364 = vmatprep.subr.mxu0 0.0
        %1365 = vmatpush1.xpose.msra.mxu0 0.0
        %1366 = vmatprep.subr.mxu0 0.0
        %1367 = vmatpush1.xpose.msra.mxu0 0.0
        %1368 = vmatprep.subr.mxu0 0.0
        %1369 = vmatpush1.xpose.msra.mxu0 0.0
        %1370 = vmatprep.subr.mxu0 0.0
        %1371 = vmatpush1.xpose.msra.mxu0 0.0
        %1372 = vmatprep.subr.mxu0 0.0
        %1373 = vmatpush1.xpose.msra.mxu0 0.0
        %1374 = vmatprep.subr.mxu0 0.0
        %1375 = vmatpush1.xpose.msra.mxu0 0.0
        %1376 = vmatprep.subr.mxu0 0.0
        %1377 = vmatpush1.xpose.msra.mxu0 0.0
        %1378 = vmatprep.subr.mxu0 0.0
        %1379 = vmatpush1.xpose.msra.mxu0 0.0
        %1380 = vmatprep.mubr.f32.mxu0 0.0
        %1381 = vmatmul.mubr.f32.gmra.mrb[0].mxu0 %v1312
        %v1382 = vpop.f32.mrb[0].mxu0
        %v1383 = vadd.f32 0.0, %v1382
        %v1384 = vpop.f32.mrb[0].mxu0
        %1385 = vdwg.mxu0
        %v1386 = vmul.f32 %v1149, 0.35355338
        %v1387 = vmul.f32 %v1227, 0.35355338
        %v1388 = vmul.f32 %v1305, 0.35355338
        %v1389 = vmul.f32 %v1383, 0.35355338
        %v1390 = vsel %vm1075, %v1386, -inf
        %1391 = vmax.xlane.f32.xlu0 %v1390
        %v1392 = vpop.xlane.xlu0 %1391
        %v1393 = vsel %vm1075, %v1387, -inf
        %1394 = vmax.xlane.f32.xlu0 %v1393
        %v1395 = vpop.xlane.xlu0 %1394
        %v1396 = vsel %vm1075, %v1388, -inf
        %1397 = vmax.xlane.f32.xlu0 %v1396
        %v1398 = vpop.xlane.xlu0 %1397
        %v1399 = vsel %vm1075, %v1389, -inf
        %1400 = vmax.xlane.f32.xlu0 %v1399
        %v1401 = vpop.xlane.xlu0 %1400
        %v1402 = vsub.f32 %v1386, %v1392
        %v1403 = vsub.f32 %v1387, %v1395
        %v1404 = vsub.f32 %v1388, %v1398
        %v1405 = vsub.f32 %v1389, %v1401
        %v1406 = vmul.f32 %v1402, 1.442695
        %v1407 = vpow.pop %v1406
        %v1408 = vmul.f32 %v1403, 1.442695
        %v1409 = vpow.pop %v1408
        %v1410 = vmul.f32 %v1404, 1.442695
        %v1411 = vpow.pop %v1410
        %v1412 = vmul.f32 %v1405, 1.442695
        %v1413 = vpow.pop %v1412
        %v1414 = vsel %vm1075, %v1407, 0.0
        %1415 = vadd.xlane.f32.xlu0 %v1414
        %v1416 = vpop.xlane.xlu0 %1415
        %v1417 = vsel %vm1075, %v1409, 0.0
        %1418 = vadd.xlane.f32.xlu0 %v1417
        %v1419 = vpop.xlane.xlu0 %1418
        %v1420 = vsel %vm1075, %v1411, 0.0
        %1421 = vadd.xlane.f32.xlu0 %v1420
        %v1422 = vpop.xlane.xlu0 %1421
        %v1423 = vsel %vm1075, %v1413, 0.0
        %1424 = vadd.xlane.f32.xlu0 %v1423
        %v1425 = vpop.xlane.xlu0 %1424
        %v1426 = vrcp.pop %v1416
        %v1427 = vrcp.pop %v1419
        %v1428 = vrcp.pop %v1422
        %v1429 = vrcp.pop %v1425
        %v1430 = vmul.f32 %v1407, %v1426
        %v1431 = vmul.f32 %v1409, %v1427
        %v1432 = vmul.f32 %v1411, %v1428
        %v1433 = vmul.f32 %v1413, %v1429
        %v1435 = vsel %vm1075, %v1430, 0
        %1437 = vmatprep.subr.mxu0 0.0
        %1438 = vmatpush1.msra.mxu0 %v1072
        %1439 = vmatprep.subr.mxu0 0.0
        %1440 = vmatpush1.msra.mxu0 0.0
        %1441 = vmatprep.subr.mxu0 0.0
        %1442 = vmatpush1.msra.mxu0 0.0
        %1443 = vmatprep.subr.mxu0 0.0
        %1444 = vmatpush1.msra.mxu0 0.0
        %1445 = vmatprep.subr.mxu0 0.0
        %1446 = vmatpush1.msra.mxu0 0.0
        %1447 = vmatprep.subr.mxu0 0.0
        %1448 = vmatpush1.msra.mxu0 0.0
        %1449 = vmatprep.subr.mxu0 0.0
        %1450 = vmatpush1.msra.mxu0 0.0
        %1451 = vmatprep.subr.mxu0 0.0
        %1452 = vmatpush1.msra.mxu0 0.0
        %1453 = vmatprep.subr.mxu0 0.0
        %1454 = vmatpush1.msra.mxu0 0.0
        %1455 = vmatprep.subr.mxu0 0.0
        %1456 = vmatpush1.msra.mxu0 0.0
        %1457 = vmatprep.subr.mxu0 0.0
        %1458 = vmatpush1.msra.mxu0 0.0
        %1459 = vmatprep.subr.mxu0 0.0
        %1460 = vmatpush1.msra.mxu0 0.0
        %1461 = vmatprep.subr.mxu0 0.0
        %1462 = vmatpush1.msra.mxu0 0.0
        %1463 = vmatprep.subr.mxu0 0.0
        %1464 = vmatpush1.msra.mxu0 0.0
        %1465 = vmatprep.subr.mxu0 0.0
        %1466 = vmatpush1.msra.mxu0 0.0
        %1467 = vmatprep.subr.mxu0 0.0
        %1468 = vmatpush1.msra.mxu0 0.0
        %1469 = vmatprep.subr.mxu0 0.0
        %1470 = vmatpush1.msra.mxu0 0.0
        %1471 = vmatprep.subr.mxu0 0.0
        %1472 = vmatpush1.msra.mxu0 0.0
        %1473 = vmatprep.subr.mxu0 0.0
        %1474 = vmatpush1.msra.mxu0 0.0
        %1475 = vmatprep.subr.mxu0 0.0
        %1476 = vmatpush1.msra.mxu0 0.0
        %1477 = vmatprep.subr.mxu0 0.0
        %1478 = vmatpush1.msra.mxu0 0.0
        %1479 = vmatprep.subr.mxu0 0.0
        %1480 = vmatpush1.msra.mxu0 0.0
        %1481 = vmatprep.subr.mxu0 0.0
        %1482 = vmatpush1.msra.mxu0 0.0
        %1483 = vmatprep.subr.mxu0 0.0
        %1484 = vmatpush1.msra.mxu0 0.0
        %1485 = vmatprep.subr.mxu0 0.0
        %1486 = vmatpush1.msra.mxu0 0.0
        %1487 = vmatprep.subr.mxu0 0.0
        %1488 = vmatpush1.msra.mxu0 0.0
        %1489 = vmatprep.subr.mxu0 0.0
        %1490 = vmatpush1.msra.mxu0 0.0
        %1491 = vmatprep.subr.mxu0 0.0
        %1492 = vmatpush1.msra.mxu0 0.0
        %1493 = vmatprep.subr.mxu0 0.0
        %1494 = vmatpush1.msra.mxu0 0.0
        %1495 = vmatprep.subr.mxu0 0.0
        %1496 = vmatpush1.msra.mxu0 0.0
        %1497 = vmatprep.subr.mxu0 0.0
        %1498 = vmatpush1.msra.mxu0 0.0
        %1499 = vmatprep.subr.mxu0 0.0
        %1500 = vmatpush1.msra.mxu0 0.0
        %1501 = vmatprep.mubr.f32.mxu0 0.0
        %1502 = vmatmul.mubr.f32.gmra.mrb[0].mxu0 %v1435
        %v1503 = vpop.f32.mrb[0].mxu0
        %v1504 = vadd.f32 0.0, %v1503
        %v1505 = vpop.f32.mrb[0].mxu0
        %1506 = vdwg.mxu0
        %1508 = vrot.lane.b32.xlu0 %v1072, 120
        %v1509 = vpop.permute.xlu0 %1508
        %v1512 = vsel %vm1075, %v1431, 0
        %1514 = vmatprep.subr.mxu0 0.0
        %1515 = vmatpush1.msra.mxu0 %v1509
        %1516 = vmatprep.subr.mxu0 0.0
        %1517 = vmatpush1.msra.mxu0 0.0
        %1518 = vmatprep.subr.mxu0 0.0
        %1519 = vmatpush1.msra.mxu0 0.0
        %1520 = vmatprep.subr.mxu0 0.0
        %1521 = vmatpush1.msra.mxu0 0.0
        %1522 = vmatprep.subr.mxu0 0.0
        %1523 = vmatpush1.msra.mxu0 0.0
        %1524 = vmatprep.subr.mxu0 0.0
        %1525 = vmatpush1.msra.mxu0 0.0
        %1526 = vmatprep.subr.mxu0 0.0
        %1527 = vmatpush1.msra.mxu0 0.0
        %1528 = vmatprep.subr.mxu0 0.0
        %1529 = vmatpush1.msra.mxu0 0.0
        %1530 = vmatprep.subr.mxu0 0.0
        %1531 = vmatpush1.msra.mxu0 0.0
        %1532 = vmatprep.subr.mxu0 0.0
        %1533 = vmatpush1.msra.mxu0 0.0
        %1534 = vmatprep.subr.mxu0 0.0
        %1535 = vmatpush1.msra.mxu0 0.0
        %1536 = vmatprep.subr.mxu0 0.0
        %1537 = vmatpush1.msra.mxu0 0.0
        %1538 = vmatprep.subr.mxu0 0.0
        %1539 = vmatpush1.msra.mxu0 0.0
        %1540 = vmatprep.subr.mxu0 0.0
        %1541 = vmatpush1.msra.mxu0 0.0
        %1542 = vmatprep.subr.mxu0 0.0
        %1543 = vmatpush1.msra.mxu0 0.0
        %1544 = vmatprep.subr.mxu0 0.0
        %1545 = vmatpush1.msra.mxu0 0.0
        %1546 = vmatprep.subr.mxu0 0.0
        %1547 = vmatpush1.msra.mxu0 0.0
        %1548 = vmatprep.subr.mxu0 0.0
        %1549 = vmatpush1.msra.mxu0 0.0
        %1550 = vmatprep.subr.mxu0 0.0
        %1551 = vmatpush1.msra.mxu0 0.0
        %1552 = vmatprep.subr.mxu0 0.0
        %1553 = vmatpush1.msra.mxu0 0.0
        %1554 = vmatprep.subr.mxu0 0.0
        %1555 = vmatpush1.msra.mxu0 0.0
        %1556 = vmatprep.subr.mxu0 0.0
        %1557 = vmatpush1.msra.mxu0 0.0
        %1558 = vmatprep.subr.mxu0 0.0
        %1559 = vmatpush1.msra.mxu0 0.0
        %1560 = vmatprep.subr.mxu0 0.0
        %1561 = vmatpush1.msra.mxu0 0.0
        %1562 = vmatprep.subr.mxu0 0.0
        %1563 = vmatpush1.msra.mxu0 0.0
        %1564 = vmatprep.subr.mxu0 0.0
        %1565 = vmatpush1.msra.mxu0 0.0
        %1566 = vmatprep.subr.mxu0 0.0
        %1567 = vmatpush1.msra.mxu0 0.0
        %1568 = vmatprep.subr.mxu0 0.0
        %1569 = vmatpush1.msra.mxu0 0.0
        %1570 = vmatprep.subr.mxu0 0.0
        %1571 = vmatpush1.msra.mxu0 0.0
        %1572 = vmatprep.subr.mxu0 0.0
        %1573 = vmatpush1.msra.mxu0 0.0
        %1574 = vmatprep.subr.mxu0 0.0
        %1575 = vmatpush1.msra.mxu0 0.0
        %1576 = vmatprep.subr.mxu0 0.0
        %1577 = vmatpush1.msra.mxu0 0.0
        %1578 = vmatprep.mubr.f32.mxu0 0.0
        %1579 = vmatmul.mubr.f32.gmra.mrb[0].mxu0 %v1512
        %v1580 = vpop.f32.mrb[0].mxu0
        %v1581 = vadd.f32 0.0, %v1580
        %v1582 = vpop.f32.mrb[0].mxu0
        %1583 = vdwg.mxu0
        %1584 = vrot.lane.b32.xlu0 %v1072, 112
        %v1585 = vpop.permute.xlu0 %1584
        %v1588 = vsel %vm1075, %v1432, 0
        %1590 = vmatprep.subr.mxu0 0.0
        %1591 = vmatpush1.msra.mxu0 %v1585
        %1592 = vmatprep.subr.mxu0 0.0
        %1593 = vmatpush1.msra.mxu0 0.0
        %1594 = vmatprep.subr.mxu0 0.0
        %1595 = vmatpush1.msra.mxu0 0.0
        %1596 = vmatprep.subr.mxu0 0.0
        %1597 = vmatpush1.msra.mxu0 0.0
        %1598 = vmatprep.subr.mxu0 0.0
        %1599 = vmatpush1.msra.mxu0 0.0
        %1600 = vmatprep.subr.mxu0 0.0
        %1601 = vmatpush1.msra.mxu0 0.0
        %1602 = vmatprep.subr.mxu0 0.0
        %1603 = vmatpush1.msra.mxu0 0.0
        %1604 = vmatprep.subr.mxu0 0.0
        %1605 = vmatpush1.msra.mxu0 0.0
        %1606 = vmatprep.subr.mxu0 0.0
        %1607 = vmatpush1.msra.mxu0 0.0
        %1608 = vmatprep.subr.mxu0 0.0
        %1609 = vmatpush1.msra.mxu0 0.0
        %1610 = vmatprep.subr.mxu0 0.0
        %1611 = vmatpush1.msra.mxu0 0.0
        %1612 = vmatprep.subr.mxu0 0.0
        %1613 = vmatpush1.msra.mxu0 0.0
        %1614 = vmatprep.subr.mxu0 0.0
        %1615 = vmatpush1.msra.mxu0 0.0
        %1616 = vmatprep.subr.mxu0 0.0
        %1617 = vmatpush1.msra.mxu0 0.0
        %1618 = vmatprep.subr.mxu0 0.0
        %1619 = vmatpush1.msra.mxu0 0.0
        %1620 = vmatprep.subr.mxu0 0.0
        %1621 = vmatpush1.msra.mxu0 0.0
        %1622 = vmatprep.subr.mxu0 0.0
        %1623 = vmatpush1.msra.mxu0 0.0
        %1624 = vmatprep.subr.mxu0 0.0
        %1625 = vmatpush1.msra.mxu0 0.0
        %1626 = vmatprep.subr.mxu0 0.0
        %1627 = vmatpush1.msra.mxu0 0.0
        %1628 = vmatprep.subr.mxu0 0.0
        %1629 = vmatpush1.msra.mxu0 0.0
        %1630 = vmatprep.subr.mxu0 0.0
        %1631 = vmatpush1.msra.mxu0 0.0
        %1632 = vmatprep.subr.mxu0 0.0
        %1633 = vmatpush1.msra.mxu0 0.0
        %1634 = vmatprep.subr.mxu0 0.0
        %1635 = vmatpush1.msra.mxu0 0.0
        %1636 = vmatprep.subr.mxu0 0.0
        %1637 = vmatpush1.msra.mxu0 0.0
        %1638 = vmatprep.subr.mxu0 0.0
        %1639 = vmatpush1.msra.mxu0 0.0
        %1640 = vmatprep.subr.mxu0 0.0
        %1641 = vmatpush1.msra.mxu0 0.0
        %1642 = vmatprep.subr.mxu0 0.0
        %1643 = vmatpush1.msra.mxu0 0.0
        %1644 = vmatprep.subr.mxu0 0.0
        %1645 = vmatpush1.msra.mxu0 0.0
        %1646 = vmatprep.subr.mxu0 0.0
        %1647 = vmatpush1.msra.mxu0 0.0
        %1648 = vmatprep.subr.mxu0 0.0
        %1649 = vmatpush1.msra.mxu0 0.0
        %1650 = vmatprep.subr.mxu0 0.0
        %1651 = vmatpush1.msra.mxu0 0.0
        %1652 = vmatprep.subr.mxu0 0.0
        %1653 = vmatpush1.msra.mxu0 0.0
        %1654 = vmatprep.mubr.f32.mxu0 0.0
        %1655 = vmatmul.mubr.f32.gmra.mrb[0].mxu0 %v1588
        %v1656 = vpop.f32.mrb[0].mxu0
        %v1657 = vadd.f32 0.0, %v1656
        %v1658 = vpop.f32.mrb[0].mxu0
        %1659 = vdwg.mxu0
        %1660 = vrot.lane.b32.xlu0 %v1072, 104
        %v1661 = vpop.permute.xlu0 %1660
        %v1664 = vsel %vm1075, %v1433, 0
        %1666 = vmatprep.subr.mxu0 0.0
        %1667 = vmatpush1.msra.mxu0 %v1661
        %1668 = vmatprep.subr.mxu0 0.0
        %1669 = vmatpush1.msra.mxu0 0.0
        %1670 = vmatprep.subr.mxu0 0.0
        %1671 = vmatpush1.msra.mxu0 0.0
        %1672 = vmatprep.subr.mxu0 0.0
        %1673 = vmatpush1.msra.mxu0 0.0
        %1674 = vmatprep.subr.mxu0 0.0
        %1675 = vmatpush1.msra.mxu0 0.0
        %1676 = vmatprep.subr.mxu0 0.0
        %1677 = vmatpush1.msra.mxu0 0.0
        %1678 = vmatprep.subr.mxu0 0.0
        %1679 = vmatpush1.msra.mxu0 0.0
        %1680 = vmatprep.subr.mxu0 0.0
        %1681 = vmatpush1.msra.mxu0 0.0
        %1682 = vmatprep.subr.mxu0 0.0
        %1683 = vmatpush1.msra.mxu0 0.0
        %1684 = vmatprep.subr.mxu0 0.0
        %1685 = vmatpush1.msra.mxu0 0.0
        %1686 = vmatprep.subr.mxu0 0.0
        %1687 = vmatpush1.msra.mxu0 0.0
        %1688 = vmatprep.subr.mxu0 0.0
        %1689 = vmatpush1.msra.mxu0 0.0
        %1690 = vmatprep.subr.mxu0 0.0
        %1691 = vmatpush1.msra.mxu0 0.0
        %1692 = vmatprep.subr.mxu0 0.0
        %1693 = vmatpush1.msra.mxu0 0.0
        %1694 = vmatprep.subr.mxu0 0.0
        %1695 = vmatpush1.msra.mxu0 0.0
        %1696 = vmatprep.subr.mxu0 0.0
        %1697 = vmatpush1.msra.mxu0 0.0
        %1698 = vmatprep.subr.mxu0 0.0
        %1699 = vmatpush1.msra.mxu0 0.0
        %1700 = vmatprep.subr.mxu0 0.0
        %1701 = vmatpush1.msra.mxu0 0.0
        %1702 = vmatprep.subr.mxu0 0.0
        %1703 = vmatpush1.msra.mxu0 0.0
        %1704 = vmatprep.subr.mxu0 0.0
        %1705 = vmatpush1.msra.mxu0 0.0
        %1706 = vmatprep.subr.mxu0 0.0
        %1707 = vmatpush1.msra.mxu0 0.0
        %1708 = vmatprep.subr.mxu0 0.0
        %1709 = vmatpush1.msra.mxu0 0.0
        %1710 = vmatprep.subr.mxu0 0.0
        %1711 = vmatpush1.msra.mxu0 0.0
        %1712 = vmatprep.subr.mxu0 0.0
        %1713 = vmatpush1.msra.mxu0 0.0
        %1714 = vmatprep.subr.mxu0 0.0
        %1715 = vmatpush1.msra.mxu0 0.0
        %1716 = vmatprep.subr.mxu0 0.0
        %1717 = vmatpush1.msra.mxu0 0.0
        %1718 = vmatprep.subr.mxu0 0.0
        %1719 = vmatpush1.msra.mxu0 0.0
        %1720 = vmatprep.subr.mxu0 0.0
        %1721 = vmatpush1.msra.mxu0 0.0
        %1722 = vmatprep.subr.mxu0 0.0
        %1723 = vmatpush1.msra.mxu0 0.0
        %1724 = vmatprep.subr.mxu0 0.0
        %1725 = vmatpush1.msra.mxu0 0.0
        %1726 = vmatprep.subr.mxu0 0.0
        %1727 = vmatpush1.msra.mxu0 0.0
        %1728 = vmatprep.subr.mxu0 0.0
        %1729 = vmatpush1.msra.mxu0 0.0
        %1730 = vmatprep.mubr.f32.mxu0 0.0
        %1731 = vmatmul.mubr.f32.gmra.mrb[0].mxu0 %v1664
        %v1732 = vpop.f32.mrb[0].mxu0
        %v1733 = vadd.f32 0.0, %v1732
        %v1734 = vpop.f32.mrb[0].mxu0
        %1735 = vdwg.mxu0
        %1737 = vrot.lane.b32.xlu0 %v1581, 8
        %v1738 = vpop.permute.xlu0 %1737
        %1741 = vrot.lane.b32.xlu0 %v1657, 16
        %v1742 = vpop.permute.xlu0 %1741
        %1745 = vrot.lane.b32.xlu0 %v1733, 24
        %v1746 = vpop.permute.xlu0 %1745
        %v1748 = vsel %vm1075, %v1504, %v1738
        %vm1749 = vcmask 130048
        %v1750 = vsel %vm1749, %v1748, %v1742
        %vm1751 = vcmask 195584
        %v1752 = vsel %vm1751, %v1750, %v1746
        %v1753 = vld [vmem:[%s13] sm:$0xff]
        %v1754 = vld [vmem:[%s13 + $0x8] sm:$0xff]
        %v1755 = vld [vmem:[%s13 + $0x10] sm:$0xff]
        %v1756 = vld [vmem:[%s13 + $0x18] sm:$0xff]
        %v1758 = vsel %vm771, %v1752, 0
        %1760 = vmatprep.subr.mxu0 0.0
        %1761 = vmatpush1.msra.mxu0 %v1753
        %1762 = vmatprep.subr.mxu0 0.0
        %1763 = vmatpush1.msra.mxu0 %v1754
        %1764 = vmatprep.subr.mxu0 0.0
        %1765 = vmatpush1.msra.mxu0 %v1755
        %1766 = vmatprep.subr.mxu0 0.0
        %1767 = vmatpush1.msra.mxu0 %v1756
        %1768 = vmatprep.subr.mxu0 0.0
        %1769 = vmatpush1.msra.mxu0 0.0
        %1770 = vmatprep.subr.mxu0 0.0
        %1771 = vmatpush1.msra.mxu0 0.0
        %1772 = vmatprep.subr.mxu0 0.0
        %1773 = vmatpush1.msra.mxu0 0.0
        %1774 = vmatprep.subr.mxu0 0.0
        %1775 = vmatpush1.msra.mxu0 0.0
        %1776 = vmatprep.subr.mxu0 0.0
        %1777 = vmatpush1.msra.mxu0 0.0
        %1778 = vmatprep.subr.mxu0 0.0
        %1779 = vmatpush1.msra.mxu0 0.0
        %1780 = vmatprep.subr.mxu0 0.0
        %1781 = vmatpush1.msra.mxu0 0.0
        %1782 = vmatprep.subr.mxu0 0.0
        %1783 = vmatpush1.msra.mxu0 0.0
        %1784 = vmatprep.subr.mxu0 0.0
        %1785 = vmatpush1.msra.mxu0 0.0
        %1786 = vmatprep.subr.mxu0 0.0
        %1787 = vmatpush1.msra.mxu0 0.0
        %1788 = vmatprep.subr.mxu0 0.0
        %1789 = vmatpush1.msra.mxu0 0.0
        %1790 = vmatprep.subr.mxu0 0.0
        %1791 = vmatpush1.msra.mxu0 0.0
        %1792 = vmatprep.subr.mxu0 0.0
        %1793 = vmatpush1.msra.mxu0 0.0
        %1794 = vmatprep.subr.mxu0 0.0
        %1795 = vmatpush1.msra.mxu0 0.0
        %1796 = vmatprep.subr.mxu0 0.0
        %1797 = vmatpush1.msra.mxu0 0.0
        %1798 = vmatprep.subr.mxu0 0.0
        %1799 = vmatpush1.msra.mxu0 0.0
        %1800 = vmatprep.subr.mxu0 0.0
        %1801 = vmatpush1.msra.mxu0 0.0
        %1802 = vmatprep.subr.mxu0 0.0
        %1803 = vmatpush1.msra.mxu0 0.0
        %1804 = vmatprep.subr.mxu0 0.0
        %1805 = vmatpush1.msra.mxu0 0.0
        %1806 = vmatprep.subr.mxu0 0.0
        %1807 = vmatpush1.msra.mxu0 0.0
        %1808 = vmatprep.subr.mxu0 0.0
        %1809 = vmatpush1.msra.mxu0 0.0
        %1810 = vmatprep.subr.mxu0 0.0
        %1811 = vmatpush1.msra.mxu0 0.0
        %1812 = vmatprep.subr.mxu0 0.0
        %1813 = vmatpush1.msra.mxu0 0.0
        %1814 = vmatprep.subr.mxu0 0.0
        %1815 = vmatpush1.msra.mxu0 0.0
        %1816 = vmatprep.subr.mxu0 0.0
        %1817 = vmatpush1.msra.mxu0 0.0
        %1818 = vmatprep.subr.mxu0 0.0
        %1819 = vmatpush1.msra.mxu0 0.0
        %1820 = vmatprep.subr.mxu0 0.0
        %1821 = vmatpush1.msra.mxu0 0.0
        %1822 = vmatprep.subr.mxu0 0.0
        %1823 = vmatpush1.msra.mxu0 0.0
        %1824 = vmatprep.mubr.f32.mxu0 0.0
        %1825 = vmatmul.mubr.f32.gmra.mrb[0].mxu0 %v1758
        %v1826 = vpop.f32.mrb[0].mxu0
        %v1827 = vadd.f32 0.0, %v1826
        %v1828 = vpop.f32.mrb[0].mxu0
        %1829 = vdwg.mxu0
        %v1830 = vadd.f32 %v799, %v1827
        %v1831 = vld [vmem:[%s14] sm:$0x1]
        %v1833 = vlaneseq
        %v1834 = vshrl.u32 %v1833, 7
        %v1835 = vsub.s32 0, %v1834
        %v1836 = vrot.slane %v1831, %v1835
        %v1838 = vadd.f32 %v1830, %v1836
        %v1839 = vld [vmem:[%s15] sm:$0x1]
        %v1840 = vld [vmem:[%s16] sm:$0x1]
        %v1841 = vsel %vm771, %v1838, 0.0
        %1842 = vadd.xlane.f32.xlu0 %v1841
        %v1843 = vpop.xlane.xlu0 %1842
        %v1844 = vmul.f32 %v1843, %v775
        %v1845 = vsub.f32 %v1838, %v1844
        %v1846 = vmul.f32 %v1845, %v1845
        %v1847 = vsel %vm771, %v1846, 0.0
        %1848 = vadd.xlane.f32.xlu0 %v1847
        %v1849 = vpop.xlane.xlu0 %1848
        %v1850 = vmul.f32 %v1849, %v775
        %v1851 = vadd.f32 %v1850, 1e-05
        %v1852 = vrsqrt.pop %v1851
        %v1853 = vmul.f32 %v1845, %v1852
        %v1855 = vlaneseq
        %v1856 = vshrl.u32 %v1855, 7
        %v1857 = vsub.s32 0, %v1856
        %v1858 = vrot.slane %v1839, %v1857
        %v1860 = vmul.f32 %v1853, %v1858
        %v1862 = vlaneseq
        %v1863 = vshrl.u32 %v1862, 7
        %v1864 = vsub.s32 0, %v1863
        %v1865 = vrot.slane %v1840, %v1864
        %v1867 = vadd.f32 %v1860, %v1865
        %v1868 = vld [vmem:[%s17] sm:$0xff]
        %v1869 = vld [vmem:[%s17 + $0x8] sm:$0xff]
        %v1870 = vld [vmem:[%s17 + $0x10] sm:$0xff]
        %v1871 = vld [vmem:[%s17 + $0x18] sm:$0xff]
        %v1872 = vld [vmem:[%s18] sm:$0x1]
        %v1874 = vlaneseq
        %v1875 = vshrl.u32 %v1874, 7
        %v1876 = vsub.s32 0, %v1875
        %v1877 = vrot.slane %v1872, %v1876
        %v1880 = vsel %vm771, %v1867, 0
        %1882 = vmatprep.subr.mxu0 0.0
        %1883 = vmatpush1.msra.mxu0 %v1868
        %1884 = vmatprep.subr.mxu0 0.0
        %1885 = vmatpush1.msra.mxu0 %v1869
        %1886 = vmatprep.subr.mxu0 0.0
        %1887 = vmatpush1.msra.mxu0 %v1870
        %1888 = vmatprep.subr.mxu0 0.0
        %1889 = vmatpush1.msra.mxu0 %v1871
        %1890 = vmatprep.subr.mxu0 0.0
        %1891 = vmatpush1.msra.mxu0 0.0
        %1892 = vmatprep.subr.mxu0 0.0
        %1893 = vmatpush1.msra.mxu0 0.0
        %1894 = vmatprep.subr.mxu0 0.0
        %1895 = vmatpush1.msra.mxu0 0.0
        %1896 = vmatprep.subr.mxu0 0.0
        %1897 = vmatpush1.msra.mxu0 0.0
        %1898 = vmatprep.subr.mxu0 0.0
        %1899 = vmatpush1.msra.mxu0 0.0
        %1900 = vmatprep.subr.mxu0 0.0
        %1901 = vmatpush1.msra.mxu0 0.0
        %1902 = vmatprep.subr.mxu0 0.0
        %1903 = vmatpush1.msra.mxu0 0.0
        %1904 = vmatprep.subr.mxu0 0.0
        %1905 = vmatpush1.msra.mxu0 0.0
        %1906 = vmatprep.subr.mxu0 0.0
        %1907 = vmatpush1.msra.mxu0 0.0
        %1908 = vmatprep.subr.mxu0 0.0
        %1909 = vmatpush1.msra.mxu0 0.0
        %1910 = vmatprep.subr.mxu0 0.0
        %1911 = vmatpush1.msra.mxu0 0.0
        %1912 = vmatprep.subr.mxu0 0.0
        %1913 = vmatpush1.msra.mxu0 0.0
        %1914 = vmatprep.subr.mxu0 0.0
        %1915 = vmatpush1.msra.mxu0 0.0
        %1916 = vmatprep.subr.mxu0 0.0
        %1917 = vmatpush1.msra.mxu0 0.0
        %1918 = vmatprep.subr.mxu0 0.0
        %1919 = vmatpush1.msra.mxu0 0.0
        %1920 = vmatprep.subr.mxu0 0.0
        %1921 = vmatpush1.msra.mxu0 0.0
        %1922 = vmatprep.subr.mxu0 0.0
        %1923 = vmatpush1.msra.mxu0 0.0
        %1924 = vmatprep.subr.mxu0 0.0
        %1925 = vmatpush1.msra.mxu0 0.0
        %1926 = vmatprep.subr.mxu0 0.0
        %1927 = vmatpush1.msra.mxu0 0.0
        %1928 = vmatprep.subr.mxu0 0.0
        %1929 = vmatpush1.msra.mxu0 0.0
        %1930 = vmatprep.subr.mxu0 0.0
        %1931 = vmatpush1.msra.mxu0 0.0
        %1932 = vmatprep.subr.mxu0 0.0
        %1933 = vmatpush1.msra.mxu0 0.0
        %1934 = vmatprep.subr.mxu0 0.0
        %1935 = vmatpush1.msra.mxu0 0.0
        %1936 = vmatprep.subr.mxu0 0.0
        %1937 = vmatpush1.msra.mxu0 0.0
        %1938 = vmatprep.subr.mxu0 0.0
        %1939 = vmatpush1.msra.mxu0 0.0
        %1940 = vmatprep.subr.mxu0 0.0
        %1941 = vmatpush1.msra.mxu0 0.0
        %1942 = vmatprep.subr.mxu0 0.0
        %1943 = vmatpush1.msra.mxu0 0.0
        %1944 = vmatprep.subr.mxu0 0.0
        %1945 = vmatpush1.msra.mxu0 0.0
        %1946 = vmatprep.mubr.f32.mxu0 0.0
        %1947 = vmatmul.mubr.f32.gmra.mrb[0].mxu0 %v1880
        %v1948 = vpop.f32.mrb[0].mxu0
        %v1949 = vadd.f32 %v1877, %v1948
        %v1950 = vpop.f32.mrb[0].mxu0
        %1951 = vdwg.mxu0
        %v1952 = vmul.f32 %v1949, 0.5
        %v1953 = vmul.f32 %v1949, 0.044715
        %v1954 = vmul.f32 %v1953, %v1949
        %v1955 = vmul.f32 %v1954, %v1949
        %v1956 = vadd.f32 %v1949, %v1955
        %v1957 = vmul.f32 %v1956, 0.7978846
        %v1958 = vtanh.pop %v1957
        %v1959 = vadd.f32 %v1958, 1.0
        %v1960 = vmul.f32 %v1952, %v1959
        %v1961 = vld [vmem:[%s19] sm:$0xff]
        %v1962 = vld [vmem:[%s19 + $0x8] sm:$0xff]
        %v1963 = vld [vmem:[%s19 + $0x10] sm:$0xff]
        %v1964 = vld [vmem:[%s19 + $0x18] sm:$0xff]
        %v1965 = vld [vmem:[%s19 + $0x20] sm:$0xff]
        %v1966 = vld [vmem:[%s19 + $0x28] sm:$0xff]
        %v1967 = vld [vmem:[%s19 + $0x30] sm:$0xff]
        %v1968 = vld [vmem:[%s19 + $0x38] sm:$0xff]
        %v1969 = vld [vmem:[%s19 + $0x40] sm:$0xff]
        %v1970 = vld [vmem:[%s19 + $0x48] sm:$0xff]
        %v1971 = vld [vmem:[%s19 + $0x50] sm:$0xff]
        %v1972 = vld [vmem:[%s19 + $0x58] sm:$0xff]
        %v1973 = vld [vmem:[%s19 + $0x60] sm:$0xff]
        %v1974 = vld [vmem:[%s19 + $0x68] sm:$0xff]
        %v1975 = vld [vmem:[%s19 + $0x70] sm:$0xff]
        %v1976 = vld [vmem:[%s19 + $0x78] sm:$0xff]
        %1977 = vmatprep.subr.mxu0 0.0
        %1978 = vmatpush1.msra.mxu0 %v1961
        %1979 = vmatprep.subr.mxu0 0.0
        %1980 = vmatpush1.msra.mxu0 %v1962
        %1981 = vmatprep.subr.mxu0 0.0
        %1982 = vmatpush1.msra.mxu0 %v1963
        %1983 = vmatprep.subr.mxu0 0.0
        %1984 = vmatpush1.msra.mxu0 %v1964
        %1985 = vmatprep.subr.mxu0 0.0
        %1986 = vmatpush1.msra.mxu0 %v1965
        %1987 = vmatprep.subr.mxu0 0.0
        %1988 = vmatpush1.msra.mxu0 %v1966
        %1989 = vmatprep.subr.mxu0 0.0
        %1990 = vmatpush1.msra.mxu0 %v1967
        %1991 = vmatprep.subr.mxu0 0.0
        %1992 = vmatpush1.msra.mxu0 %v1968
        %1993 = vmatprep.subr.mxu0 0.0
        %1994 = vmatpush1.msra.mxu0 %v1969
        %1995 = vmatprep.subr.mxu0 0.0
        %1996 = vmatpush1.msra.mxu0 %v1970
        %1997 = vmatprep.subr.mxu0 0.0
        %1998 = vmatpush1.msra.mxu0 %v1971
        %1999 = vmatprep.subr.mxu0 0.0
        %2000 = vmatpush1.msra.mxu0 %v1972
        %2001 = vmatprep.subr.mxu0 0.0
        %2002 = vmatpush1.msra.mxu0 %v1973
        %2003 = vmatprep.subr.mxu0 0.0
        %2004 = vmatpush1.msra.mxu0 %v1974
        %2005 = vmatprep.subr.mxu0 0.0
        %2006 = vmatpush1.msra.mxu0 %v1975
        %2007 = vmatprep.subr.mxu0 0.0
        %2008 = vmatpush1.msra.mxu0 %v1976
        %2009 = vmatprep.subr.mxu0 0.0
        %2010 = vmatpush1.msra.mxu0 0.0
        %2011 = vmatprep.subr.mxu0 0.0
        %2012 = vmatpush1.msra.mxu0 0.0
        %2013 = vmatprep.subr.mxu0 0.0
        %2014 = vmatpush1.msra.mxu0 0.0
        %2015 = vmatprep.subr.mxu0 0.0
        %2016 = vmatpush1.msra.mxu0 0.0
        %2017 = vmatprep.subr.mxu0 0.0
        %2018 = vmatpush1.msra.mxu0 0.0
        %2019 = vmatprep.subr.mxu0 0.0
        %2020 = vmatpush1.msra.mxu0 0.0
        %2021 = vmatprep.subr.mxu0 0.0
        %2022 = vmatpush1.msra.mxu0 0.0
        %2023 = vmatprep.subr.mxu0 0.0
        %2024 = vmatpush1.msra.mxu0 0.0
        %2025 = vmatprep.subr.mxu0 0.0
        %2026 = vmatpush1.msra.mxu0 0.0
        %2027 = vmatprep.subr.mxu0 0.0
        %2028 = vmatpush1.msra.mxu0 0.0
        %2029 = vmatprep.subr.mxu0 0.0
        %2030 = vmatpush1.msra.mxu0 0.0
        %2031 = vmatprep.subr.mxu0 0.0
        %2032 = vmatpush1.msra.mxu0 0.0
        %2033 = vmatprep.subr.mxu0 0.0
        %2034 = vmatpush1.msra.mxu0 0.0
        %2035 = vmatprep.subr.mxu0 0.0
        %2036 = vmatpush1.msra.mxu0 0.0
        %2037 = vmatprep.subr.mxu0 0.0
        %2038 = vmatpush1.msra.mxu0 0.0
        %2039 = vmatprep.subr.mxu0 0.0
        %2040 = vmatpush1.msra.mxu0 0.0
        %2041 = vmatprep.mubr.f32.mxu0 0.0
        %2042 = vmatmul.mubr.f32.gmra.mrb[0].mxu0 %v1960
        %v2043 = vpop.f32.mrb[0].mxu0
        %v2044 = vadd.f32 0.0, %v2043
        %v2045 = vpop.f32.mrb[0].mxu0
        %2046 = vdwg.mxu0
        %v2047 = vadd.f32 %v1838, %v2044
        %v2048 = vld [vmem:[%s20] sm:$0x1]
        %v2050 = vlaneseq
        %v2051 = vshrl.u32 %v2050, 7
        %v2052 = vsub.s32 0, %v2051
        %v2053 = vrot.slane %v2048, %v2052
        %v2055 = vadd.f32 %v2047, %v2053
        %s2056 = scalar_lea.vmem %s5, 1
        %v2057 = vld [vmem:[%s2056] sm:$0x1]
        %s2058 = scalar_lea.vmem %s6, 1
        %v2059 = vld [vmem:[%s2058] sm:$0x1]
        %v2060 = vsel %vm771, %v2055, 0.0
        %2061 = vadd.xlane.f32.xlu0 %v2060
        %v2062 = vpop.xlane.xlu0 %2061
        %v2063 = vmul.f32 %v2062, %v775
        %v2064 = vsub.f32 %v2055, %v2063
        %v2065 = vmul.f32 %v2064, %v2064
        %v2066 = vsel %vm771, %v2065, 0.0
        %2067 = vadd.xlane.f32.xlu0 %v2066
        %v2068 = vpop.xlane.xlu0 %2067
        %v2069 = vmul.f32 %v2068, %v775
        %v2070 = vadd.f32 %v2069, 1e-05
        %v2071 = vrsqrt.pop %v2070
        %v2072 = vmul.f32 %v2064, %v2071
        %v2074 = vlaneseq
        %v2075 = vshrl.u32 %v2074, 7
        %v2076 = vsub.s32 0, %v2075
        %v2077 = vrot.slane %v2057, %v2076
        %v2079 = vmul.f32 %v2072, %v2077
        %v2081 = vlaneseq
        %v2082 = vshrl.u32 %v2081, 7
        %v2083 = vsub.s32 0, %v2082
        %v2084 = vrot.slane %v2059, %v2083
        %v2086 = vadd.f32 %v2079, %v2084
        %s2087 = scalar_lea.vmem %s7, 32
        %v2088 = vld [vmem:[%s2087] sm:$0xff]
        %v2089 = vld [vmem:[%s2087 + $0x8] sm:$0xff]
        %v2090 = vld [vmem:[%s2087 + $0x10] sm:$0xff]
        %v2091 = vld [vmem:[%s2087 + $0x18] sm:$0xff]
        %s2092 = scalar_lea.vmem %s8, 1
        %v2093 = vld [vmem:[%s2092] sm:$0x1]
        %v2095 = vlaneseq
        %v2096 = vshrl.u32 %v2095, 7
        %v2097 = vsub.s32 0, %v2096
        %v2098 = vrot.slane %v2093, %v2097
        %v2101 = vsel %vm771, %v2086, 0
        %2103 = vmatprep.subr.mxu0 0.0
        %2104 = vmatpush1.msra.mxu0 %v2088
        %2105 = vmatprep.subr.mxu0 0.0
        %2106 = vmatpush1.msra.mxu0 %v2089
        %2107 = vmatprep.subr.mxu0 0.0
        %2108 = vmatpush1.msra.mxu0 %v2090
        %2109 = vmatprep.subr.mxu0 0.0
        %2110 = vmatpush1.msra.mxu0 %v2091
        %2111 = vmatprep.subr.mxu0 0.0
        %2112 = vmatpush1.msra.mxu0 0.0
        %2113 = vmatprep.subr.mxu0 0.0
        %2114 = vmatpush1.msra.mxu0 0.0
        %2115 = vmatprep.subr.mxu0 0.0
        %2116 = vmatpush1.msra.mxu0 0.0
        %2117 = vmatprep.subr.mxu0 0.0
        %2118 = vmatpush1.msra.mxu0 0.0
        %2119 = vmatprep.subr.mxu0 0.0
        %2120 = vmatpush1.msra.mxu0 0.0
        %2121 = vmatprep.subr.mxu0 0.0
        %2122 = vmatpush1.msra.mxu0 0.0
        %2123 = vmatprep.subr.mxu0 0.0
        %2124 = vmatpush1.msra.mxu0 0.0
        %2125 = vmatprep.subr.mxu0 0.0
        %2126 = vmatpush1.msra.mxu0 0.0
        %2127 = vmatprep.subr.mxu0 0.0
        %2128 = vmatpush1.msra.mxu0 0.0
        %2129 = vmatprep.subr.mxu0 0.0
        %2130 = vmatpush1.msra.mxu0 0.0
        %2131 = vmatprep.subr.mxu0 0.0
        %2132 = vmatpush1.msra.mxu0 0.0
        %2133 = vmatprep.subr.mxu0 0.0
        %2134 = vmatpush1.msra.mxu0 0.0
        %2135 = vmatprep.subr.mxu0 0.0
        %2136 = vmatpush1.msra.mxu0 0.0
        %2137 = vmatprep.subr.mxu0 0.0
        %2138 = vmatpush1.msra.mxu0 0.0
        %2139 = vmatprep.subr.mxu0 0.0
        %2140 = vmatpush1.msra.mxu0 0.0
        %2141 = vmatprep.subr.mxu0 0.0
        %2142 = vmatpush1.msra.mxu0 0.0
        %2143 = vmatprep.subr.mxu0 0.0
        %2144 = vmatpush1.msra.mxu0 0.0
        %2145 = vmatprep.subr.mxu0 0.0
        %2146 = vmatpush1.msra.mxu0 0.0
        %2147 = vmatprep.subr.mxu0 0.0
        %2148 = vmatpush1.msra.mxu0 0.0
        %2149 = vmatprep.subr.mxu0 0.0
        %2150 = vmatpush1.msra.mxu0 0.0
        %2151 = vmatprep.subr.mxu0 0.0
        %2152 = vmatpush1.msra.mxu0 0.0
        %2153 = vmatprep.subr.mxu0 0.0
        %2154 = vmatpush1.msra.mxu0 0.0
        %2155 = vmatprep.subr.mxu0 0.0
        %2156 = vmatpush1.msra.mxu0 0.0
        %2157 = vmatprep.subr.mxu0 0.0
        %2158 = vmatpush1.msra.mxu0 0.0
        %2159 = vmatprep.subr.mxu0 0.0
        %2160 = vmatpush1.msra.mxu0 0.0
        %2161 = vmatprep.subr.mxu0 0.0
        %2162 = vmatpush1.msra.mxu0 0.0
        %2163 = vmatprep.subr.mxu0 0.0
        %2164 = vmatpush1.msra.mxu0 0.0
        %2165 = vmatprep.subr.mxu0 0.0
        %2166 = vmatpush1.msra.mxu0 0.0
        %2167 = vmatprep.mubr.f32.mxu0 0.0
        %2168 = vmatmul.mubr.f32.gmra.mrb[0].mxu0 %v2101
        %v2169 = vpop.f32.mrb[0].mxu0
        %v2170 = vadd.f32 %v2098, %v2169
        %v2171 = vpop.f32.mrb[0].mxu0
        %2172 = vdwg.mxu0
        %s2173 = scalar_lea.vmem %s9, 32
        %v2174 = vld [vmem:[%s2173] sm:$0xff]
        %v2175 = vld [vmem:[%s2173 + $0x8] sm:$0xff]
        %v2176 = vld [vmem:[%s2173 + $0x10] sm:$0xff]
        %v2177 = vld [vmem:[%s2173 + $0x18] sm:$0xff]
        %s2178 = scalar_lea.vmem %s10, 1
        %v2179 = vld [vmem:[%s2178] sm:$0x1]
        %v2181 = vlaneseq
        %v2182 = vshrl.u32 %v2181, 7
        %v2183 = vsub.s32 0, %v2182
        %v2184 = vrot.slane %v2179, %v2183
        %2186 = vmatprep.subr.mxu0 0.0
        %2187 = vmatpush1.msra.mxu0 %v2174
        %2188 = vmatprep.subr.mxu0 0.0
        %2189 = vmatpush1.msra.mxu0 %v2175
        %2190 = vmatprep.subr.mxu0 0.0
        %2191 = vmatpush1.msra.mxu0 %v2176
        %2192 = vmatprep.subr.mxu0 0.0
        %2193 = vmatpush1.msra.mxu0 %v2177
        %2194 = vmatprep.subr.mxu0 0.0
        %2195 = vmatpush1.msra.mxu0 0.0
        %2196 = vmatprep.subr.mxu0 0.0
        %2197 = vmatpush1.msra.mxu0 0.0
        %2198 = vmatprep.subr.mxu0 0.0
        %2199 = vmatpush1.msra.mxu0 0.0
        %2200 = vmatprep.subr.mxu0 0.0
        %2201 = vmatpush1.msra.mxu0 0.0
        %2202 = vmatprep.subr.mxu0 0.0
        %2203 = vmatpush1.msra.mxu0 0.0
        %2204 = vmatprep.subr.mxu0 0.0
        %2205 = vmatpush1.msra.mxu0 0.0
        %2206 = vmatprep.subr.mxu0 0.0
        %2207 = vmatpush1.msra.mxu0 0.0
        %2208 = vmatprep.subr.mxu0 0.0
        %2209 = vmatpush1.msra.mxu0 0.0
        %2210 = vmatprep.subr.mxu0 0.0
        %2211 = vmatpush1.msra.mxu0 0.0
        %2212 = vmatprep.subr.mxu0 0.0
        %2213 = vmatpush1.msra.mxu0 0.0
        %2214 = vmatprep.subr.mxu0 0.0
        %2215 = vmatpush1.msra.mxu0 0.0
        %2216 = vmatprep.subr.mxu0 0.0
        %2217 = vmatpush1.msra.mxu0 0.0
        %2218 = vmatprep.subr.mxu0 0.0
        %2219 = vmatpush1.msra.mxu0 0.0
        %2220 = vmatprep.subr.mxu0 0.0
        %2221 = vmatpush1.msra.mxu0 0.0
        %2222 = vmatprep.subr.mxu0 0.0
        %2223 = vmatpush1.msra.mxu0 0.0
        %2224 = vmatprep.subr.mxu0 0.0
        %2225 = vmatpush1.msra.mxu0 0.0
        %2226 = vmatprep.subr.mxu0 0.0
        %2227 = vmatpush1.msra.mxu0 0.0
        %2228 = vmatprep.subr.mxu0 0.0
        %2229 = vmatpush1.msra.mxu0 0.0
        %2230 = vmatprep.subr.mxu0 0.0
        %2231 = vmatpush1.msra.mxu0 0.0
        %2232 = vmatprep.subr.mxu0 0.0
        %2233 = vmatpush1.msra.mxu0 0.0
        %2234 = vmatprep.subr.mxu0 0.0
        %2235 = vmatpush1.msra.mxu0 0.0
        %2236 = vmatprep.subr.mxu0 0.0
        %2237 = vmatpush1.msra.mxu0 0.0
        %2238 = vmatprep.subr.mxu0 0.0
        %2239 = vmatpush1.msra.mxu0 0.0
        %2240 = vmatprep.subr.mxu0 0.0
        %2241 = vmatpush1.msra.mxu0 0.0
        %2242 = vmatprep.subr.mxu0 0.0
        %2243 = vmatpush1.msra.mxu0 0.0
        %2244 = vmatprep.subr.mxu0 0.0
        %2245 = vmatpush1.msra.mxu0 0.0
        %2246 = vmatprep.subr.mxu0 0.0
        %2247 = vmatpush1.msra.mxu0 0.0
        %2248 = vmatprep.subr.mxu0 0.0
        %2249 = vmatpush1.msra.mxu0 0.0
        %2250 = vmatprep.mubr.f32.mxu0 0.0
        %2251 = vmatmul.mubr.f32.gmra.mrb[0].mxu0 %v2101
        %v2252 = vpop.f32.mrb[0].mxu0
        %v2253 = vadd.f32 %v2184, %v2252
        %v2254 = vpop.f32.mrb[0].mxu0
        %2255 = vdwg.mxu0
        %s2256 = scalar_lea.vmem %s11, 32
        %v2257 = vld [vmem:[%s2256] sm:$0xff]
        %v2258 = vld [vmem:[%s2256 + $0x8] sm:$0xff]
        %v2259 = vld [vmem:[%s2256 + $0x10] sm:$0xff]
        %v2260 = vld [vmem:[%s2256 + $0x18] sm:$0xff]
        %s2261 = scalar_lea.vmem %s12, 1
        %v2262 = vld [vmem:[%s2261] sm:$0x1]
        %v2264 = vlaneseq
        %v2265 = vshrl.u32 %v2264, 7
        %v2266 = vsub.s32 0, %v2265
        %v2267 = vrot.slane %v2262, %v2266
        %2269 = vmatprep.subr.mxu0 0.0
        %2270 = vmatpush1.msra.mxu0 %v2257
        %2271 = vmatprep.subr.mxu0 0.0
        %2272 = vmatpush1.msra.mxu0 %v2258
        %2273 = vmatprep.subr.mxu0 0.0
        %2274 = vmatpush1.msra.mxu0 %v2259
        %2275 = vmatprep.subr.mxu0 0.0
        %2276 = vmatpush1.msra.mxu0 %v2260
        %2277 = vmatprep.subr.mxu0 0.0
        %2278 = vmatpush1.msra.mxu0 0.0
        %2279 = vmatprep.subr.mxu0 0.0
        %2280 = vmatpush1.msra.mxu0 0.0
        %2281 = vmatprep.subr.mxu0 0.0
        %2282 = vmatpush1.msra.mxu0 0.0
        %2283 = vmatprep.subr.mxu0 0.0
        %2284 = vmatpush1.msra.mxu0 0.0
        %2285 = vmatprep.subr.mxu0 0.0
        %2286 = vmatpush1.msra.mxu0 0.0
        %2287 = vmatprep.subr.mxu0 0.0
        %2288 = vmatpush1.msra.mxu0 0.0
        %2289 = vmatprep.subr.mxu0 0.0
        %2290 = vmatpush1.msra.mxu0 0.0
        %2291 = vmatprep.subr.mxu0 0.0
        %2292 = vmatpush1.msra.mxu0 0.0
        %2293 = vmatprep.subr.mxu0 0.0
        %2294 = vmatpush1.msra.mxu0 0.0
        %2295 = vmatprep.subr.mxu0 0.0
        %2296 = vmatpush1.msra.mxu0 0.0
        %2297 = vmatprep.subr.mxu0 0.0
        %2298 = vmatpush1.msra.mxu0 0.0
        %2299 = vmatprep.subr.mxu0 0.0
        %2300 = vmatpush1.msra.mxu0 0.0
        %2301 = vmatprep.subr.mxu0 0.0
        %2302 = vmatpush1.msra.mxu0 0.0
        %2303 = vmatprep.subr.mxu0 0.0
        %2304 = vmatpush1.msra.mxu0 0.0
        %2305 = vmatprep.subr.mxu0 0.0
        %2306 = vmatpush1.msra.mxu0 0.0
        %2307 = vmatprep.subr.mxu0 0.0
        %2308 = vmatpush1.msra.mxu0 0.0
        %2309 = vmatprep.subr.mxu0 0.0
        %2310 = vmatpush1.msra.mxu0 0.0
        %2311 = vmatprep.subr.mxu0 0.0
        %2312 = vmatpush1.msra.mxu0 0.0
        %2313 = vmatprep.subr.mxu0 0.0
        %2314 = vmatpush1.msra.mxu0 0.0
        %2315 = vmatprep.subr.mxu0 0.0
        %2316 = vmatpush1.msra.mxu0 0.0
        %2317 = vmatprep.subr.mxu0 0.0
        %2318 = vmatpush1.msra.mxu0 0.0
        %2319 = vmatprep.subr.mxu0 0.0
        %2320 = vmatpush1.msra.mxu0 0.0
        %2321 = vmatprep.subr.mxu0 0.0
        %2322 = vmatpush1.msra.mxu0 0.0
        %2323 = vmatprep.subr.mxu0 0.0
        %2324 = vmatpush1.msra.mxu0 0.0
        %2325 = vmatprep.subr.mxu0 0.0
        %2326 = vmatpush1.msra.mxu0 0.0
        %2327 = vmatprep.subr.mxu0 0.0
        %2328 = vmatpush1.msra.mxu0 0.0
        %2329 = vmatprep.subr.mxu0 0.0
        %2330 = vmatpush1.msra.mxu0 0.0
        %2331 = vmatprep.subr.mxu0 0.0
        %2332 = vmatpush1.msra.mxu0 0.0
        %2333 = vmatprep.mubr.f32.mxu0 0.0
        %2334 = vmatmul.mubr.f32.gmra.mrb[0].mxu0 %v2101
        %v2335 = vpop.f32.mrb[0].mxu0
        %v2336 = vadd.f32 %v2267, %v2335
        %v2337 = vpop.f32.mrb[0].mxu0
        %2338 = vdwg.mxu0
        %v2340 = vsel %vm1075, %v2170, 0
        %v2343 = vsel %vm1075, %v2253, 0
        %2345 = vmatprep.subr.mxu0 0.0
        %2346 = vmatpush1.xpose.msra.mxu0 %v2343
        %2347 = vmatprep.subr.mxu0 0.0
        %2348 = vmatpush1.xpose.msra.mxu0 0.0
        %2349 = vmatprep.subr.mxu0 0.0
        %2350 = vmatpush1.xpose.msra.mxu0 0.0
        %2351 = vmatprep.subr.mxu0 0.0
        %2352 = vmatpush1.xpose.msra.mxu0 0.0
        %2353 = vmatprep.subr.mxu0 0.0
        %2354 = vmatpush1.xpose.msra.mxu0 0.0
        %2355 = vmatprep.subr.mxu0 0.0
        %2356 = vmatpush1.xpose.msra.mxu0 0.0
        %2357 = vmatprep.subr.mxu0 0.0
        %2358 = vmatpush1.xpose.msra.mxu0 0.0
        %2359 = vmatprep.subr.mxu0 0.0
        %2360 = vmatpush1.xpose.msra.mxu0 0.0
        %2361 = vmatprep.subr.mxu0 0.0
        %2362 = vmatpush1.xpose.msra.mxu0 0.0
        %2363 = vmatprep.subr.mxu0 0.0
        %2364 = vmatpush1.xpose.msra.mxu0 0.0
        %2365 = vmatprep.subr.mxu0 0.0
        %2366 = vmatpush1.xpose.msra.mxu0 0.0
        %2367 = vmatprep.subr.mxu0 0.0
        %2368 = vmatpush1.xpose.msra.mxu0 0.0
        %2369 = vmatprep.subr.mxu0 0.0
        %2370 = vmatpush1.xpose.msra.mxu0 0.0
        %2371 = vmatprep.subr.mxu0 0.0
        %2372 = vmatpush1.xpose.msra.mxu0 0.0
        %2373 = vmatprep.subr.mxu0 0.0
        %2374 = vmatpush1.xpose.msra.mxu0 0.0
        %2375 = vmatprep.subr.mxu0 0.0
        %2376 = vmatpush1.xpose.msra.mxu0 0.0
        %2377 = vmatprep.subr.mxu0 0.0
        %2378 = vmatpush1.xpose.msra.mxu0 0.0
        %2379 = vmatprep.subr.mxu0 0.0
        %2380 = vmatpush1.xpose.msra.mxu0 0.0
        %2381 = vmatprep.subr.mxu0 0.0
        %2382 = vmatpush1.xpose.msra.mxu0 0.0
        %2383 = vmatprep.subr.mxu0 0.0
        %2384 = vmatpush1.xpose.msra.mxu0 0.0
        %2385 = vmatprep.subr.mxu0 0.0
        %2386 = vmatpush1.xpose.msra.mxu0 0.0
        %2387 = vmatprep.subr.mxu0 0.0
        %2388 = vmatpush1.xpose.msra.mxu0 0.0
        %2389 = vmatprep.subr.mxu0 0.0
        %2390 = vmatpush1.xpose.msra.mxu0 0.0
        %2391 = vmatprep.subr.mxu0 0.0
        %2392 = vmatpush1.xpose.msra.mxu0 0.0
        %2393 = vmatprep.subr.mxu0 0.0
        %2394 = vmatpush1.xpose.msra.mxu0 0.0
        %2395 = vmatprep.subr.mxu0 0.0
        %2396 = vmatpush1.xpose.msra.mxu0 0.0
        %2397 = vmatprep.subr.mxu0 0.0
        %2398 = vmatpush1.xpose.msra.mxu0 0.0
        %2399 = vmatprep.subr.mxu0 0.0
        %2400 = vmatpush1.xpose.msra.mxu0 0.0
        %2401 = vmatprep.subr.mxu0 0.0
        %2402 = vmatpush1.xpose.msra.mxu0 0.0
        %2403 = vmatprep.subr.mxu0 0.0
        %2404 = vmatpush1.xpose.msra.mxu0 0.0
        %2405 = vmatprep.subr.mxu0 0.0
        %2406 = vmatpush1.xpose.msra.mxu0 0.0
        %2407 = vmatprep.subr.mxu0 0.0
        %2408 = vmatpush1.xpose.msra.mxu0 0.0
        %2409 = vmatprep.mubr.f32.mxu0 0.0
        %2410 = vmatmul.mubr.f32.gmra.mrb[0].mxu0 %v2340
        %v2411 = vpop.f32.mrb[0].mxu0
        %v2412 = vadd.f32 0.0, %v2411
        %v2413 = vpop.f32.mrb[0].mxu0
        %2414 = vdwg.mxu0
        %2415 = vrot.lane.b32.xlu0 %v2170, 120
        %v2416 = vpop.permute.xlu0 %2415
        %2417 = vrot.lane.b32.xlu0 %v2253, 120
        %v2418 = vpop.permute.xlu0 %2417
        %v2419 = vsel %vm1075, %v2416, 0
        %v2421 = vsel %vm1075, %v2418, 0
        %2423 = vmatprep.subr.mxu0 0.0
        %2424 = vmatpush1.xpose.msra.mxu0 %v2421
        %2425 = vmatprep.subr.mxu0 0.0
        %2426 = vmatpush1.xpose.msra.mxu0 0.0
        %2427 = vmatprep.subr.mxu0 0.0
        %2428 = vmatpush1.xpose.msra.mxu0 0.0
        %2429 = vmatprep.subr.mxu0 0.0
        %2430 = vmatpush1.xpose.msra.mxu0 0.0
        %2431 = vmatprep.subr.mxu0 0.0
        %2432 = vmatpush1.xpose.msra.mxu0 0.0
        %2433 = vmatprep.subr.mxu0 0.0
        %2434 = vmatpush1.xpose.msra.mxu0 0.0
        %2435 = vmatprep.subr.mxu0 0.0
        %2436 = vmatpush1.xpose.msra.mxu0 0.0
        %2437 = vmatprep.subr.mxu0 0.0
        %2438 = vmatpush1.xpose.msra.mxu0 0.0
        %2439 = vmatprep.subr.mxu0 0.0
        %2440 = vmatpush1.xpose.msra.mxu0 0.0
        %2441 = vmatprep.subr.mxu0 0.0
        %2442 = vmatpush1.xpose.msra.mxu0 0.0
        %2443 = vmatprep.subr.mxu0 0.0
        %2444 = vmatpush1.xpose.msra.mxu0 0.0
        %2445 = vmatprep.subr.mxu0 0.0
        %2446 = vmatpush1.xpose.msra.mxu0 0.0
        %2447 = vmatprep.subr.mxu0 0.0
        %2448 = vmatpush1.xpose.msra.mxu0 0.0
        %2449 = vmatprep.subr.mxu0 0.0
        %2450 = vmatpush1.xpose.msra.mxu0 0.0
        %2451 = vmatprep.subr.mxu0 0.0
        %2452 = vmatpush1.xpose.msra.mxu0 0.0
        %2453 = vmatprep.subr.mxu0 0.0
        %2454 = vmatpush1.xpose.msra.mxu0 0.0
        %2455 = vmatprep.subr.mxu0 0.0
        %2456 = vmatpush1.xpose.msra.mxu0 0.0
        %2457 = vmatprep.subr.mxu0 0.0
        %2458 = vmatpush1.xpose.msra.mxu0 0.0
        %2459 = vmatprep.subr.mxu0 0.0
        %2460 = vmatpush1.xpose.msra.mxu0 0.0
        %2461 = vmatprep.subr.mxu0 0.0
        %2462 = vmatpush1.xpose.msra.mxu0 0.0
        %2463 = vmatprep.subr.mxu0 0.0
        %2464 = vmatpush1.xpose.msra.mxu0 0.0
        %2465 = vmatprep.subr.mxu0 0.0
        %2466 = vmatpush1.xpose.msra.mxu0 0.0
        %2467 = vmatprep.subr.mxu0 0.0
        %2468 = vmatpush1.xpose.msra.mxu0 0.0
        %2469 = vmatprep.subr.mxu0 0.0
        %2470 = vmatpush1.xpose.msra.mxu0 0.0
        %2471 = vmatprep.subr.mxu0 0.0
        %2472 = vmatpush1.xpose.msra.mxu0 0.0
        %2473 = vmatprep.subr.mxu0 0.0
        %2474 = vmatpush1.xpose.msra.mxu0 0.0
        %2475 = vmatprep.subr.mxu0 0.0
        %2476 = vmatpush1.xpose.msra.mxu0 0.0
        %2477 = vmatprep.subr.mxu0 0.0
        %2478 = vmatpush1.xpose.msra.mxu0 0.0
        %2479 = vmatprep.subr.mxu0 0.0
        %2480 = vmatpush1.xpose.msra.mxu0 0.0
        %2481 = vmatprep.subr.mxu0 0.0
        %2482 = vmatpush1.xpose.msra.mxu0 0.0
        %2483 = vmatprep.subr.mxu0 0.0
        %2484 = vmatpush1.xpose.msra.mxu0 0.0
        %2485 = vmatprep.subr.mxu0 0.0
        %2486 = vmatpush1.xpose.msra.mxu0 0.0
        %2487 = vmatprep.mubr.f32.mxu0 0.0
        %2488 = vmatmul.mubr.f32.gmra.mrb[0].mxu0 %v2419
        %v2489 = vpop.f32.mrb[0].mxu0
        %v2490 = vadd.f32 0.0, %v2489
        %v2491 = vpop.f32.mrb[0].mxu0
        %2492 = vdwg.mxu0
        %2493 = vrot.lane.b32.xlu0 %v2170, 112
        %v2494 = vpop.permute.xlu0 %2493
        %2495 = vrot.lane.b32.xlu0 %v2253, 112
        %v2496 = vpop.permute.xlu0 %2495
        %v2497 = vsel %vm1075, %v2494, 0
        %v2499 = vsel %vm1075, %v2496, 0
        %2501 = vmatprep.subr.mxu0 0.0
        %2502 = vmatpush1.xpose.msra.mxu0 %v2499
        %2503 = vmatprep.subr.mxu0 0.0
        %2504 = vmatpush1.xpose.msra.mxu0 0.0
        %2505 = vmatprep.subr.mxu0 0.0
        %2506 = vmatpush1.xpose.msra.mxu0 0.0
        %2507 = vmatprep.subr.mxu0 0.0
        %2508 = vmatpush1.xpose.msra.mxu0 0.0
        %2509 = vmatprep.subr.mxu0 0.0
        %2510 = vmatpush1.xpose.msra.mxu0 0.0
        %2511 = vmatprep.subr.mxu0 0.0
        %2512 = vmatpush1.xpose.msra.mxu0 0.0
        %2513 = vmatprep.subr.mxu0 0.0
        %2514 = vmatpush1.xpose.msra.mxu0 0.0
        %2515 = vmatprep.subr.mxu0 0.0
        %2516 = vmatpush1.xpose.msra.mxu0 0.0
        %2517 = vmatprep.subr.mxu0 0.0
        %2518 = vmatpush1.xpose.msra.mxu0 0.0
        %2519 = vmatprep.subr.mxu0 0.0
        %2520 = vmatpush1.xpose.msra.mxu0 0.0
        %2521 = vmatprep.subr.mxu0 0.0
        %2522 = vmatpush1.xpose.msra.mxu0 0.0
        %2523 = vmatprep.subr.mxu0 0.0
        %2524 = vmatpush1.xpose.msra.mxu0 0.0
        %2525 = vmatprep.subr.mxu0 0.0
        %2526 = vmatpush1.xpose.msra.mxu0 0.0
        %2527 = vmatprep.subr.mxu0 0.0
        %2528 = vmatpush1.xpose.msra.mxu0 0.0
        %2529 = vmatprep.subr.mxu0 0.0
        %2530 = vmatpush1.xpose.msra.mxu0 0.0
        %2531 = vmatprep.subr.mxu0 0.0
        %2532 = vmatpush1.xpose.msra.mxu0 0.0
        %2533 = vmatprep.subr.mxu0 0.0
        %2534 = vmatpush1.xpose.msra.mxu0 0.0
        %2535 = vmatprep.subr.mxu0 0.0
        %2536 = vmatpush1.xpose.msra.mxu0 0.0
        %2537 = vmatprep.subr.mxu0 0.0
        %2538 = vmatpush1.xpose.msra.mxu0 0.0
        %2539 = vmatprep.subr.mxu0 0.0
        %2540 = vmatpush1.xpose.msra.mxu0 0.0
        %2541 = vmatprep.subr.mxu0 0.0
        %2542 = vmatpush1.xpose.msra.mxu0 0.0
        %2543 = vmatprep.subr.mxu0 0.0
        %2544 = vmatpush1.xpose.msra.mxu0 0.0
        %2545 = vmatprep.subr.mxu0 0.0
        %2546 = vmatpush1.xpose.msra.mxu0 0.0
        %2547 = vmatprep.subr.mxu0 0.0
        %2548 = vmatpush1.xpose.msra.mxu0 0.0
        %2549 = vmatprep.subr.mxu0 0.0
        %2550 = vmatpush1.xpose.msra.mxu0 0.0
        %2551 = vmatprep.subr.mxu0 0.0
        %2552 = vmatpush1.xpose.msra.mxu0 0.0
        %2553 = vmatprep.subr.mxu0 0.0
        %2554 = vmatpush1.xpose.msra.mxu0 0.0
        %2555 = vmatprep.subr.mxu0 0.0
        %2556 = vmatpush1.xpose.msra.mxu0 0.0
        %2557 = vmatprep.subr.mxu0 0.0
        %2558 = vmatpush1.xpose.msra.mxu0 0.0
        %2559 = vmatprep.subr.mxu0 0.0
        %2560 = vmatpush1.xpose.msra.mxu0 0.0
        %2561 = vmatprep.subr.mxu0 0.0
        %2562 = vmatpush1.xpose.msra.mxu0 0.0
        %2563 = vmatprep.subr.mxu0 0.0
        %2564 = vmatpush1.xpose.msra.mxu0 0.0
        %2565 = vmatprep.mubr.f32.mxu0 0.0
        %2566 = vmatmul.mubr.f32.gmra.mrb[0].mxu0 %v2497
        %v2567 = vpop.f32.mrb[0].mxu0
        %v2568 = vadd.f32 0.0, %v2567
        %v2569 = vpop.f32.mrb[0].mxu0
        %2570 = vdwg.mxu0
        %2571 = vrot.lane.b32.xlu0 %v2170, 104
        %v2572 = vpop.permute.xlu0 %2571
        %2573 = vrot.lane.b32.xlu0 %v2253, 104
        %v2574 = vpop.permute.xlu0 %2573
        %v2575 = vsel %vm1075, %v2572, 0
        %v2577 = vsel %vm1075, %v2574, 0
        %2579 = vmatprep.subr.mxu0 0.0
        %2580 = vmatpush1.xpose.msra.mxu0 %v2577
        %2581 = vmatprep.subr.mxu0 0.0
        %2582 = vmatpush1.xpose.msra.mxu0 0.0
        %2583 = vmatprep.subr.mxu0 0.0
        %2584 = vmatpush1.xpose.msra.mxu0 0.0
        %2585 = vmatprep.subr.mxu0 0.0
        %2586 = vmatpush1.xpose.msra.mxu0 0.0
        %2587 = vmatprep.subr.mxu0 0.0
        %2588 = vmatpush1.xpose.msra.mxu0 0.0
        %2589 = vmatprep.subr.mxu0 0.0
        %2590 = vmatpush1.xpose.msra.mxu0 0.0
        %2591 = vmatprep.subr.mxu0 0.0
        %2592 = vmatpush1.xpose.msra.mxu0 0.0
        %2593 = vmatprep.subr.mxu0 0.0
        %2594 = vmatpush1.xpose.msra.mxu0 0.0
        %2595 = vmatprep.subr.mxu0 0.0
        %2596 = vmatpush1.xpose.msra.mxu0 0.0
        %2597 = vmatprep.subr.mxu0 0.0
        %2598 = vmatpush1.xpose.msra.mxu0 0.0
        %2599 = vmatprep.subr.mxu0 0.0
        %2600 = vmatpush1.xpose.msra.mxu0 0.0
        %2601 = vmatprep.subr.mxu0 0.0
        %2602 = vmatpush1.xpose.msra.mxu0 0.0
        %2603 = vmatprep.subr.mxu0 0.0
        %2604 = vmatpush1.xpose.msra.mxu0 0.0
        %2605 = vmatprep.subr.mxu0 0.0
        %2606 = vmatpush1.xpose.msra.mxu0 0.0
        %2607 = vmatprep.subr.mxu0 0.0
        %2608 = vmatpush1.xpose.msra.mxu0 0.0
        %2609 = vmatprep.subr.mxu0 0.0
        %2610 = vmatpush1.xpose.msra.mxu0 0.0
        %2611 = vmatprep.subr.mxu0 0.0
        %2612 = vmatpush1.xpose.msra.mxu0 0.0
        %2613 = vmatprep.subr.mxu0 0.0
        %2614 = vmatpush1.xpose.msra.mxu0 0.0
        %2615 = vmatprep.subr.mxu0 0.0
        %2616 = vmatpush1.xpose.msra.mxu0 0.0
        %2617 = vmatprep.subr.mxu0 0.0
        %2618 = vmatpush1.xpose.msra.mxu0 0.0
        %2619 = vmatprep.subr.mxu0 0.0
        %2620 = vmatpush1.xpose.msra.mxu0 0.0
        %2621 = vmatprep.subr.mxu0 0.0
        %2622 = vmatpush1.xpose.msra.mxu0 0.0
        %2623 = vmatprep.subr.mxu0 0.0
        %2624 = vmatpush1.xpose.msra.mxu0 0.0
        %2625 = vmatprep.subr.mxu0 0.0
        %2626 = vmatpush1.xpose.msra.mxu0 0.0
        %2627 = vmatprep.subr.mxu0 0.0
        %2628 = vmatpush1.xpose.msra.mxu0 0.0
        %2629 = vmatprep.subr.mxu0 0.0
        %2630 = vmatpush1.xpose.msra.mxu0 0.0
        %2631 = vmatprep.subr.mxu0 0.0
        %2632 = vmatpush1.xpose.msra.mxu0 0.0
        %2633 = vmatprep.subr.mxu0 0.0
        %2634 = vmatpush1.xpose.msra.mxu0 0.0
        %2635 = vmatprep.subr.mxu0 0.0
        %2636 = vmatpush1.xpose.msra.mxu0 0.0
        %2637 = vmatprep.subr.mxu0 0.0
        %2638 = vmatpush1.xpose.msra.mxu0 0.0
        %2639 = vmatprep.subr.mxu0 0.0
        %2640 = vmatpush1.xpose.msra.mxu0 0.0
        %2641 = vmatprep.subr.mxu0 0.0
        %2642 = vmatpush1.xpose.msra.mxu0 0.0
        %2643 = vmatprep.mubr.f32.mxu0 0.0
        %2644 = vmatmul.mubr.f32.gmra.mrb[0].mxu0 %v2575
        %v2645 = vpop.f32.mrb[0].mxu0
        %v2646 = vadd.f32 0.0, %v2645
        %v2647 = vpop.f32.mrb[0].mxu0
        %2648 = vdwg.mxu0
        %v2649 = vmul.f32 %v2412, 0.35355338
        %v2650 = vmul.f32 %v2490, 0.35355338
        %v2651 = vmul.f32 %v2568, 0.35355338
        %v2652 = vmul.f32 %v2646, 0.35355338
        %v2653 = vsel %vm1075, %v2649, -inf
        %2654 = vmax.xlane.f32.xlu0 %v2653
        %v2655 = vpop.xlane.xlu0 %2654
        %v2656 = vsel %vm1075, %v2650, -inf
        %2657 = vmax.xlane.f32.xlu0 %v2656
        %v2658 = vpop.xlane.xlu0 %2657
        %v2659 = vsel %vm1075, %v2651, -inf
        %2660 = vmax.xlane.f32.xlu0 %v2659
        %v2661 = vpop.xlane.xlu0 %2660
        %v2662 = vsel %vm1075, %v2652, -inf
        %2663 = vmax.xlane.f32.xlu0 %v2662
        %v2664 = vpop.xlane.xlu0 %2663
        %v2665 = vsub.f32 %v2649, %v2655
        %v2666 = vsub.f32 %v2650, %v2658
        %v2667 = vsub.f32 %v2651, %v2661
        %v2668 = vsub.f32 %v2652, %v2664
        %v2669 = vmul.f32 %v2665, 1.442695
        %v2670 = vpow.pop %v2669
        %v2671 = vmul.f32 %v2666, 1.442695
        %v2672 = vpow.pop %v2671
        %v2673 = vmul.f32 %v2667, 1.442695
        %v2674 = vpow.pop %v2673
        %v2675 = vmul.f32 %v2668, 1.442695
        %v2676 = vpow.pop %v2675
        %v2677 = vsel %vm1075, %v2670, 0.0
        %2678 = vadd.xlane.f32.xlu0 %v2677
        %v2679 = vpop.xlane.xlu0 %2678
        %v2680 = vsel %vm1075, %v2672, 0.0
        %2681 = vadd.xlane.f32.xlu0 %v2680
        %v2682 = vpop.xlane.xlu0 %2681
        %v2683 = vsel %vm1075, %v2674, 0.0
        %2684 = vadd.xlane.f32.xlu0 %v2683
        %v2685 = vpop.xlane.xlu0 %2684
        %v2686 = vsel %vm1075, %v2676, 0.0
        %2687 = vadd.xlane.f32.xlu0 %v2686
        %v2688 = vpop.xlane.xlu0 %2687
        %v2689 = vrcp.pop %v2679
        %v2690 = vrcp.pop %v2682
        %v2691 = vrcp.pop %v2685
        %v2692 = vrcp.pop %v2688
        %v2693 = vmul.f32 %v2670, %v2689
        %v2694 = vmul.f32 %v2672, %v2690
        %v2695 = vmul.f32 %v2674, %v2691
        %v2696 = vmul.f32 %v2676, %v2692
        %v2698 = vsel %vm1075, %v2693, 0
        %2700 = vmatprep.subr.mxu0 0.0
        %2701 = vmatpush1.msra.mxu0 %v2336
        %2702 = vmatprep.subr.mxu0 0.0
        %2703 = vmatpush1.msra.mxu0 0.0
        %2704 = vmatprep.subr.mxu0 0.0
        %2705 = vmatpush1.msra.mxu0 0.0
        %2706 = vmatprep.subr.mxu0 0.0
        %2707 = vmatpush1.msra.mxu0 0.0
        %2708 = vmatprep.subr.mxu0 0.0
        %2709 = vmatpush1.msra.mxu0 0.0
        %2710 = vmatprep.subr.mxu0 0.0
        %2711 = vmatpush1.msra.mxu0 0.0
        %2712 = vmatprep.subr.mxu0 0.0
        %2713 = vmatpush1.msra.mxu0 0.0
        %2714 = vmatprep.subr.mxu0 0.0
        %2715 = vmatpush1.msra.mxu0 0.0
        %2716 = vmatprep.subr.mxu0 0.0
        %2717 = vmatpush1.msra.mxu0 0.0
        %2718 = vmatprep.subr.mxu0 0.0
        %2719 = vmatpush1.msra.mxu0 0.0
        %2720 = vmatprep.subr.mxu0 0.0
        %2721 = vmatpush1.msra.mxu0 0.0
        %2722 = vmatprep.subr.mxu0 0.0
        %2723 = vmatpush1.msra.mxu0 0.0
        %2724 = vmatprep.subr.mxu0 0.0
        %2725 = vmatpush1.msra.mxu0 0.0
        %2726 = vmatprep.subr.mxu0 0.0
        %2727 = vmatpush1.msra.mxu0 0.0
        %2728 = vmatprep.subr.mxu0 0.0
        %2729 = vmatpush1.msra.mxu0 0.0
        %2730 = vmatprep.subr.mxu0 0.0
        %2731 = vmatpush1.msra.mxu0 0.0
        %2732 = vmatprep.subr.mxu0 0.0
        %2733 = vmatpush1.msra.mxu0 0.0
        %2734 = vmatprep.subr.mxu0 0.0
        %2735 = vmatpush1.msra.mxu0 0.0
        %2736 = vmatprep.subr.mxu0 0.0
        %2737 = vmatpush1.msra.mxu0 0.0
        %2738 = vmatprep.subr.mxu0 0.0
        %2739 = vmatpush1.msra.mxu0 0.0
        %2740 = vmatprep.subr.mxu0 0.0
        %2741 = vmatpush1.msra.mxu0 0.0
        %2742 = vmatprep.subr.mxu0 0.0
        %2743 = vmatpush1.msra.mxu0 0.0
        %2744 = vmatprep.subr.mxu0 0.0
        %2745 = vmatpush1.msra.mxu0 0.0
        %2746 = vmatprep.subr.mxu0 0.0
        %2747 = vmatpush1.msra.mxu0 0.0
        %2748 = vmatprep.subr.mxu0 0.0
        %2749 = vmatpush1.msra.mxu0 0.0
        %2750 = vmatprep.subr.mxu0 0.0
        %2751 = vmatpush1.msra.mxu0 0.0
        %2752 = vmatprep.subr.mxu0 0.0
        %2753 = vmatpush1.msra.mxu0 0.0
        %2754 = vmatprep.subr.mxu0 0.0
        %2755 = vmatpush1.msra.mxu0 0.0
        %2756 = vmatprep.subr.mxu0 0.0
        %2757 = vmatpush1.msra.mxu0 0.0
        %2758 = vmatprep.subr.mxu0 0.0
        %2759 = vmatpush1.msra.mxu0 0.0
        %2760 = vmatprep.subr.mxu0 0.0
        %2761 = vmatpush1.msra.mxu0 0.0
        %2762 = vmatprep.subr.mxu0 0.0
        %2763 = vmatpush1.msra.mxu0 0.0
        %2764 = vmatprep.mubr.f32.mxu0 0.0
        %2765 = vmatmul.mubr.f32.gmra.mrb[0].mxu0 %v2698
        %v2766 = vpop.f32.mrb[0].mxu0
        %v2767 = vadd.f32 0.0, %v2766
        %v2768 = vpop.f32.mrb[0].mxu0
        %2769 = vdwg.mxu0
        %2771 = vrot.lane.b32.xlu0 %v2336, 120
        %v2772 = vpop.permute.xlu0 %2771
        %v2775 = vsel %vm1075, %v2694, 0
        %2777 = vmatprep.subr.mxu0 0.0
        %2778 = vmatpush1.msra.mxu0 %v2772
        %2779 = vmatprep.subr.mxu0 0.0
        %2780 = vmatpush1.msra.mxu0 0.0
        %2781 = vmatprep.subr.mxu0 0.0
        %2782 = vmatpush1.msra.mxu0 0.0
        %2783 = vmatprep.subr.mxu0 0.0
        %2784 = vmatpush1.msra.mxu0 0.0
        %2785 = vmatprep.subr.mxu0 0.0
        %2786 = vmatpush1.msra.mxu0 0.0
        %2787 = vmatprep.subr.mxu0 0.0
        %2788 = vmatpush1.msra.mxu0 0.0
        %2789 = vmatprep.subr.mxu0 0.0
        %2790 = vmatpush1.msra.mxu0 0.0
        %2791 = vmatprep.subr.mxu0 0.0
        %2792 = vmatpush1.msra.mxu0 0.0
        %2793 = vmatprep.subr.mxu0 0.0
        %2794 = vmatpush1.msra.mxu0 0.0
        %2795 = vmatprep.subr.mxu0 0.0
        %2796 = vmatpush1.msra.mxu0 0.0
        %2797 = vmatprep.subr.mxu0 0.0
        %2798 = vmatpush1.msra.mxu0 0.0
        %2799 = vmatprep.subr.mxu0 0.0
        %2800 = vmatpush1.msra.mxu0 0.0
        %2801 = vmatprep.subr.mxu0 0.0
        %2802 = vmatpush1.msra.mxu0 0.0
        %2803 = vmatprep.subr.mxu0 0.0
        %2804 = vmatpush1.msra.mxu0 0.0
        %2805 = vmatprep.subr.mxu0 0.0
        %2806 = vmatpush1.msra.mxu0 0.0
        %2807 = vmatprep.subr.mxu0 0.0
        %2808 = vmatpush1.msra.mxu0 0.0
        %2809 = vmatprep.subr.mxu0 0.0
        %2810 = vmatpush1.msra.mxu0 0.0
        %2811 = vmatprep.subr.mxu0 0.0
        %2812 = vmatpush1.msra.mxu0 0.0
        %2813 = vmatprep.subr.mxu0 0.0
        %2814 = vmatpush1.msra.mxu0 0.0
        %2815 = vmatprep.subr.mxu0 0.0
        %2816 = vmatpush1.msra.mxu0 0.0
        %2817 = vmatprep.subr.mxu0 0.0
        %2818 = vmatpush1.msra.mxu0 0.0
        %2819 = vmatprep.subr.mxu0 0.0
        %2820 = vmatpush1.msra.mxu0 0.0
        %2821 = vmatprep.subr.mxu0 0.0
        %2822 = vmatpush1.msra.mxu0 0.0
        %2823 = vmatprep.subr.mxu0 0.0
        %2824 = vmatpush1.msra.mxu0 0.0
        %2825 = vmatprep.subr.mxu0 0.0
        %2826 = vmatpush1.msra.mxu0 0.0
        %2827 = vmatprep.subr.mxu0 0.0
        %2828 = vmatpush1.msra.mxu0 0.0
        %2829 = vmatprep.subr.mxu0 0.0
        %2830 = vmatpush1.msra.mxu0 0.0
        %2831 = vmatprep.subr.mxu0 0.0
        %2832 = vmatpush1.msra.mxu0 0.0
        %2833 = vmatprep.subr.mxu0 0.0
        %2834 = vmatpush1.msra.mxu0 0.0
        %2835 = vmatprep.subr.mxu0 0.0
        %2836 = vmatpush1.msra.mxu0 0.0
        %2837 = vmatprep.subr.mxu0 0.0
        %2838 = vmatpush1.msra.mxu0 0.0
        %2839 = vmatprep.subr.mxu0 0.0
        %2840 = vmatpush1.msra.mxu0 0.0
        %2841 = vmatprep.mubr.f32.mxu0 0.0
        %2842 = vmatmul.mubr.f32.gmra.mrb[0].mxu0 %v2775
        %v2843 = vpop.f32.mrb[0].mxu0
        %v2844 = vadd.f32 0.0, %v2843
        %v2845 = vpop.f32.mrb[0].mxu0
        %2846 = vdwg.mxu0
        %2847 = vrot.lane.b32.xlu0 %v2336, 112
        %v2848 = vpop.permute.xlu0 %2847
        %v2851 = vsel %vm1075, %v2695, 0
        %2853 = vmatprep.subr.mxu0 0.0
        %2854 = vmatpush1.msra.mxu0 %v2848
        %2855 = vmatprep.subr.mxu0 0.0
        %2856 = vmatpush1.msra.mxu0 0.0
        %2857 = vmatprep.subr.mxu0 0.0
        %2858 = vmatpush1.msra.mxu0 0.0
        %2859 = vmatprep.subr.mxu0 0.0
        %2860 = vmatpush1.msra.mxu0 0.0
        %2861 = vmatprep.subr.mxu0 0.0
        %2862 = vmatpush1.msra.mxu0 0.0
        %2863 = vmatprep.subr.mxu0 0.0
        %2864 = vmatpush1.msra.mxu0 0.0
        %2865 = vmatprep.subr.mxu0 0.0
        %2866 = vmatpush1.msra.mxu0 0.0
        %2867 = vmatprep.subr.mxu0 0.0
        %2868 = vmatpush1.msra.mxu0 0.0
        %2869 = vmatprep.subr.mxu0 0.0
        %2870 = vmatpush1.msra.mxu0 0.0
        %2871 = vmatprep.subr.mxu0 0.0
        %2872 = vmatpush1.msra.mxu0 0.0
        %2873 = vmatprep.subr.mxu0 0.0
        %2874 = vmatpush1.msra.mxu0 0.0
        %2875 = vmatprep.subr.mxu0 0.0
        %2876 = vmatpush1.msra.mxu0 0.0
        %2877 = vmatprep.subr.mxu0 0.0
        %2878 = vmatpush1.msra.mxu0 0.0
        %2879 = vmatprep.subr.mxu0 0.0
        %2880 = vmatpush1.msra.mxu0 0.0
        %2881 = vmatprep.subr.mxu0 0.0
        %2882 = vmatpush1.msra.mxu0 0.0
        %2883 = vmatprep.subr.mxu0 0.0
        %2884 = vmatpush1.msra.mxu0 0.0
        %2885 = vmatprep.subr.mxu0 0.0
        %2886 = vmatpush1.msra.mxu0 0.0
        %2887 = vmatprep.subr.mxu0 0.0
        %2888 = vmatpush1.msra.mxu0 0.0
        %2889 = vmatprep.subr.mxu0 0.0
        %2890 = vmatpush1.msra.mxu0 0.0
        %2891 = vmatprep.subr.mxu0 0.0
        %2892 = vmatpush1.msra.mxu0 0.0
        %2893 = vmatprep.subr.mxu0 0.0
        %2894 = vmatpush1.msra.mxu0 0.0
        %2895 = vmatprep.subr.mxu0 0.0
        %2896 = vmatpush1.msra.mxu0 0.0
        %2897 = vmatprep.subr.mxu0 0.0
        %2898 = vmatpush1.msra.mxu0 0.0
        %2899 = vmatprep.subr.mxu0 0.0
        %2900 = vmatpush1.msra.mxu0 0.0
        %2901 = vmatprep.subr.mxu0 0.0
        %2902 = vmatpush1.msra.mxu0 0.0
        %2903 = vmatprep.subr.mxu0 0.0
        %2904 = vmatpush1.msra.mxu0 0.0
        %2905 = vmatprep.subr.mxu0 0.0
        %2906 = vmatpush1.msra.mxu0 0.0
        %2907 = vmatprep.subr.mxu0 0.0
        %2908 = vmatpush1.msra.mxu0 0.0
        %2909 = vmatprep.subr.mxu0 0.0
        %2910 = vmatpush1.msra.mxu0 0.0
        %2911 = vmatprep.subr.mxu0 0.0
        %2912 = vmatpush1.msra.mxu0 0.0
        %2913 = vmatprep.subr.mxu0 0.0
        %2914 = vmatpush1.msra.mxu0 0.0
        %2915 = vmatprep.subr.mxu0 0.0
        %2916 = vmatpush1.msra.mxu0 0.0
        %2917 = vmatprep.mubr.f32.mxu0 0.0
        %2918 = vmatmul.mubr.f32.gmra.mrb[0].mxu0 %v2851
        %v2919 = vpop.f32.mrb[0].mxu0
        %v2920 = vadd.f32 0.0, %v2919
        %v2921 = vpop.f32.mrb[0].mxu0
        %2922 = vdwg.mxu0
        %2923 = vrot.lane.b32.xlu0 %v2336, 104
        %v2924 = vpop.permute.xlu0 %2923
        %v2927 = vsel %vm1075, %v2696, 0
        %2929 = vmatprep.subr.mxu0 0.0
        %2930 = vmatpush1.msra.mxu0 %v2924
        %2931 = vmatprep.subr.mxu0 0.0
        %2932 = vmatpush1.msra.mxu0 0.0
        %2933 = vmatprep.subr.mxu0 0.0
        %2934 = vmatpush1.msra.mxu0 0.0
        %2935 = vmatprep.subr.mxu0 0.0
        %2936 = vmatpush1.msra.mxu0 0.0
        %2937 = vmatprep.subr.mxu0 0.0
        %2938 = vmatpush1.msra.mxu0 0.0
        %2939 = vmatprep.subr.mxu0 0.0
        %2940 = vmatpush1.msra.mxu0 0.0
        %2941 = vmatprep.subr.mxu0 0.0
        %2942 = vmatpush1.msra.mxu0 0.0
        %2943 = vmatprep.subr.mxu0 0.0
        %2944 = vmatpush1.msra.mxu0 0.0
        %2945 = vmatprep.subr.mxu0 0.0
        %2946 = vmatpush1.msra.mxu0 0.0
        %2947 = vmatprep.subr.mxu0 0.0
        %2948 = vmatpush1.msra.mxu0 0.0
        %2949 = vmatprep.subr.mxu0 0.0
        %2950 = vmatpush1.msra.mxu0 0.0
        %2951 = vmatprep.subr.mxu0 0.0
        %2952 = vmatpush1.msra.mxu0 0.0
        %2953 = vmatprep.subr.mxu0 0.0
        %2954 = vmatpush1.msra.mxu0 0.0
        %2955 = vmatprep.subr.mxu0 0.0
        %2956 = vmatpush1.msra.mxu0 0.0
        %2957 = vmatprep.subr.mxu0 0.0
        %2958 = vmatpush1.msra.mxu0 0.0
        %2959 = vmatprep.subr.mxu0 0.0
        %2960 = vmatpush1.msra.mxu0 0.0
        %2961 = vmatprep.subr.mxu0 0.0
        %2962 = vmatpush1.msra.mxu0 0.0
        %2963 = vmatprep.subr.mxu0 0.0
        %2964 = vmatpush1.msra.mxu0 0.0
        %2965 = vmatprep.subr.mxu0 0.0
        %2966 = vmatpush1.msra.mxu0 0.0
        %2967 = vmatprep.subr.mxu0 0.0
        %2968 = vmatpush1.msra.mxu0 0.0
        %2969 = vmatprep.subr.mxu0 0.0
        %2970 = vmatpush1.msra.mxu0 0.0
        %2971 = vmatprep.subr.mxu0 0.0
        %2972 = vmatpush1.msra.mxu0 0.0
        %2973 = vmatprep.subr.mxu0 0.0
        %2974 = vmatpush1.msra.mxu0 0.0
        %2975 = vmatprep.subr.mxu0 0.0
        %2976 = vmatpush1.msra.mxu0 0.0
        %2977 = vmatprep.subr.mxu0 0.0
        %2978 = vmatpush1.msra.mxu0 0.0
        %2979 = vmatprep.subr.mxu0 0.0
        %2980 = vmatpush1.msra.mxu0 0.0
        %2981 = vmatprep.subr.mxu0 0.0
        %2982 = vmatpush1.msra.mxu0 0.0
        %2983 = vmatprep.subr.mxu0 0.0
        %2984 = vmatpush1.msra.mxu0 0.0
        %2985 = vmatprep.subr.mxu0 0.0
        %2986 = vmatpush1.msra.mxu0 0.0
        %2987 = vmatprep.subr.mxu0 0.0
        %2988 = vmatpush1.msra.mxu0 0.0
        %2989 = vmatprep.subr.mxu0 0.0
        %2990 = vmatpush1.msra.mxu0 0.0
        %2991 = vmatprep.subr.mxu0 0.0
        %2992 = vmatpush1.msra.mxu0 0.0
        %2993 = vmatprep.mubr.f32.mxu0 0.0
        %2994 = vmatmul.mubr.f32.gmra.mrb[0].mxu0 %v2927
        %v2995 = vpop.f32.mrb[0].mxu0
        %v2996 = vadd.f32 0.0, %v2995
        %v2997 = vpop.f32.mrb[0].mxu0
        %2998 = vdwg.mxu0
        %3000 = vrot.lane.b32.xlu0 %v2844, 8
        %v3001 = vpop.permute.xlu0 %3000
        %3004 = vrot.lane.b32.xlu0 %v2920, 16
        %v3005 = vpop.permute.xlu0 %3004
        %3008 = vrot.lane.b32.xlu0 %v2996, 24
        %v3009 = vpop.permute.xlu0 %3008
        %v3011 = vsel %vm1075, %v2767, %v3001
        %v3012 = vsel %vm1749, %v3011, %v3005
        %v3013 = vsel %vm1751, %v3012, %v3009
        %s3014 = scalar_lea.vmem %s13, 32
        %v3015 = vld [vmem:[%s3014] sm:$0xff]
        %v3016 = vld [vmem:[%s3014 + $0x8] sm:$0xff]
        %v3017 = vld [vmem:[%s3014 + $0x10] sm:$0xff]
        %v3018 = vld [vmem:[%s3014 + $0x18] sm:$0xff]
        %v3020 = vsel %vm771, %v3013, 0
        %3022 = vmatprep.subr.mxu0 0.0
        %3023 = vmatpush1.msra.mxu0 %v3015
        %3024 = vmatprep.subr.mxu0 0.0
        %3025 = vmatpush1.msra.mxu0 %v3016
        %3026 = vmatprep.subr.mxu0 0.0
        %3027 = vmatpush1.msra.mxu0 %v3017
        %3028 = vmatprep.subr.mxu0 0.0
        %3029 = vmatpush1.msra.mxu0 %v3018
        %3030 = vmatprep.subr.mxu0 0.0
        %3031 = vmatpush1.msra.mxu0 0.0
        %3032 = vmatprep.subr.mxu0 0.0
        %3033 = vmatpush1.msra.mxu0 0.0
        %3034 = vmatprep.subr.mxu0 0.0
        %3035 = vmatpush1.msra.mxu0 0.0
        %3036 = vmatprep.subr.mxu0 0.0
        %3037 = vmatpush1.msra.mxu0 0.0
        %3038 = vmatprep.subr.mxu0 0.0
        %3039 = vmatpush1.msra.mxu0 0.0
        %3040 = vmatprep.subr.mxu0 0.0
        %3041 = vmatpush1.msra.mxu0 0.0
        %3042 = vmatprep.subr.mxu0 0.0
        %3043 = vmatpush1.msra.mxu0 0.0
        %3044 = vmatprep.subr.mxu0 0.0
        %3045 = vmatpush1.msra.mxu0 0.0
        %3046 = vmatprep.subr.mxu0 0.0
        %3047 = vmatpush1.msra.mxu0 0.0
        %3048 = vmatprep.subr.mxu0 0.0
        %3049 = vmatpush1.msra.mxu0 0.0
        %3050 = vmatprep.subr.mxu0 0.0
        %3051 = vmatpush1.msra.mxu0 0.0
        %3052 = vmatprep.subr.mxu0 0.0
        %3053 = vmatpush1.msra.mxu0 0.0
        %3054 = vmatprep.subr.mxu0 0.0
        %3055 = vmatpush1.msra.mxu0 0.0
        %3056 = vmatprep.subr.mxu0 0.0
        %3057 = vmatpush1.msra.mxu0 0.0
        %3058 = vmatprep.subr.mxu0 0.0
        %3059 = vmatpush1.msra.mxu0 0.0
        %3060 = vmatprep.subr.mxu0 0.0
        %3061 = vmatpush1.msra.mxu0 0.0
        %3062 = vmatprep.subr.mxu0 0.0
        %3063 = vmatpush1.msra.mxu0 0.0
        %3064 = vmatprep.subr.mxu0 0.0
        %3065 = vmatpush1.msra.mxu0 0.0
        %3066 = vmatprep.subr.mxu0 0.0
        %3067 = vmatpush1.msra.mxu0 0.0
        %3068 = vmatprep.subr.mxu0 0.0
        %3069 = vmatpush1.msra.mxu0 0.0
        %3070 = vmatprep.subr.mxu0 0.0
        %3071 = vmatpush1.msra.mxu0 0.0
        %3072 = vmatprep.subr.mxu0 0.0
        %3073 = vmatpush1.msra.mxu0 0.0
        %3074 = vmatprep.subr.mxu0 0.0
        %3075 = vmatpush1.msra.mxu0 0.0
        %3076 = vmatprep.subr.mxu0 0.0
        %3077 = vmatpush1.msra.mxu0 0.0
        %3078 = vmatprep.subr.mxu0 0.0
        %3079 = vmatpush1.msra.mxu0 0.0
        %3080 = vmatprep.subr.mxu0 0.0
        %3081 = vmatpush1.msra.mxu0 0.0
        %3082 = vmatprep.subr.mxu0 0.0
        %3083 = vmatpush1.msra.mxu0 0.0
        %3084 = vmatprep.subr.mxu0 0.0
        %3085 = vmatpush1.msra.mxu0 0.0
        %3086 = vmatprep.mubr.f32.mxu0 0.0
        %3087 = vmatmul.mubr.f32.gmra.mrb[0].mxu0 %v3020
        %v3088 = vpop.f32.mrb[0].mxu0
        %v3089 = vadd.f32 0.0, %v3088
        %v3090 = vpop.f32.mrb[0].mxu0
        %3091 = vdwg.mxu0
        %v3092 = vadd.f32 %v2055, %v3089
        %s3093 = scalar_lea.vmem %s14, 1
        %v3094 = vld [vmem:[%s3093] sm:$0x1]
        %v3096 = vlaneseq
        %v3097 = vshrl.u32 %v3096, 7
        %v3098 = vsub.s32 0, %v3097
        %v3099 = vrot.slane %v3094, %v3098
        %v3101 = vadd.f32 %v3092, %v3099
        %s3102 = scalar_lea.vmem %s15, 1
        %v3103 = vld [vmem:[%s3102] sm:$0x1]
        %s3104 = scalar_lea.vmem %s16, 1
        %v3105 = vld [vmem:[%s3104] sm:$0x1]
        %v3106 = vsel %vm771, %v3101, 0.0
        %3107 = vadd.xlane.f32.xlu0 %v3106
        %v3108 = vpop.xlane.xlu0 %3107
        %v3109 = vmul.f32 %v3108, %v775
        %v3110 = vsub.f32 %v3101, %v3109
        %v3111 = vmul.f32 %v3110, %v3110
        %v3112 = vsel %vm771, %v3111, 0.0
        %3113 = vadd.xlane.f32.xlu0 %v3112
        %v3114 = vpop.xlane.xlu0 %3113
        %v3115 = vmul.f32 %v3114, %v775
        %v3116 = vadd.f32 %v3115, 1e-05
        %v3117 = vrsqrt.pop %v3116
        %v3118 = vmul.f32 %v3110, %v3117
        %v3120 = vlaneseq
        %v3121 = vshrl.u32 %v3120, 7
        %v3122 = vsub.s32 0, %v3121
        %v3123 = vrot.slane %v3103, %v3122
        %v3125 = vmul.f32 %v3118, %v3123
        %v3127 = vlaneseq
        %v3128 = vshrl.u32 %v3127, 7
        %v3129 = vsub.s32 0, %v3128
        %v3130 = vrot.slane %v3105, %v3129
        %v3132 = vadd.f32 %v3125, %v3130
        %s3133 = scalar_lea.vmem %s17, 32
        %v3134 = vld [vmem:[%s3133] sm:$0xff]
        %v3135 = vld [vmem:[%s3133 + $0x8] sm:$0xff]
        %v3136 = vld [vmem:[%s3133 + $0x10] sm:$0xff]
        %v3137 = vld [vmem:[%s3133 + $0x18] sm:$0xff]
        %s3138 = scalar_lea.vmem %s18, 1
        %v3139 = vld [vmem:[%s3138] sm:$0x1]
        %v3141 = vlaneseq
        %v3142 = vshrl.u32 %v3141, 7
        %v3143 = vsub.s32 0, %v3142
        %v3144 = vrot.slane %v3139, %v3143
        %v3147 = vsel %vm771, %v3132, 0
        %3149 = vmatprep.subr.mxu0 0.0
        %3150 = vmatpush1.msra.mxu0 %v3134
        %3151 = vmatprep.subr.mxu0 0.0
        %3152 = vmatpush1.msra.mxu0 %v3135
        %3153 = vmatprep.subr.mxu0 0.0
        %3154 = vmatpush1.msra.mxu0 %v3136
        %3155 = vmatprep.subr.mxu0 0.0
        %3156 = vmatpush1.msra.mxu0 %v3137
        %3157 = vmatprep.subr.mxu0 0.0
        %3158 = vmatpush1.msra.mxu0 0.0
        %3159 = vmatprep.subr.mxu0 0.0
        %3160 = vmatpush1.msra.mxu0 0.0
        %3161 = vmatprep.subr.mxu0 0.0
        %3162 = vmatpush1.msra.mxu0 0.0
        %3163 = vmatprep.subr.mxu0 0.0
        %3164 = vmatpush1.msra.mxu0 0.0
        %3165 = vmatprep.subr.mxu0 0.0
        %3166 = vmatpush1.msra.mxu0 0.0
        %3167 = vmatprep.subr.mxu0 0.0
        %3168 = vmatpush1.msra.mxu0 0.0
        %3169 = vmatprep.subr.mxu0 0.0
        %3170 = vmatpush1.msra.mxu0 0.0
        %3171 = vmatprep.subr.mxu0 0.0
        %3172 = vmatpush1.msra.mxu0 0.0
        %3173 = vmatprep.subr.mxu0 0.0
        %3174 = vmatpush1.msra.mxu0 0.0
        %3175 = vmatprep.subr.mxu0 0.0
        %3176 = vmatpush1.msra.mxu0 0.0
        %3177 = vmatprep.subr.mxu0 0.0
        %3178 = vmatpush1.msra.mxu0 0.0
        %3179 = vmatprep.subr.mxu0 0.0
        %3180 = vmatpush1.msra.mxu0 0.0
        %3181 = vmatprep.subr.mxu0 0.0
        %3182 = vmatpush1.msra.mxu0 0.0
        %3183 = vmatprep.subr.mxu0 0.0
        %3184 = vmatpush1.msra.mxu0 0.0
        %3185 = vmatprep.subr.mxu0 0.0
        %3186 = vmatpush1.msra.mxu0 0.0
        %3187 = vmatprep.subr.mxu0 0.0
        %3188 = vmatpush1.msra.mxu0 0.0
        %3189 = vmatprep.subr.mxu0 0.0
        %3190 = vmatpush1.msra.mxu0 0.0
        %3191 = vmatprep.subr.mxu0 0.0
        %3192 = vmatpush1.msra.mxu0 0.0
        %3193 = vmatprep.subr.mxu0 0.0
        %3194 = vmatpush1.msra.mxu0 0.0
        %3195 = vmatprep.subr.mxu0 0.0
        %3196 = vmatpush1.msra.mxu0 0.0
        %3197 = vmatprep.subr.mxu0 0.0
        %3198 = vmatpush1.msra.mxu0 0.0
        %3199 = vmatprep.subr.mxu0 0.0
        %3200 = vmatpush1.msra.mxu0 0.0
        %3201 = vmatprep.subr.mxu0 0.0
        %3202 = vmatpush1.msra.mxu0 0.0
        %3203 = vmatprep.subr.mxu0 0.0
        %3204 = vmatpush1.msra.mxu0 0.0
        %3205 = vmatprep.subr.mxu0 0.0
        %3206 = vmatpush1.msra.mxu0 0.0
        %3207 = vmatprep.subr.mxu0 0.0
        %3208 = vmatpush1.msra.mxu0 0.0
        %3209 = vmatprep.subr.mxu0 0.0
        %3210 = vmatpush1.msra.mxu0 0.0
        %3211 = vmatprep.subr.mxu0 0.0
        %3212 = vmatpush1.msra.mxu0 0.0
        %3213 = vmatprep.mubr.f32.mxu0 0.0
        %3214 = vmatmul.mubr.f32.gmra.mrb[0].mxu0 %v3147
        %v3215 = vpop.f32.mrb[0].mxu0
        %v3216 = vadd.f32 %v3144, %v3215
        %v3217 = vpop.f32.mrb[0].mxu0
        %3218 = vdwg.mxu0
        %v3219 = vmul.f32 %v3216, 0.5
        %v3220 = vmul.f32 %v3216, 0.044715
        %v3221 = vmul.f32 %v3220, %v3216
        %v3222 = vmul.f32 %v3221, %v3216
        %v3223 = vadd.f32 %v3216, %v3222
        %v3224 = vmul.f32 %v3223, 0.7978846
        %v3225 = vtanh.pop %v3224
        %v3226 = vadd.f32 %v3225, 1.0
        %v3227 = vmul.f32 %v3219, %v3226
        %s3228 = scalar_lea.vmem %s19, 128
        %v3229 = vld [vmem:[%s3228] sm:$0xff]
        %v3230 = vld [vmem:[%s3228 + $0x8] sm:$0xff]
        %v3231 = vld [vmem:[%s3228 + $0x10] sm:$0xff]
        %v3232 = vld [vmem:[%s3228 + $0x18] sm:$0xff]
        %v3233 = vld [vmem:[%s3228 + $0x20] sm:$0xff]
        %v3234 = vld [vmem:[%s3228 + $0x28] sm:$0xff]
        %v3235 = vld [vmem:[%s3228 + $0x30] sm:$0xff]
        %v3236 = vld [vmem:[%s3228 + $0x38] sm:$0xff]
        %v3237 = vld [vmem:[%s3228 + $0x40] sm:$0xff]
        %v3238 = vld [vmem:[%s3228 + $0x48] sm:$0xff]
        %v3239 = vld [vmem:[%s3228 + $0x50] sm:$0xff]
        %v3240 = vld [vmem:[%s3228 + $0x58] sm:$0xff]
        %v3241 = vld [vmem:[%s3228 + $0x60] sm:$0xff]
        %v3242 = vld [vmem:[%s3228 + $0x68] sm:$0xff]
        %v3243 = vld [vmem:[%s3228 + $0x70] sm:$0xff]
        %v3244 = vld [vmem:[%s3228 + $0x78] sm:$0xff]
        %3245 = vmatprep.subr.mxu0 0.0
        %3246 = vmatpush1.msra.mxu0 %v3229
        %3247 = vmatprep.subr.mxu0 0.0
        %3248 = vmatpush1.msra.mxu0 %v3230
        %3249 = vmatprep.subr.mxu0 0.0
        %3250 = vmatpush1.msra.mxu0 %v3231
        %3251 = vmatprep.subr.mxu0 0.0
        %3252 = vmatpush1.msra.mxu0 %v3232
        %3253 = vmatprep.subr.mxu0 0.0
        %3254 = vmatpush1.msra.mxu0 %v3233
        %3255 = vmatprep.subr.mxu0 0.0
        %3256 = vmatpush1.msra.mxu0 %v3234
        %3257 = vmatprep.subr.mxu0 0.0
        %3258 = vmatpush1.msra.mxu0 %v3235
        %3259 = vmatprep.subr.mxu0 0.0
        %3260 = vmatpush1.msra.mxu0 %v3236
        %3261 = vmatprep.subr.mxu0 0.0
        %3262 = vmatpush1.msra.mxu0 %v3237
        %3263 = vmatprep.subr.mxu0 0.0
        %3264 = vmatpush1.msra.mxu0 %v3238
        %3265 = vmatprep.subr.mxu0 0.0
        %3266 = vmatpush1.msra.mxu0 %v3239
        %3267 = vmatprep.subr.mxu0 0.0
        %3268 = vmatpush1.msra.mxu0 %v3240
        %3269 = vmatprep.subr.mxu0 0.0
        %3270 = vmatpush1.msra.mxu0 %v3241
        %3271 = vmatprep.subr.mxu0 0.0
        %3272 = vmatpush1.msra.mxu0 %v3242
        %3273 = vmatprep.subr.mxu0 0.0
        %3274 = vmatpush1.msra.mxu0 %v3243
        %3275 = vmatprep.subr.mxu0 0.0
        %3276 = vmatpush1.msra.mxu0 %v3244
        %3277 = vmatprep.subr.mxu0 0.0
        %3278 = vmatpush1.msra.mxu0 0.0
        %3279 = vmatprep.subr.mxu0 0.0
        %3280 = vmatpush1.msra.mxu0 0.0
        %3281 = vmatprep.subr.mxu0 0.0
        %3282 = vmatpush1.msra.mxu0 0.0
        %3283 = vmatprep.subr.mxu0 0.0
        %3284 = vmatpush1.msra.mxu0 0.0
        %3285 = vmatprep.subr.mxu0 0.0
        %3286 = vmatpush1.msra.mxu0 0.0
        %3287 = vmatprep.subr.mxu0 0.0
        %3288 = vmatpush1.msra.mxu0 0.0
        %3289 = vmatprep.subr.mxu0 0.0
        %3290 = vmatpush1.msra.mxu0 0.0
        %3291 = vmatprep.subr.mxu0 0.0
        %3292 = vmatpush1.msra.mxu0 0.0
        %3293 = vmatprep.subr.mxu0 0.0
        %3294 = vmatpush1.msra.mxu0 0.0
        %3295 = vmatprep.subr.mxu0 0.0
        %3296 = vmatpush1.msra.mxu0 0.0
        %3297 = vmatprep.subr.mxu0 0.0
        %3298 = vmatpush1.msra.mxu0 0.0
        %3299 = vmatprep.subr.mxu0 0.0
        %3300 = vmatpush1.msra.mxu0 0.0
        %3301 = vmatprep.subr.mxu0 0.0
        %3302 = vmatpush1.msra.mxu0 0.0
        %3303 = vmatprep.subr.mxu0 0.0
        %3304 = vmatpush1.msra.mxu0 0.0
        %3305 = vmatprep.subr.mxu0 0.0
        %3306 = vmatpush1.msra.mxu0 0.0
        %3307 = vmatprep.subr.mxu0 0.0
        %3308 = vmatpush1.msra.mxu0 0.0
        %3309 = vmatprep.mubr.f32.mxu0 0.0
        %3310 = vmatmul.mubr.f32.gmra.mrb[0].mxu0 %v3227
        %v3311 = vpop.f32.mrb[0].mxu0
        %v3312 = vadd.f32 0.0, %v3311
        %v3313 = vpop.f32.mrb[0].mxu0
        %3314 = vdwg.mxu0
        %v3315 = vadd.f32 %v3101, %v3312
        %s3316 = scalar_lea.vmem %s20, 1
        %v3317 = vld [vmem:[%s3316] sm:$0x1]
        %v3319 = vlaneseq
        %v3320 = vshrl.u32 %v3319, 7
        %v3321 = vsub.s32 0, %v3320
        %v3322 = vrot.slane %v3317, %v3321
        %v3324 = vadd.f32 %v3315, %v3322
        %3325 = vst.msk [vmem:[%s614] sm:$0xff] %vm771, %v3324
        %s3326 = sand.u32 %s469, 1
        %s3327 = scalar_lea.sflag [#allocation5], %s3326
        %s3328 = sand.u32 %s469, 1
        %s3329 = smul.addr %s3328, 8
        %s3330 = scalar_lea.vmem [#allocation4], %s3329
        // Predicated region
        $region101: #{tpu_custom_call.1} parent=99 // pred_check
          %p3331 = pneg %p479
        $region102: #{tpu_custom_call.1} parent=99 // pred_check_branch
          %3333 = sbr.rel (%p3331) target = $region104
        $region103: #{tpu_custom_call.1} parent=99 // pred_region
          %s3335 = ssub.s32 128, 128
          %3336 = vsyncadd %s3327, %s3335
          %s3337 = smul.addr %s41, 128
          %s3338 = scalar_lea.hbm %s21, %s3337
          %s3340 = sshll.u32 %s3330, 4
          %s3341 = int_to_ptr.vmem [resolvable:$true] %s3340
          %3343 = dma.vmem_to_hbm [thread:$0]  %s3341, 128, %s3338, %s3327
        $region104: #{tpu_custom_call.1} parent=99 // pred_fallthru
          _
      $region100: #{tpu_custom_call.1} parent=5 // pred_fallthru
        _
      %p3344 = scmp.le.s32.totalorder 2, %s36
      // Predicated region
      $region105: #{tpu_custom_call.1} parent=5 // pred_check
        %p3345 = pneg %p3344
      $region106: #{tpu_custom_call.1} parent=5 // pred_check_branch
        %3347 = sbr.rel (%p3345) target = $region108
      $region107: #{tpu_custom_call.1} parent=5 // pred_region
        %s3348 = ssub.s32 %s36, 2
        // Predicated region
        $region109: #{tpu_custom_call.1} parent=107 // pred_check
          %p3349 = pneg %p485
        $region110: #{tpu_custom_call.1} parent=107 // pred_check_branch
          %3351 = sbr.rel (%p3349) target = $region112
        $region111: #{tpu_custom_call.1} parent=107 // pred_region
          %s3352 = sand.u32 %s470, 1
          %s3353 = scalar_lea.sflag [#allocation5], %s3352
          %s3354 = sand.u32 %s470, 1
          %s3355 = smul.addr %s3354, 8
          %s3356 = scalar_lea.vmem [#allocation4], %s3355
          %3357 = dma.done %s3353, 128
        $region112: #{tpu_custom_call.1} parent=107 // pred_fallthru
          _
      $region108: #{tpu_custom_call.1} parent=5 // pred_fallthru
        _
    $region6: #{tpu_custom_call.1} parent=1 // loop_footer
      %s40 = sadd.s32 1, %s36
    $region7: #{tpu_custom_call.1} parent=1 // loop_footer_branch
      %35 = sbr.rel target = $region3
    $region8: #{tpu_custom_call.1} parent=1 // loop_exit
      _
    %3358 = vsyncpa [#allocation5], 1
    %s3359 = scalar_lea.sflag [#allocation5], 1
    %3360 = vsyncpa %s3359, 1

</llo_original>
